<compile_context>
chip_gen: v7x
topology: tpu7x:2x2x1
jax: 0.10.0
libtpu: 0.0.40
codegen_flags: <defaults>
</compile_context>

<pallas_src>
import functools

import jax
import jax.numpy as jnp
from jax import lax
from jax.experimental import pallas as pl
from jax.experimental.pallas import tpu as pltpu


def _layernorm_f32(x, gamma, beta, eps):
    """LayerNorm over the last dim; statistics in f32, single pass over x."""
    xf = x.astype(jnp.float32)
    mean = jnp.mean(xf, axis=-1, keepdims=True)
    mean_sq = jnp.mean(xf * xf, axis=-1, keepdims=True)
    var = mean_sq - mean * mean
    inv = lax.rsqrt(var + eps)
    return (xf - mean) * inv * gamma + beta  # f32


def _attention_kernel(xq_ref, xkv_ref, g_ref, b_ref,
                      wq_ref, wk_ref, wv_ref, wout_ref, bout_ref,
                      o_ref,
                      q_scr, k_scr, v_scr,
                      *, heads, dim_head, eps, bf16_exp):
    # Per grid step (b, qi):
    #   xq_ref  : (1, TQ, D) query-row tile of x
    #   xkv_ref : (1, N,  D) full token row of x (only read when qi == 0)
    #   wq/wk/wv: (D, inner) pre-transposed; softmax scale folded into wq
    #   wout_ref: (H, dh, D) per-head slices of W_out^T
    #   q_scr   : (H, TQ, dh) VMEM  k_scr/v_scr: (H, N, dh) VMEM (persist across qi)
    gamma = g_ref[...].astype(jnp.float32)   # (1, D)
    beta = b_ref[...].astype(jnp.float32)    # (1, D)
    cdt = wq_ref.dtype                       # MXU compute dtype (bf16 by default)

    # ---- K/V cache: LayerNorm + K/V projections once per batch row ----------
    @pl.when(pl.program_id(1) == 0)
    def _fill_kv():
        xn_kv = _layernorm_f32(xkv_ref[0], gamma, beta, eps).astype(cdt)      # (N, D)
        k_all = jnp.dot(xn_kv, wk_ref[...],
                        preferred_element_type=jnp.float32).astype(cdt)       # (N, inner)
        v_all = jnp.dot(xn_kv, wv_ref[...],
                        preferred_element_type=jnp.float32).astype(cdt)       # (N, inner)
        for h in range(heads):  # static slice copies -> head-major scratch (once per b)
            lo = h * dim_head
            k_scr[h] = k_all[:, lo:lo + dim_head]
            v_scr[h] = v_all[:, lo:lo + dim_head]

    # ---- Q projection for this query tile (scale pre-folded into W_q) -------
    xn_q = _layernorm_f32(xq_ref[0], gamma, beta, eps).astype(cdt)            # (TQ, D)
    q_all = jnp.dot(xn_q, wq_ref[...],
                    preferred_element_type=jnp.float32).astype(cdt)           # (TQ, inner)
    for h in range(heads):
        lo = h * dim_head
        q_scr[h] = q_all[:, lo:lo + dim_head]

    tq = xq_ref.shape[1]
    d_out = o_ref.shape[2]
    nt_dims = (((1,), (1,)), ((), ()))  # A @ B^T: contract last dims, no transpose op

    def head_body(h, acc):
        q_h = q_scr[h]                                                        # (TQ, dh)
        k_h = k_scr[h]                                                        # (N,  dh)
        v_h = v_scr[h]                                                        # (N,  dh)
        s = lax.dot_general(q_h, k_h, nt_dims,
                            preferred_element_type=jnp.float32)               # (TQ, N)
        m = jnp.max(s, axis=-1, keepdims=True)
        if bf16_exp:
            # bf16 EUP exp on v6e/v7x; row-sum accumulated in f32.
            p_mm = jnp.exp((s - m).astype(cdt))
            l = jnp.sum(p_mm.astype(jnp.float32), axis=-1, keepdims=True)
        else:
            p = jnp.exp(s - m)
            l = jnp.sum(p, axis=-1, keepdims=True)
            p_mm = p.astype(cdt)
        o_h = jnp.dot(p_mm, v_h, preferred_element_type=jnp.float32)          # (TQ, dh)
        # Deferred softmax normalization on the small head output (EUP reciprocal).
        o_h = o_h * pl.reciprocal(l, approx=True)
        # Accumulate straight into the output projection -> no lane concat.
        return acc + jnp.dot(o_h.astype(cdt), wout_ref[h],
                             preferred_element_type=jnp.float32)              # (TQ, D)

    acc = lax.fori_loop(0, heads, head_body, jnp.zeros((tq, d_out), jnp.float32))

    y = acc + bout_ref[...].astype(jnp.float32)
    o_ref[0] = y.astype(o_ref.dtype)


def _device_kind():
    try:
        return jax.devices()[0].device_kind.lower()
    except Exception:
        return ""


def _vmem_limit_bytes():
    # Generation-aware scoped-VMEM limit: ~75% of physical (96 MiB v5e/v6e, 48 MiB v7x).
    try:
        cap = pltpu.get_tpu_info().vmem_capacity_bytes
        return int(cap * 3 // 4)
    except Exception:
        return 32 * 1024 * 1024  # conservative default, valid on every generation


def _pick_tq(n_tokens):
    if n_tokens <= 128:
        return n_tokens
    kind = _device_kind()
    if any(g in kind for g in ("v2", "v3", "v4", "v5")):
        return 128
    return 256 if n_tokens >= 256 else 128  # v6e/v7x: fill the 256-wide MXU M dim


def attention_forward(x, gamma, beta, w_qkv, w_out, b_out, *, heads, eps=1e-5,
                      compute_dtype=jnp.bfloat16):
    """x: (B, N, D); w_qkv: (3*inner, D); w_out: (D, inner). Returns (B, N, D)."""
    B, N, D = x.shape
    inner_dim = w_qkv.shape[0] // 3
    dim_head = inner_dim // heads
    scale = float(dim_head) ** -0.5

    # ---- Wrapper-side weight prep (free relative to kernel time) ------------
    w_q_t = (w_qkv[:inner_dim] * scale).T.astype(compute_dtype)      # (D, inner), scale folded
    w_k_t = w_qkv[inner_dim:2 * inner_dim].T.astype(compute_dtype)   # (D, inner)
    w_v_t = w_qkv[2 * inner_dim:].T.astype(compute_dtype)            # (D, inner)
    w_out_heads = w_out.T.reshape(heads, dim_head, D).astype(compute_dtype)  # (H, dh, D)

    gamma2 = gamma.reshape(1, D)
    beta2 = beta.reshape(1, D)
    bout2 = b_out.reshape(1, D)

    tq = _pick_tq(N)
    n_q_tiles = pl.cdiv(N, tq)

    bf16_exp = (compute_dtype == jnp.bfloat16) and any(
        g in _device_kind() for g in ("v6", "v7"))

    kernel = functools.partial(_attention_kernel, heads=heads, dim_head=dim_head,
                               eps=eps, bf16_exp=bf16_exp)

    def build(weight_mode):
        wkw = {} if weight_mode is None else {"pipeline_mode": weight_mode}
        grid_spec = pltpu.PrefetchScalarGridSpec(
            num_scalar_prefetch=0,
            grid=(B, n_q_tiles),
            in_specs=[
                pl.BlockSpec((1, tq, D), lambda b, qi: (b, qi, 0)),            # x (query rows)
                pl.BlockSpec((1, N, D), lambda b, qi: (b, 0, 0)),              # x (key/value rows)
                pl.BlockSpec((1, D), lambda b, qi: (0, 0), **wkw),             # gamma
                pl.BlockSpec((1, D), lambda b, qi: (0, 0), **wkw),             # beta
                pl.BlockSpec((D, inner_dim), lambda b, qi: (0, 0), **wkw),     # W_q^T (scaled)
                pl.BlockSpec((D, inner_dim), lambda b, qi: (0, 0), **wkw),     # W_k^T
                pl.BlockSpec((D, inner_dim), lambda b, qi: (0, 0), **wkw),     # W_v^T
                pl.BlockSpec((heads, dim_head, D), lambda b, qi: (0, 0, 0), **wkw),  # W_out^T per head
                pl.BlockSpec((1, D), lambda b, qi: (0, 0), **wkw),             # b_out
            ],
            out_specs=pl.BlockSpec((1, tq, D), lambda b, qi: (b, qi, 0)),
            scratch_shapes=[
                pltpu.VMEM((heads, tq, dim_head), compute_dtype),   # Q staging (head-major)
                pltpu.VMEM((heads, N, dim_head), compute_dtype),    # K cache (per batch row)
                pltpu.VMEM((heads, N, dim_head), compute_dtype),    # V cache (per batch row)
            ],
        )
        return pl.pallas_call(
            kernel,
            out_shape=jax.ShapeDtypeStruct((B, N, D), x.dtype),
            grid_spec=grid_spec,
            compiler_params=pltpu.CompilerParams(
                # qi must be sequential ("arbitrary"): the K/V scratch filled at
                # qi == 0 is reused by later query tiles of the same batch row.
                # B stays "parallel" so the v7x megacore splits batch rows.
                dimension_semantics=("parallel", "arbitrary"),
                vmem_limit_bytes=_vmem_limit_bytes(),
            ),
        )

    args = (x, x, gamma2, beta2, w_q_t, w_k_t, w_v_t, w_out_heads, bout2)
    try:
        # Single-buffer the grid-invariant weight/bias slabs (halves their VMEM).
        return build(pl.Buffered(1))(*args)
    except Exception:
        # TODO(synk): this jax build rejects Buffered(1); fall back to default buffering.
        return build(None)(*args)


def attention_reference(x, gamma, beta, w_qkv, w_out, b_out, *, heads):
    """Pure-JAX reference mirroring the PyTorch forward."""
    B, N, D = x.shape
    inner_dim = w_qkv.shape[0] // 3
    dim_head = inner_dim // heads
    scale = float(dim_head) ** -0.5

    mean = jnp.mean(x, axis=-1, keepdims=True)
    var = jnp.mean((x - mean) ** 2, axis=-1, keepdims=True)
    xn = (x - mean) / jnp.sqrt(var + 1e-5) * gamma + beta

    qkv = xn @ w_qkv.T                                    # (B, N, 3*inner)
    q, k, v = jnp.split(qkv, 3, axis=-1)

    def to_heads(t):  # 'b n (h d) -> b h n d'
        return t.reshape(B, N, heads, dim_head).transpose(0, 2, 1, 3)

    q, k, v = map(to_heads, (q, k, v))
    dots = jnp.einsum('bhnd,bhmd->bhnm', q, k) * scale
    attn = jax.nn.softmax(dots, axis=-1)
    out = jnp.einsum('bhnm,bhmd->bhnd', attn, v)
    out = out.transpose(0, 2, 1, 3).reshape(B, N, inner_dim)  # 'b h n d -> b n (h d)'
    return out @ w_out.T + b_out


if __name__ == "__main__":
    # Small shapes consistent with the module: dim=32, heads=4, dim_head=16.
    B, N, D = 2, 8, 32
    heads, dim_head = 4, 16
    inner_dim = heads * dim_head  # 64; project_out=True -> Linear(inner_dim, dim) + bias

    key = jax.random.PRNGKey(0)
    kx, kqkv, kwo, kbo, kg, kb = jax.random.split(key, 6)

    x = jax.random.normal(kx, (B, N, D), dtype=jnp.float32)
    gamma = 1.0 + 0.1 * jax.random.normal(kg, (D,), dtype=jnp.float32)
    beta = 0.1 * jax.random.normal(kb, (D,), dtype=jnp.float32)
    w_qkv = jax.random.normal(kqkv, (3 * inner_dim, D), dtype=jnp.float32) * (D ** -0.5)
    w_out = jax.random.normal(kwo, (D, inner_dim), dtype=jnp.float32) * (inner_dim ** -0.5)
    b_out = jax.random.normal(kbo, (D,), dtype=jnp.float32) * 0.01

    y_ref = attention_reference(x, gamma, beta, w_qkv, w_out, b_out, heads=heads)

    # Full-precision compute path (tolerance slack covers the approx EUP reciprocal).
    y32 = attention_forward(x, gamma, beta, w_qkv, w_out, b_out, heads=heads,
                            compute_dtype=jnp.float32)
    y32 = jax.block_until_ready(y32)
    assert y32.shape == (B, N, D)
    assert jnp.allclose(y32, y_ref, atol=5e-3, rtol=5e-3), "f32 kernel mismatch vs reference"

    # bf16 MXU path (production default); looser tolerance for bf16 operands.
    ybf = attention_forward(x, gamma, beta, w_qkv, w_out, b_out, heads=heads,
                            compute_dtype=jnp.bfloat16)
    ybf = jax.block_until_ready(ybf)
    assert ybf.shape == (B, N, D)
    assert jnp.allclose(ybf, y_ref, atol=5e-2, rtol=5e-2), "bf16 kernel mismatch vs reference"

    print("KERNEL_OK")
</pallas_src>

<mosaic_0001>
module attributes {stable_mosaic.version = 11 : i64} {
  func.func @_attention_kernel(%arg0: i32, %arg1: i32, %arg2: memref<1x8x32xf32, #tpu.memory_space<vmem>>, %arg3: memref<1x8x32xf32, #tpu.memory_space<vmem>>, %arg4: memref<1x32xf32, #tpu.memory_space<vmem>>, %arg5: memref<1x32xf32, #tpu.memory_space<vmem>>, %arg6: memref<32x64xf32, #tpu.memory_space<vmem>>, %arg7: memref<32x64xf32, #tpu.memory_space<vmem>>, %arg8: memref<32x64xf32, #tpu.memory_space<vmem>>, %arg9: memref<4x16x32xf32, #tpu.memory_space<vmem>>, %arg10: memref<1x32xf32, #tpu.memory_space<vmem>>, %arg11: memref<1x8x32xf32, #tpu.memory_space<vmem>>, %arg12: memref<4x8x16xf32, #tpu.memory_space<vmem>>, %arg13: memref<4x8x16xf32, #tpu.memory_space<vmem>>, %arg14: memref<4x8x16xf32, #tpu.memory_space<vmem>>) attributes {dimension_semantics = [#tpu.dimension_semantics<parallel>, #tpu.dimension_semantics<arbitrary>], iteration_bounds = array<i64: 2, 1>, scalar_prefetch = 0 : i64, scratch_operands = 3 : i64, tpu.core_type = #tpu.core_type<tc>, window_params = [{transform_indices = @transform_0, window_bounds = array<i64: 1, 8, 32>}, {transform_indices = @transform_1, window_bounds = array<i64: 1, 8, 32>}, {pipeline_mode = #tpu.pipeline_mode<synchronous>, transform_indices = @transform_2, window_bounds = array<i64: 1, 32>}, {pipeline_mode = #tpu.pipeline_mode<synchronous>, transform_indices = @transform_3, window_bounds = array<i64: 1, 32>}, {pipeline_mode = #tpu.pipeline_mode<synchronous>, transform_indices = @transform_4, window_bounds = array<i64: 32, 64>}, {pipeline_mode = #tpu.pipeline_mode<synchronous>, transform_indices = @transform_5, window_bounds = array<i64: 32, 64>}, {pipeline_mode = #tpu.pipeline_mode<synchronous>, transform_indices = @transform_6, window_bounds = array<i64: 32, 64>}, {pipeline_mode = #tpu.pipeline_mode<synchronous>, transform_indices = @transform_7, window_bounds = array<i64: 4, 16, 32>}, {pipeline_mode = #tpu.pipeline_mode<synchronous>, transform_indices = @transform_8, window_bounds = array<i64: 1, 32>}, {transform_indices = @transform_9, window_bounds = array<i64: 1, 8, 32>}]} {
    %c0 = arith.constant 0 : index
    %c0_0 = arith.constant 0 : index
    %0 = vector.load %arg4[%c0, %c0_0] : memref<1x32xf32, #tpu.memory_space<vmem>>, vector<1x32xf32>
    %c0_1 = arith.constant 0 : index
    %c0_2 = arith.constant 0 : index
    %1 = vector.load %arg5[%c0_1, %c0_2] : memref<1x32xf32, #tpu.memory_space<vmem>>, vector<1x32xf32>
    %c0_i32 = arith.constant 0 : i32
    %2 = arith.cmpi eq, %arg1, %c0_i32 : i32
    %3 = arith.extui %2 : i1 to i32
    %c0_i32_3 = arith.constant 0 : i32
    %4 = arith.cmpi ne, %3, %c0_i32_3 : i32
    scf.if %4 {
      %c0_31 = arith.constant 0 : index
      %c0_32 = arith.constant 0 : index
      %c0_33 = arith.constant 0 : index
      %56 = vector.load %arg3[%c0_31, %c0_32, %c0_33] : memref<1x8x32xf32, #tpu.memory_space<vmem>>, vector<1x8x32xf32>
      %57 = vector.shape_cast %56 : vector<1x8x32xf32> to vector<8x32xf32>
      %cst_34 = arith.constant dense<0.000000e+00> : vector<8xf32>
      %58 = vector.multi_reduction <add>, %57, %cst_34 [1] : vector<8x32xf32> to vector<8xf32>
      %59 = vector.shape_cast %58 : vector<8xf32> to vector<8x1xf32>
      %cst_35 = arith.constant 3.200000e+01 : f32
      %60 = vector.broadcast %cst_35 : f32 to vector<8x1xf32>
      %61 = arith.divf %59, %60 : vector<8x1xf32>
      %62 = arith.mulf %57, %57 : vector<8x32xf32>
      %cst_36 = arith.constant dense<0.000000e+00> : vector<8xf32>
      %63 = vector.multi_reduction <add>, %62, %cst_36 [1] : vector<8x32xf32> to vector<8xf32>
      %64 = vector.shape_cast %63 : vector<8xf32> to vector<8x1xf32>
      %cst_37 = arith.constant 3.200000e+01 : f32
      %65 = vector.broadcast %cst_37 : f32 to vector<8x1xf32>
      %66 = arith.divf %64, %65 : vector<8x1xf32>
      %67 = arith.mulf %61, %61 : vector<8x1xf32>
      %68 = arith.subf %66, %67 : vector<8x1xf32>
      %cst_38 = arith.constant 9.99999974E-6 : f32
      %69 = vector.broadcast %cst_38 : f32 to vector<8x1xf32>
      %70 = arith.addf %68, %69 : vector<8x1xf32>
      %71 = math.rsqrt %70 : vector<8x1xf32>
      %72 = vector.broadcast %61 : vector<8x1xf32> to vector<8x32xf32>
      %73 = arith.subf %57, %72 : vector<8x32xf32>
      %74 = vector.broadcast %71 : vector<8x1xf32> to vector<8x32xf32>
      %75 = arith.mulf %73, %74 : vector<8x32xf32>
      %76 = vector.broadcast %0 : vector<1x32xf32> to vector<8x32xf32>
      %77 = arith.mulf %75, %76 : vector<8x32xf32>
      %78 = vector.broadcast %1 : vector<1x32xf32> to vector<8x32xf32>
      %79 = arith.addf %77, %78 : vector<8x32xf32>
      %c0_39 = arith.constant 0 : index
      %c0_40 = arith.constant 0 : index
      %80 = vector.load %arg7[%c0_39, %c0_40] : memref<32x64xf32, #tpu.memory_space<vmem>>, vector<32x64xf32>
      %cst_41 = arith.constant dense<0.000000e+00> : vector<8x64xf32>
      %81 = tpu.matmul %79, %80, %cst_41 {dimension_numbers = #tpu.dot_dimension_numbers<[1], [0], [0], [1], [0, 0, 1, 1], [], []>} : vector<8x32xf32>, vector<32x64xf32>, vector<8x64xf32> -> vector<8x64xf32>
      %c0_42 = arith.constant 0 : index
      %c0_43 = arith.constant 0 : index
      %82 = vector.load %arg8[%c0_42, %c0_43] : memref<32x64xf32, #tpu.memory_space<vmem>>, vector<32x64xf32>
      %cst_44 = arith.constant dense<0.000000e+00> : vector<8x64xf32>
      %83 = tpu.matmul %79, %82, %cst_44 {dimension_numbers = #tpu.dot_dimension_numbers<[1], [0], [0], [1], [0, 0, 1, 1], [], []>} : vector<8x32xf32>, vector<32x64xf32>, vector<8x64xf32> -> vector<8x64xf32>
      %84 = vector.extract_strided_slice %81 {offsets = [0, 0], sizes = [8, 16], strides = [1, 1]} : vector<8x64xf32> to vector<8x16xf32>
      %c0_45 = arith.constant 0 : index
      %c0_46 = arith.constant 0 : index
      %c0_47 = arith.constant 0 : index
      %85 = vector.load %arg13[%c0_45, %c0_46, %c0_47] : memref<4x8x16xf32, #tpu.memory_space<vmem>>, vector<1x8x16xf32>
      %86 = vector.shape_cast %85 : vector<1x8x16xf32> to vector<8x16xf32>
      %87 = vector.shape_cast %84 : vector<8x16xf32> to vector<1x8x16xf32>
      tpu.vector_store %arg13[%c0_45, %c0_46, %c0_47], %87 {strides = array<i32>} : memref<4x8x16xf32, #tpu.memory_space<vmem>>, vector<1x8x16xf32>,
      %88 = vector.extract_strided_slice %83 {offsets = [0, 0], sizes = [8, 16], strides = [1, 1]} : vector<8x64xf32> to vector<8x16xf32>
      %c0_48 = arith.constant 0 : index
      %c0_49 = arith.constant 0 : index
      %c0_50 = arith.constant 0 : index
      %89 = vector.load %arg14[%c0_48, %c0_49, %c0_50] : memref<4x8x16xf32, #tpu.memory_space<vmem>>, vector<1x8x16xf32>
      %90 = vector.shape_cast %89 : vector<1x8x16xf32> to vector<8x16xf32>
      %91 = vector.shape_cast %88 : vector<8x16xf32> to vector<1x8x16xf32>
      tpu.vector_store %arg14[%c0_48, %c0_49, %c0_50], %91 {strides = array<i32>} : memref<4x8x16xf32, #tpu.memory_space<vmem>>, vector<1x8x16xf32>,
      %92 = vector.extract_strided_slice %81 {offsets = [0, 16], sizes = [8, 16], strides = [1, 1]} : vector<8x64xf32> to vector<8x16xf32>
      %c1_51 = arith.constant 1 : index
      %c0_52 = arith.constant 0 : index
      %c0_53 = arith.constant 0 : index
      %93 = vector.load %arg13[%c1_51, %c0_52, %c0_53] : memref<4x8x16xf32, #tpu.memory_space<vmem>>, vector<1x8x16xf32>
      %94 = vector.shape_cast %93 : vector<1x8x16xf32> to vector<8x16xf32>
      %95 = vector.shape_cast %92 : vector<8x16xf32> to vector<1x8x16xf32>
      tpu.vector_store %arg13[%c1_51, %c0_52, %c0_53], %95 {strides = array<i32>} : memref<4x8x16xf32, #tpu.memory_space<vmem>>, vector<1x8x16xf32>,
      %96 = vector.extract_strided_slice %83 {offsets = [0, 16], sizes = [8, 16], strides = [1, 1]} : vector<8x64xf32> to vector<8x16xf32>
      %c1_54 = arith.constant 1 : index
      %c0_55 = arith.constant 0 : index
      %c0_56 = arith.constant 0 : index
      %97 = vector.load %arg14[%c1_54, %c0_55, %c0_56] : memref<4x8x16xf32, #tpu.memory_space<vmem>>, vector<1x8x16xf32>
      %98 = vector.shape_cast %97 : vector<1x8x16xf32> to vector<8x16xf32>
      %99 = vector.shape_cast %96 : vector<8x16xf32> to vector<1x8x16xf32>
      tpu.vector_store %arg14[%c1_54, %c0_55, %c0_56], %99 {strides = array<i32>} : memref<4x8x16xf32, #tpu.memory_space<vmem>>, vector<1x8x16xf32>,
      %100 = vector.extract_strided_slice %81 {offsets = [0, 32], sizes = [8, 16], strides = [1, 1]} : vector<8x64xf32> to vector<8x16xf32>
      %c2_57 = arith.constant 2 : index
      %c0_58 = arith.constant 0 : index
      %c0_59 = arith.constant 0 : index
      %101 = vector.load %arg13[%c2_57, %c0_58, %c0_59] : memref<4x8x16xf32, #tpu.memory_space<vmem>>, vector<1x8x16xf32>
      %102 = vector.shape_cast %101 : vector<1x8x16xf32> to vector<8x16xf32>
      %103 = vector.shape_cast %100 : vector<8x16xf32> to vector<1x8x16xf32>
      tpu.vector_store %arg13[%c2_57, %c0_58, %c0_59], %103 {strides = array<i32>} : memref<4x8x16xf32, #tpu.memory_space<vmem>>, vector<1x8x16xf32>,
      %104 = vector.extract_strided_slice %83 {offsets = [0, 32], sizes = [8, 16], strides = [1, 1]} : vector<8x64xf32> to vector<8x16xf32>
      %c2_60 = arith.constant 2 : index
      %c0_61 = arith.constant 0 : index
      %c0_62 = arith.constant 0 : index
      %105 = vector.load %arg14[%c2_60, %c0_61, %c0_62] : memref<4x8x16xf32, #tpu.memory_space<vmem>>, vector<1x8x16xf32>
      %106 = vector.shape_cast %105 : vector<1x8x16xf32> to vector<8x16xf32>
      %107 = vector.shape_cast %104 : vector<8x16xf32> to vector<1x8x16xf32>
      tpu.vector_store %arg14[%c2_60, %c0_61, %c0_62], %107 {strides = array<i32>} : memref<4x8x16xf32, #tpu.memory_space<vmem>>, vector<1x8x16xf32>,
      %108 = vector.extract_strided_slice %81 {offsets = [0, 48], sizes = [8, 16], strides = [1, 1]} : vector<8x64xf32> to vector<8x16xf32>
      %c3_63 = arith.constant 3 : index
      %c0_64 = arith.constant 0 : index
      %c0_65 = arith.constant 0 : index
      %109 = vector.load %arg13[%c3_63, %c0_64, %c0_65] : memref<4x8x16xf32, #tpu.memory_space<vmem>>, vector<1x8x16xf32>
      %110 = vector.shape_cast %109 : vector<1x8x16xf32> to vector<8x16xf32>
      %111 = vector.shape_cast %108 : vector<8x16xf32> to vector<1x8x16xf32>
      tpu.vector_store %arg13[%c3_63, %c0_64, %c0_65], %111 {strides = array<i32>} : memref<4x8x16xf32, #tpu.memory_space<vmem>>, vector<1x8x16xf32>,
      %112 = vector.extract_strided_slice %83 {offsets = [0, 48], sizes = [8, 16], strides = [1, 1]} : vector<8x64xf32> to vector<8x16xf32>
      %c3_66 = arith.constant 3 : index
      %c0_67 = arith.constant 0 : index
      %c0_68 = arith.constant 0 : index
      %113 = vector.load %arg14[%c3_66, %c0_67, %c0_68] : memref<4x8x16xf32, #tpu.memory_space<vmem>>, vector<1x8x16xf32>
      %114 = vector.shape_cast %113 : vector<1x8x16xf32> to vector<8x16xf32>
      %115 = vector.shape_cast %112 : vector<8x16xf32> to vector<1x8x16xf32>
      tpu.vector_store %arg14[%c3_66, %c0_67, %c0_68], %115 {strides = array<i32>} : memref<4x8x16xf32, #tpu.memory_space<vmem>>, vector<1x8x16xf32>,
    } else {
    }
    %c0_4 = arith.constant 0 : index
    %c0_5 = arith.constant 0 : index
    %c0_6 = arith.constant 0 : index
    %5 = vector.load %arg2[%c0_4, %c0_5, %c0_6] : memref<1x8x32xf32, #tpu.memory_space<vmem>>, vector<1x8x32xf32>
    %6 = vector.shape_cast %5 : vector<1x8x32xf32> to vector<8x32xf32>
    %cst = arith.constant dense<0.000000e+00> : vector<8xf32>
    %7 = vector.multi_reduction <add>, %6, %cst [1] : vector<8x32xf32> to vector<8xf32>
    %8 = vector.shape_cast %7 : vector<8xf32> to vector<8x1xf32>
    %cst_7 = arith.constant 3.200000e+01 : f32
    %9 = vector.broadcast %cst_7 : f32 to vector<8x1xf32>
    %10 = arith.divf %8, %9 : vector<8x1xf32>
    %11 = arith.mulf %6, %6 : vector<8x32xf32>
    %cst_8 = arith.constant dense<0.000000e+00> : vector<8xf32>
    %12 = vector.multi_reduction <add>, %11, %cst_8 [1] : vector<8x32xf32> to vector<8xf32>
    %13 = vector.shape_cast %12 : vector<8xf32> to vector<8x1xf32>
    %cst_9 = arith.constant 3.200000e+01 : f32
    %14 = vector.broadcast %cst_9 : f32 to vector<8x1xf32>
    %15 = arith.divf %13, %14 : vector<8x1xf32>
    %16 = arith.mulf %10, %10 : vector<8x1xf32>
    %17 = arith.subf %15, %16 : vector<8x1xf32>
    %cst_10 = arith.constant 9.99999974E-6 : f32
    %18 = vector.broadcast %cst_10 : f32 to vector<8x1xf32>
    %19 = arith.addf %17, %18 : vector<8x1xf32>
    %20 = math.rsqrt %19 : vector<8x1xf32>
    %21 = vector.broadcast %10 : vector<8x1xf32> to vector<8x32xf32>
    %22 = arith.subf %6, %21 : vector<8x32xf32>
    %23 = vector.broadcast %20 : vector<8x1xf32> to vector<8x32xf32>
    %24 = arith.mulf %22, %23 : vector<8x32xf32>
    %25 = vector.broadcast %0 : vector<1x32xf32> to vector<8x32xf32>
    %26 = arith.mulf %24, %25 : vector<8x32xf32>
    %27 = vector.broadcast %1 : vector<1x32xf32> to vector<8x32xf32>
    %28 = arith.addf %26, %27 : vector<8x32xf32>
    %c0_11 = arith.constant 0 : index
    %c0_12 = arith.constant 0 : index
    %29 = vector.load %arg6[%c0_11, %c0_12] : memref<32x64xf32, #tpu.memory_space<vmem>>, vector<32x64xf32>
    %cst_13 = arith.constant dense<0.000000e+00> : vector<8x64xf32>
    %30 = tpu.matmul %28, %29, %cst_13 {dimension_numbers = #tpu.dot_dimension_numbers<[1], [0], [0], [1], [0, 0, 1, 1], [], []>} : vector<8x32xf32>, vector<32x64xf32>, vector<8x64xf32> -> vector<8x64xf32>
    %31 = vector.extract_strided_slice %30 {offsets = [0, 0], sizes = [8, 16], strides = [1, 1]} : vector<8x64xf32> to vector<8x16xf32>
    %c0_14 = arith.constant 0 : index
    %c0_15 = arith.constant 0 : index
    %c0_16 = arith.constant 0 : index
    %32 = vector.load %arg12[%c0_14, %c0_15, %c0_16] : memref<4x8x16xf32, #tpu.memory_space<vmem>>, vector<1x8x16xf32>
    %33 = vector.shape_cast %32 : vector<1x8x16xf32> to vector<8x16xf32>
    %34 = vector.shape_cast %31 : vector<8x16xf32> to vector<1x8x16xf32>
    tpu.vector_store %arg12[%c0_14, %c0_15, %c0_16], %34 {strides = array<i32>} : memref<4x8x16xf32, #tpu.memory_space<vmem>>, vector<1x8x16xf32>,
    %35 = vector.extract_strided_slice %30 {offsets = [0, 16], sizes = [8, 16], strides = [1, 1]} : vector<8x64xf32> to vector<8x16xf32>
    %c1 = arith.constant 1 : index
    %c0_17 = arith.constant 0 : index
    %c0_18 = arith.constant 0 : index
    %36 = vector.load %arg12[%c1, %c0_17, %c0_18] : memref<4x8x16xf32, #tpu.memory_space<vmem>>, vector<1x8x16xf32>
    %37 = vector.shape_cast %36 : vector<1x8x16xf32> to vector<8x16xf32>
    %38 = vector.shape_cast %35 : vector<8x16xf32> to vector<1x8x16xf32>
    tpu.vector_store %arg12[%c1, %c0_17, %c0_18], %38 {strides = array<i32>} : memref<4x8x16xf32, #tpu.memory_space<vmem>>, vector<1x8x16xf32>,
    %39 = vector.extract_strided_slice %30 {offsets = [0, 32], sizes = [8, 16], strides = [1, 1]} : vector<8x64xf32> to vector<8x16xf32>
    %c2 = arith.constant 2 : index
    %c0_19 = arith.constant 0 : index
    %c0_20 = arith.constant 0 : index
    %40 = vector.load %arg12[%c2, %c0_19, %c0_20] : memref<4x8x16xf32, #tpu.memory_space<vmem>>, vector<1x8x16xf32>
    %41 = vector.shape_cast %40 : vector<1x8x16xf32> to vector<8x16xf32>
    %42 = vector.shape_cast %39 : vector<8x16xf32> to vector<1x8x16xf32>
    tpu.vector_store %arg12[%c2, %c0_19, %c0_20], %42 {strides = array<i32>} : memref<4x8x16xf32, #tpu.memory_space<vmem>>, vector<1x8x16xf32>,
    %43 = vector.extract_strided_slice %30 {offsets = [0, 48], sizes = [8, 16], strides = [1, 1]} : vector<8x64xf32> to vector<8x16xf32>
    %c3 = arith.constant 3 : index
    %c0_21 = arith.constant 0 : index
    %c0_22 = arith.constant 0 : index
    %44 = vector.load %arg12[%c3, %c0_21, %c0_22] : memref<4x8x16xf32, #tpu.memory_space<vmem>>, vector<1x8x16xf32>
    %45 = vector.shape_cast %44 : vector<1x8x16xf32> to vector<8x16xf32>
    %46 = vector.shape_cast %43 : vector<8x16xf32> to vector<1x8x16xf32>
    tpu.vector_store %arg12[%c3, %c0_21, %c0_22], %46 {strides = array<i32>} : memref<4x8x16xf32, #tpu.memory_space<vmem>>, vector<1x8x16xf32>,
    %cst_23 = arith.constant 0.000000e+00 : f32
    %47 = vector.broadcast %cst_23 : f32 to vector<8x32xf32>
    %c0_i32_24 = arith.constant 0 : i32
    %c4_i32 = arith.constant 4 : i32
    %48 = arith.addi %c0_i32_24, %c4_i32 : i32
    %c1_i32 = arith.constant 1 : i32
    %49 = scf.for %arg15 = %c0_i32_24 to %48 step %c1_i32 iter_args(%arg16 = %47) -> (vector<8x32xf32>)  : i32 {
      %56 = arith.index_cast %arg15 : i32 to index
      %c0_31 = arith.constant 0 : index
      %c0_32 = arith.constant 0 : index
      %57 = vector.load %arg12[%56, %c0_31, %c0_32] : memref<4x8x16xf32, #tpu.memory_space<vmem>>, vector<1x8x16xf32>
      %58 = vector.shape_cast %57 : vector<1x8x16xf32> to vector<8x16xf32>
      %59 = arith.index_cast %arg15 : i32 to index
      %c0_33 = arith.constant 0 : index
      %c0_34 = arith.constant 0 : index
      %60 = vector.load %arg13[%59, %c0_33, %c0_34] : memref<4x8x16xf32, #tpu.memory_space<vmem>>, vector<1x8x16xf32>
      %61 = vector.shape_cast %60 : vector<1x8x16xf32> to vector<8x16xf32>
      %62 = arith.index_cast %arg15 : i32 to index
      %c0_35 = arith.constant 0 : index
      %c0_36 = arith.constant 0 : index
      %63 = vector.load %arg14[%62, %c0_35, %c0_36] : memref<4x8x16xf32, #tpu.memory_space<vmem>>, vector<1x8x16xf32>
      %64 = vector.shape_cast %63 : vector<1x8x16xf32> to vector<8x16xf32>
      %cst_37 = arith.constant dense<0.000000e+00> : vector<8x8xf32>
      %65 = tpu.matmul %58, %61, %cst_37 {dimension_numbers = #tpu.dot_dimension_numbers<[1], [1], [0], [0], [0, 0, 1, 0], [], []>} : vector<8x16xf32>, vector<8x16xf32>, vector<8x8xf32> -> vector<8x8xf32>
      %cst_38 = arith.constant dense<0xFF800000> : vector<8xf32>
      %66 = vector.multi_reduction <maximumf>, %65, %cst_38 [1] : vector<8x8xf32> to vector<8xf32>
      %67 = vector.shape_cast %66 : vector<8xf32> to vector<8x1xf32>
      %68 = vector.broadcast %67 : vector<8x1xf32> to vector<8x8xf32>
      %69 = arith.subf %65, %68 : vector<8x8xf32>
      %70 = math.exp %69 : vector<8x8xf32>
      %cst_39 = arith.constant dense<0.000000e+00> : vector<8xf32>
      %71 = vector.multi_reduction <add>, %70, %cst_39 [1] : vector<8x8xf32> to vector<8xf32>
      %72 = vector.shape_cast %71 : vector<8xf32> to vector<8x1xf32>
      %cst_40 = arith.constant dense<0.000000e+00> : vector<8x16xf32>
      %73 = tpu.matmul %70, %64, %cst_40 {dimension_numbers = #tpu.dot_dimension_numbers<[1], [0], [0], [1], [0, 0, 1, 1], [], []>} : vector<8x8xf32>, vector<8x16xf32>, vector<8x16xf32> -> vector<8x16xf32>
      %74 = tpu.reciprocal %72 {approx = true} : vector<8x1xf32> -> vector<8x1xf32>
      %75 = vector.broadcast %74 : vector<8x1xf32> to vector<8x16xf32>
      %76 = arith.mulf %73, %75 : vector<8x16xf32>
      %77 = arith.index_cast %arg15 : i32 to index
      %c0_41 = arith.constant 0 : index
      %c0_42 = arith.constant 0 : index
      %78 = vector.load %arg9[%77, %c0_41, %c0_42] : memref<4x16x32xf32, #tpu.memory_space<vmem>>, vector<1x16x32xf32>
      %79 = vector.shape_cast %78 : vector<1x16x32xf32> to vector<16x32xf32>
      %cst_43 = arith.constant dense<0.000000e+00> : vector<8x32xf32>
      %80 = tpu.matmul %76, %79, %cst_43 {dimension_numbers = #tpu.dot_dimension_numbers<[1], [0], [0], [1], [0, 0, 1, 1], [], []>} : vector<8x16xf32>, vector<16x32xf32>, vector<8x32xf32> -> vector<8x32xf32>
      %81 = arith.addf %arg16, %80 : vector<8x32xf32>
      scf.yield %81 : vector<8x32xf32>
    }
    %c4_i32_25 = arith.constant 4 : i32
    %c0_26 = arith.constant 0 : index
    %c0_27 = arith.constant 0 : index
    %50 = vector.load %arg10[%c0_26, %c0_27] : memref<1x32xf32, #tpu.memory_space<vmem>>, vector<1x32xf32>
    %51 = vector.broadcast %50 : vector<1x32xf32> to vector<8x32xf32>
    %52 = arith.addf %49, %51 : vector<8x32xf32>
    %c0_28 = arith.constant 0 : index
    %c0_29 = arith.constant 0 : index
    %c0_30 = arith.constant 0 : index
    %53 = vector.load %arg11[%c0_28, %c0_29, %c0_30] : memref<1x8x32xf32, #tpu.memory_space<vmem>>, vector<1x8x32xf32>
    %54 = vector.shape_cast %53 : vector<1x8x32xf32> to vector<8x32xf32>
    %55 = vector.shape_cast %52 : vector<8x32xf32> to vector<1x8x32xf32>
    tpu.vector_store %arg11[%c0_28, %c0_29, %c0_30], %55 {strides = array<i32>} : memref<1x8x32xf32, #tpu.memory_space<vmem>>, vector<1x8x32xf32>,
    return
  }
  func.func @transform_0(%arg0: i32, %arg1: i32) -> (i32, i32, i32) {
    %c0_i32 = arith.constant 0 : i32
    %c0_i32_0 = arith.constant 0 : i32
    return %arg0, %arg1, %c0_i32 : i32, i32, i32
  }
  func.func @transform_1(%arg0: i32, %arg1: i32) -> (i32, i32, i32) {
    %c0_i32 = arith.constant 0 : i32
    %c0_i32_0 = arith.constant 0 : i32
    %c0_i32_1 = arith.constant 0 : i32
    return %arg0, %c0_i32, %c0_i32_0 : i32, i32, i32
  }
  func.func @transform_2(%arg0: i32, %arg1: i32) -> (i32, i32) {
    %c0_i32 = arith.constant 0 : i32
    %c0_i32_0 = arith.constant 0 : i32
    %c0_i32_1 = arith.constant 0 : i32
    return %c0_i32, %c0_i32_0 : i32, i32
  }
  func.func @transform_3(%arg0: i32, %arg1: i32) -> (i32, i32) {
    %c0_i32 = arith.constant 0 : i32
    %c0_i32_0 = arith.constant 0 : i32
    %c0_i32_1 = arith.constant 0 : i32
    return %c0_i32, %c0_i32_0 : i32, i32
  }
  func.func @transform_4(%arg0: i32, %arg1: i32) -> (i32, i32) {
    %c0_i32 = arith.constant 0 : i32
    %c0_i32_0 = arith.constant 0 : i32
    %c0_i32_1 = arith.constant 0 : i32
    return %c0_i32, %c0_i32_0 : i32, i32
  }
  func.func @transform_5(%arg0: i32, %arg1: i32) -> (i32, i32) {
    %c0_i32 = arith.constant 0 : i32
    %c0_i32_0 = arith.constant 0 : i32
    %c0_i32_1 = arith.constant 0 : i32
    return %c0_i32, %c0_i32_0 : i32, i32
  }
  func.func @transform_6(%arg0: i32, %arg1: i32) -> (i32, i32) {
    %c0_i32 = arith.constant 0 : i32
    %c0_i32_0 = arith.constant 0 : i32
    %c0_i32_1 = arith.constant 0 : i32
    return %c0_i32, %c0_i32_0 : i32, i32
  }
  func.func @transform_7(%arg0: i32, %arg1: i32) -> (i32, i32, i32) {
    %c0_i32 = arith.constant 0 : i32
    %c0_i32_0 = arith.constant 0 : i32
    %c0_i32_1 = arith.constant 0 : i32
    %c0_i32_2 = arith.constant 0 : i32
    return %c0_i32, %c0_i32_0, %c0_i32_1 : i32, i32, i32
  }
  func.func @transform_8(%arg0: i32, %arg1: i32) -> (i32, i32) {
    %c0_i32 = arith.constant 0 : i32
    %c0_i32_0 = arith.constant 0 : i32
    %c0_i32_1 = arith.constant 0 : i32
    return %c0_i32, %c0_i32_0 : i32, i32
  }
  func.func @transform_9(%arg0: i32, %arg1: i32) -> (i32, i32, i32) {
    %c0_i32 = arith.constant 0 : i32
    %c0_i32_0 = arith.constant 0 : i32
    return %arg0, %arg1, %c0_i32 : i32, i32, i32
  }
}

module attributes {stable_mosaic.version = 11 : i64} {
  func.func @_attention_kernel(%arg0: i32, %arg1: i32, %arg2: memref<1x8x32xf32, #tpu.memory_space<vmem>>, %arg3: memref<1x8x32xf32, #tpu.memory_space<vmem>>, %arg4: memref<1x32xf32, #tpu.memory_space<vmem>>, %arg5: memref<1x32xf32, #tpu.memory_space<vmem>>, %arg6: memref<32x64xf32, #tpu.memory_space<vmem>>, %arg7: memref<32x64xf32, #tpu.memory_space<vmem>>, %arg8: memref<32x64xf32, #tpu.memory_space<vmem>>, %arg9: memref<4x16x32xf32, #tpu.memory_space<vmem>>, %arg10: memref<1x32xf32, #tpu.memory_space<vmem>>, %arg11: memref<1x8x32xf32, #tpu.memory_space<vmem>>, %arg12: memref<4x8x16xf32, #tpu.memory_space<vmem>>, %arg13: memref<4x8x16xf32, #tpu.memory_space<vmem>>, %arg14: memref<4x8x16xf32, #tpu.memory_space<vmem>>) attributes {dimension_semantics = [#tpu.dimension_semantics<parallel>, #tpu.dimension_semantics<arbitrary>], iteration_bounds = array<i64: 2, 1>, scalar_prefetch = 0 : i64, scratch_operands = 3 : i64, tpu.core_type = #tpu.core_type<tc>, window_params = [{transform_indices = @transform_0, window_bounds = array<i64: 1, 8, 32>}, {transform_indices = @transform_1, window_bounds = array<i64: 1, 8, 32>}, {pipeline_mode = #tpu.pipeline_mode<synchronous>, transform_indices = @transform_2, window_bounds = array<i64: 1, 32>}, {pipeline_mode = #tpu.pipeline_mode<synchronous>, transform_indices = @transform_3, window_bounds = array<i64: 1, 32>}, {pipeline_mode = #tpu.pipeline_mode<synchronous>, transform_indices = @transform_4, window_bounds = array<i64: 32, 64>}, {pipeline_mode = #tpu.pipeline_mode<synchronous>, transform_indices = @transform_5, window_bounds = array<i64: 32, 64>}, {pipeline_mode = #tpu.pipeline_mode<synchronous>, transform_indices = @transform_6, window_bounds = array<i64: 32, 64>}, {pipeline_mode = #tpu.pipeline_mode<synchronous>, transform_indices = @transform_7, window_bounds = array<i64: 4, 16, 32>}, {pipeline_mode = #tpu.pipeline_mode<synchronous>, transform_indices = @transform_8, window_bounds = array<i64: 1, 32>}, {transform_indices = @transform_9, window_bounds = array<i64: 1, 8, 32>}]} {
    %c0 = arith.constant 0 : index
    %c0_0 = arith.constant 0 : index
    %0 = vector.load %arg4[%c0, %c0_0] : memref<1x32xf32, #tpu.memory_space<vmem>>, vector<1x32xf32>
    %c0_1 = arith.constant 0 : index
    %c0_2 = arith.constant 0 : index
    %1 = vector.load %arg5[%c0_1, %c0_2] : memref<1x32xf32, #tpu.memory_space<vmem>>, vector<1x32xf32>
    %c0_i32 = arith.constant 0 : i32
    %2 = arith.cmpi eq, %arg1, %c0_i32 : i32
    %3 = arith.extui %2 : i1 to i32
    %c0_i32_3 = arith.constant 0 : i32
    %4 = arith.cmpi ne, %3, %c0_i32_3 : i32
    scf.if %4 {
      %c0_31 = arith.constant 0 : index
      %c0_32 = arith.constant 0 : index
      %c0_33 = arith.constant 0 : index
      %56 = vector.load %arg3[%c0_31, %c0_32, %c0_33] : memref<1x8x32xf32, #tpu.memory_space<vmem>>, vector<1x8x32xf32>
      %57 = vector.shape_cast %56 : vector<1x8x32xf32> to vector<8x32xf32>
      %cst_34 = arith.constant dense<0.000000e+00> : vector<8xf32>
      %58 = vector.multi_reduction <add>, %57, %cst_34 [1] : vector<8x32xf32> to vector<8xf32>
      %59 = vector.shape_cast %58 : vector<8xf32> to vector<8x1xf32>
      %cst_35 = arith.constant 3.200000e+01 : f32
      %60 = vector.broadcast %cst_35 : f32 to vector<8x1xf32>
      %61 = arith.divf %59, %60 : vector<8x1xf32>
      %62 = arith.mulf %57, %57 : vector<8x32xf32>
      %cst_36 = arith.constant dense<0.000000e+00> : vector<8xf32>
      %63 = vector.multi_reduction <add>, %62, %cst_36 [1] : vector<8x32xf32> to vector<8xf32>
      %64 = vector.shape_cast %63 : vector<8xf32> to vector<8x1xf32>
      %cst_37 = arith.constant 3.200000e+01 : f32
      %65 = vector.broadcast %cst_37 : f32 to vector<8x1xf32>
      %66 = arith.divf %64, %65 : vector<8x1xf32>
      %67 = arith.mulf %61, %61 : vector<8x1xf32>
      %68 = arith.subf %66, %67 : vector<8x1xf32>
      %cst_38 = arith.constant 9.99999974E-6 : f32
      %69 = vector.broadcast %cst_38 : f32 to vector<8x1xf32>
      %70 = arith.addf %68, %69 : vector<8x1xf32>
      %71 = math.rsqrt %70 : vector<8x1xf32>
      %72 = vector.broadcast %61 : vector<8x1xf32> to vector<8x32xf32>
      %73 = arith.subf %57, %72 : vector<8x32xf32>
      %74 = vector.broadcast %71 : vector<8x1xf32> to vector<8x32xf32>
      %75 = arith.mulf %73, %74 : vector<8x32xf32>
      %76 = vector.broadcast %0 : vector<1x32xf32> to vector<8x32xf32>
      %77 = arith.mulf %75, %76 : vector<8x32xf32>
      %78 = vector.broadcast %1 : vector<1x32xf32> to vector<8x32xf32>
      %79 = arith.addf %77, %78 : vector<8x32xf32>
      %c0_39 = arith.constant 0 : index
      %c0_40 = arith.constant 0 : index
      %80 = vector.load %arg7[%c0_39, %c0_40] : memref<32x64xf32, #tpu.memory_space<vmem>>, vector<32x64xf32>
      %cst_41 = arith.constant dense<0.000000e+00> : vector<8x64xf32>
      %81 = tpu.matmul %79, %80, %cst_41 {dimension_numbers = #tpu.dot_dimension_numbers<[1], [0], [0], [1], [0, 0, 1, 1], [], []>} : vector<8x32xf32>, vector<32x64xf32>, vector<8x64xf32> -> vector<8x64xf32>
      %c0_42 = arith.constant 0 : index
      %c0_43 = arith.constant 0 : index
      %82 = vector.load %arg8[%c0_42, %c0_43] : memref<32x64xf32, #tpu.memory_space<vmem>>, vector<32x64xf32>
      %cst_44 = arith.constant dense<0.000000e+00> : vector<8x64xf32>
      %83 = tpu.matmul %79, %82, %cst_44 {dimension_numbers = #tpu.dot_dimension_numbers<[1], [0], [0], [1], [0, 0, 1, 1], [], []>} : vector<8x32xf32>, vector<32x64xf32>, vector<8x64xf32> -> vector<8x64xf32>
      %84 = vector.extract_strided_slice %81 {offsets = [0, 0], sizes = [8, 16], strides = [1, 1]} : vector<8x64xf32> to vector<8x16xf32>
      %c0_45 = arith.constant 0 : index
      %c0_46 = arith.constant 0 : index
      %c0_47 = arith.constant 0 : index
      %85 = vector.load %arg13[%c0_45, %c0_46, %c0_47] : memref<4x8x16xf32, #tpu.memory_space<vmem>>, vector<1x8x16xf32>
      %86 = vector.shape_cast %85 : vector<1x8x16xf32> to vector<8x16xf32>
      %87 = vector.shape_cast %84 : vector<8x16xf32> to vector<1x8x16xf32>
      tpu.vector_store %arg13[%c0_45, %c0_46, %c0_47], %87 {strides = array<i32>} : memref<4x8x16xf32, #tpu.memory_space<vmem>>, vector<1x8x16xf32>,
      %88 = vector.extract_strided_slice %83 {offsets = [0, 0], sizes = [8, 16], strides = [1, 1]} : vector<8x64xf32> to vector<8x16xf32>
      %c0_48 = arith.constant 0 : index
      %c0_49 = arith.constant 0 : index
      %c0_50 = arith.constant 0 : index
      %89 = vector.load %arg14[%c0_48, %c0_49, %c0_50] : memref<4x8x16xf32, #tpu.memory_space<vmem>>, vector<1x8x16xf32>
      %90 = vector.shape_cast %89 : vector<1x8x16xf32> to vector<8x16xf32>
      %91 = vector.shape_cast %88 : vector<8x16xf32> to vector<1x8x16xf32>
      tpu.vector_store %arg14[%c0_48, %c0_49, %c0_50], %91 {strides = array<i32>} : memref<4x8x16xf32, #tpu.memory_space<vmem>>, vector<1x8x16xf32>,
      %92 = vector.extract_strided_slice %81 {offsets = [0, 16], sizes = [8, 16], strides = [1, 1]} : vector<8x64xf32> to vector<8x16xf32>
      %c1_51 = arith.constant 1 : index
      %c0_52 = arith.constant 0 : index
      %c0_53 = arith.constant 0 : index
      %93 = vector.load %arg13[%c1_51, %c0_52, %c0_53] : memref<4x8x16xf32, #tpu.memory_space<vmem>>, vector<1x8x16xf32>
      %94 = vector.shape_cast %93 : vector<1x8x16xf32> to vector<8x16xf32>
      %95 = vector.shape_cast %92 : vector<8x16xf32> to vector<1x8x16xf32>
      tpu.vector_store %arg13[%c1_51, %c0_52, %c0_53], %95 {strides = array<i32>} : memref<4x8x16xf32, #tpu.memory_space<vmem>>, vector<1x8x16xf32>,
      %96 = vector.extract_strided_slice %83 {offsets = [0, 16], sizes = [8, 16], strides = [1, 1]} : vector<8x64xf32> to vector<8x16xf32>
      %c1_54 = arith.constant 1 : index
      %c0_55 = arith.constant 0 : index
      %c0_56 = arith.constant 0 : index
      %97 = vector.load %arg14[%c1_54, %c0_55, %c0_56] : memref<4x8x16xf32, #tpu.memory_space<vmem>>, vector<1x8x16xf32>
      %98 = vector.shape_cast %97 : vector<1x8x16xf32> to vector<8x16xf32>
      %99 = vector.shape_cast %96 : vector<8x16xf32> to vector<1x8x16xf32>
      tpu.vector_store %arg14[%c1_54, %c0_55, %c0_56], %99 {strides = array<i32>} : memref<4x8x16xf32, #tpu.memory_space<vmem>>, vector<1x8x16xf32>,
      %100 = vector.extract_strided_slice %81 {offsets = [0, 32], sizes = [8, 16], strides = [1, 1]} : vector<8x64xf32> to vector<8x16xf32>
      %c2_57 = arith.constant 2 : index
      %c0_58 = arith.constant 0 : index
      %c0_59 = arith.constant 0 : index
      %101 = vector.load %arg13[%c2_57, %c0_58, %c0_59] : memref<4x8x16xf32, #tpu.memory_space<vmem>>, vector<1x8x16xf32>
      %102 = vector.shape_cast %101 : vector<1x8x16xf32> to vector<8x16xf32>
      %103 = vector.shape_cast %100 : vector<8x16xf32> to vector<1x8x16xf32>
      tpu.vector_store %arg13[%c2_57, %c0_58, %c0_59], %103 {strides = array<i32>} : memref<4x8x16xf32, #tpu.memory_space<vmem>>, vector<1x8x16xf32>,
      %104 = vector.extract_strided_slice %83 {offsets = [0, 32], sizes = [8, 16], strides = [1, 1]} : vector<8x64xf32> to vector<8x16xf32>
      %c2_60 = arith.constant 2 : index
      %c0_61 = arith.constant 0 : index
      %c0_62 = arith.constant 0 : index
      %105 = vector.load %arg14[%c2_60, %c0_61, %c0_62] : memref<4x8x16xf32, #tpu.memory_space<vmem>>, vector<1x8x16xf32>
      %106 = vector.shape_cast %105 : vector<1x8x16xf32> to vector<8x16xf32>
      %107 = vector.shape_cast %104 : vector<8x16xf32> to vector<1x8x16xf32>
      tpu.vector_store %arg14[%c2_60, %c0_61, %c0_62], %107 {strides = array<i32>} : memref<4x8x16xf32, #tpu.memory_space<vmem>>, vector<1x8x16xf32>,
      %108 = vector.extract_strided_slice %81 {offsets = [0, 48], sizes = [8, 16], strides = [1, 1]} : vector<8x64xf32> to vector<8x16xf32>
      %c3_63 = arith.constant 3 : index
      %c0_64 = arith.constant 0 : index
      %c0_65 = arith.constant 0 : index
      %109 = vector.load %arg13[%c3_63, %c0_64, %c0_65] : memref<4x8x16xf32, #tpu.memory_space<vmem>>, vector<1x8x16xf32>
      %110 = vector.shape_cast %109 : vector<1x8x16xf32> to vector<8x16xf32>
      %111 = vector.shape_cast %108 : vector<8x16xf32> to vector<1x8x16xf32>
      tpu.vector_store %arg13[%c3_63, %c0_64, %c0_65], %111 {strides = array<i32>} : memref<4x8x16xf32, #tpu.memory_space<vmem>>, vector<1x8x16xf32>,
      %112 = vector.extract_strided_slice %83 {offsets = [0, 48], sizes = [8, 16], strides = [1, 1]} : vector<8x64xf32> to vector<8x16xf32>
      %c3_66 = arith.constant 3 : index
      %c0_67 = arith.constant 0 : index
      %c0_68 = arith.constant 0 : index
      %113 = vector.load %arg14[%c3_66, %c0_67, %c0_68] : memref<4x8x16xf32, #tpu.memory_space<vmem>>, vector<1x8x16xf32>
      %114 = vector.shape_cast %113 : vector<1x8x16xf32> to vector<8x16xf32>
      %115 = vector.shape_cast %112 : vector<8x16xf32> to vector<1x8x16xf32>
      tpu.vector_store %arg14[%c3_66, %c0_67, %c0_68], %115 {strides = array<i32>} : memref<4x8x16xf32, #tpu.memory_space<vmem>>, vector<1x8x16xf32>,
    } else {
    }
    %c0_4 = arith.constant 0 : index
    %c0_5 = arith.constant 0 : index
    %c0_6 = arith.constant 0 : index
    %5 = vector.load %arg2[%c0_4, %c0_5, %c0_6] : memref<1x8x32xf32, #tpu.memory_space<vmem>>, vector<1x8x32xf32>
    %6 = vector.shape_cast %5 : vector<1x8x32xf32> to vector<8x32xf32>
    %cst = arith.constant dense<0.000000e+00> : vector<8xf32>
    %7 = vector.multi_reduction <add>, %6, %cst [1] : vector<8x32xf32> to vector<8xf32>
    %8 = vector.shape_cast %7 : vector<8xf32> to vector<8x1xf32>
    %cst_7 = arith.constant 3.200000e+01 : f32
    %9 = vector.broadcast %cst_7 : f32 to vector<8x1xf32>
    %10 = arith.divf %8, %9 : vector<8x1xf32>
    %11 = arith.mulf %6, %6 : vector<8x32xf32>
    %cst_8 = arith.constant dense<0.000000e+00> : vector<8xf32>
    %12 = vector.multi_reduction <add>, %11, %cst_8 [1] : vector<8x32xf32> to vector<8xf32>
    %13 = vector.shape_cast %12 : vector<8xf32> to vector<8x1xf32>
    %cst_9 = arith.constant 3.200000e+01 : f32
    %14 = vector.broadcast %cst_9 : f32 to vector<8x1xf32>
    %15 = arith.divf %13, %14 : vector<8x1xf32>
    %16 = arith.mulf %10, %10 : vector<8x1xf32>
    %17 = arith.subf %15, %16 : vector<8x1xf32>
    %cst_10 = arith.constant 9.99999974E-6 : f32
    %18 = vector.broadcast %cst_10 : f32 to vector<8x1xf32>
    %19 = arith.addf %17, %18 : vector<8x1xf32>
    %20 = math.rsqrt %19 : vector<8x1xf32>
    %21 = vector.broadcast %10 : vector<8x1xf32> to vector<8x32xf32>
    %22 = arith.subf %6, %21 : vector<8x32xf32>
    %23 = vector.broadcast %20 : vector<8x1xf32> to vector<8x32xf32>
    %24 = arith.mulf %22, %23 : vector<8x32xf32>
    %25 = vector.broadcast %0 : vector<1x32xf32> to vector<8x32xf32>
    %26 = arith.mulf %24, %25 : vector<8x32xf32>
    %27 = vector.broadcast %1 : vector<1x32xf32> to vector<8x32xf32>
    %28 = arith.addf %26, %27 : vector<8x32xf32>
    %c0_11 = arith.constant 0 : index
    %c0_12 = arith.constant 0 : index
    %29 = vector.load %arg6[%c0_11, %c0_12] : memref<32x64xf32, #tpu.memory_space<vmem>>, vector<32x64xf32>
    %cst_13 = arith.constant dense<0.000000e+00> : vector<8x64xf32>
    %30 = tpu.matmul %28, %29, %cst_13 {dimension_numbers = #tpu.dot_dimension_numbers<[1], [0], [0], [1], [0, 0, 1, 1], [], []>} : vector<8x32xf32>, vector<32x64xf32>, vector<8x64xf32> -> vector<8x64xf32>
    %31 = vector.extract_strided_slice %30 {offsets = [0, 0], sizes = [8, 16], strides = [1, 1]} : vector<8x64xf32> to vector<8x16xf32>
    %c0_14 = arith.constant 0 : index
    %c0_15 = arith.constant 0 : index
    %c0_16 = arith.constant 0 : index
    %32 = vector.load %arg12[%c0_14, %c0_15, %c0_16] : memref<4x8x16xf32, #tpu.memory_space<vmem>>, vector<1x8x16xf32>
    %33 = vector.shape_cast %32 : vector<1x8x16xf32> to vector<8x16xf32>
    %34 = vector.shape_cast %31 : vector<8x16xf32> to vector<1x8x16xf32>
    tpu.vector_store %arg12[%c0_14, %c0_15, %c0_16], %34 {strides = array<i32>} : memref<4x8x16xf32, #tpu.memory_space<vmem>>, vector<1x8x16xf32>,
    %35 = vector.extract_strided_slice %30 {offsets = [0, 16], sizes = [8, 16], strides = [1, 1]} : vector<8x64xf32> to vector<8x16xf32>
    %c1 = arith.constant 1 : index
    %c0_17 = arith.constant 0 : index
    %c0_18 = arith.constant 0 : index
    %36 = vector.load %arg12[%c1, %c0_17, %c0_18] : memref<4x8x16xf32, #tpu.memory_space<vmem>>, vector<1x8x16xf32>
    %37 = vector.shape_cast %36 : vector<1x8x16xf32> to vector<8x16xf32>
    %38 = vector.shape_cast %35 : vector<8x16xf32> to vector<1x8x16xf32>
    tpu.vector_store %arg12[%c1, %c0_17, %c0_18], %38 {strides = array<i32>} : memref<4x8x16xf32, #tpu.memory_space<vmem>>, vector<1x8x16xf32>,
    %39 = vector.extract_strided_slice %30 {offsets = [0, 32], sizes = [8, 16], strides = [1, 1]} : vector<8x64xf32> to vector<8x16xf32>
    %c2 = arith.constant 2 : index
    %c0_19 = arith.constant 0 : index
    %c0_20 = arith.constant 0 : index
    %40 = vector.load %arg12[%c2, %c0_19, %c0_20] : memref<4x8x16xf32, #tpu.memory_space<vmem>>, vector<1x8x16xf32>
    %41 = vector.shape_cast %40 : vector<1x8x16xf32> to vector<8x16xf32>
    %42 = vector.shape_cast %39 : vector<8x16xf32> to vector<1x8x16xf32>
    tpu.vector_store %arg12[%c2, %c0_19, %c0_20], %42 {strides = array<i32>} : memref<4x8x16xf32, #tpu.memory_space<vmem>>, vector<1x8x16xf32>,
    %43 = vector.extract_strided_slice %30 {offsets = [0, 48], sizes = [8, 16], strides = [1, 1]} : vector<8x64xf32> to vector<8x16xf32>
    %c3 = arith.constant 3 : index
    %c0_21 = arith.constant 0 : index
    %c0_22 = arith.constant 0 : index
    %44 = vector.load %arg12[%c3, %c0_21, %c0_22] : memref<4x8x16xf32, #tpu.memory_space<vmem>>, vector<1x8x16xf32>
    %45 = vector.shape_cast %44 : vector<1x8x16xf32> to vector<8x16xf32>
    %46 = vector.shape_cast %43 : vector<8x16xf32> to vector<1x8x16xf32>
    tpu.vector_store %arg12[%c3, %c0_21, %c0_22], %46 {strides = array<i32>} : memref<4x8x16xf32, #tpu.memory_space<vmem>>, vector<1x8x16xf32>,
    %cst_23 = arith.constant 0.000000e+00 : f32
    %47 = vector.broadcast %cst_23 : f32 to vector<8x32xf32>
    %c0_i32_24 = arith.constant 0 : i32
    %c4_i32 = arith.constant 4 : i32
    %48 = arith.addi %c0_i32_24, %c4_i32 : i32
    %c1_i32 = arith.constant 1 : i32
    %49 = scf.for %arg15 = %c0_i32_24 to %48 step %c1_i32 iter_args(%arg16 = %47) -> (vector<8x32xf32>)  : i32 {
      %56 = arith.index_cast %arg15 : i32 to index
      %c0_31 = arith.constant 0 : index
      %c0_32 = arith.constant 0 : index
      %57 = vector.load %arg12[%56, %c0_31, %c0_32] : memref<4x8x16xf32, #tpu.memory_space<vmem>>, vector<1x8x16xf32>
      %58 = vector.shape_cast %57 : vector<1x8x16xf32> to vector<8x16xf32>
      %59 = arith.index_cast %arg15 : i32 to index
      %c0_33 = arith.constant 0 : index
      %c0_34 = arith.constant 0 : index
      %60 = vector.load %arg13[%59, %c0_33, %c0_34] : memref<4x8x16xf32, #tpu.memory_space<vmem>>, vector<1x8x16xf32>
      %61 = vector.shape_cast %60 : vector<1x8x16xf32> to vector<8x16xf32>
      %62 = arith.index_cast %arg15 : i32 to index
      %c0_35 = arith.constant 0 : index
      %c0_36 = arith.constant 0 : index
      %63 = vector.load %arg14[%62, %c0_35, %c0_36] : memref<4x8x16xf32, #tpu.memory_space<vmem>>, vector<1x8x16xf32>
      %64 = vector.shape_cast %63 : vector<1x8x16xf32> to vector<8x16xf32>
      %cst_37 = arith.constant dense<0.000000e+00> : vector<8x8xf32>
      %65 = tpu.matmul %58, %61, %cst_37 {dimension_numbers = #tpu.dot_dimension_numbers<[1], [1], [0], [0], [0, 0, 1, 0], [], []>} : vector<8x16xf32>, vector<8x16xf32>, vector<8x8xf32> -> vector<8x8xf32>
      %cst_38 = arith.constant dense<0xFF800000> : vector<8xf32>
      %66 = vector.multi_reduction <maximumf>, %65, %cst_38 [1] : vector<8x8xf32> to vector<8xf32>
      %67 = vector.shape_cast %66 : vector<8xf32> to vector<8x1xf32>
      %68 = vector.broadcast %67 : vector<8x1xf32> to vector<8x8xf32>
      %69 = arith.subf %65, %68 : vector<8x8xf32>
      %70 = math.exp %69 : vector<8x8xf32>
      %cst_39 = arith.constant dense<0.000000e+00> : vector<8xf32>
      %71 = vector.multi_reduction <add>, %70, %cst_39 [1] : vector<8x8xf32> to vector<8xf32>
      %72 = vector.shape_cast %71 : vector<8xf32> to vector<8x1xf32>
      %cst_40 = arith.constant dense<0.000000e+00> : vector<8x16xf32>
      %73 = tpu.matmul %70, %64, %cst_40 {dimension_numbers = #tpu.dot_dimension_numbers<[1], [0], [0], [1], [0, 0, 1, 1], [], []>} : vector<8x8xf32>, vector<8x16xf32>, vector<8x16xf32> -> vector<8x16xf32>
      %74 = tpu.reciprocal %72 {approx = true} : vector<8x1xf32> -> vector<8x1xf32>
      %75 = vector.broadcast %74 : vector<8x1xf32> to vector<8x16xf32>
      %76 = arith.mulf %73, %75 : vector<8x16xf32>
      %77 = arith.index_cast %arg15 : i32 to index
      %c0_41 = arith.constant 0 : index
      %c0_42 = arith.constant 0 : index
      %78 = vector.load %arg9[%77, %c0_41, %c0_42] : memref<4x16x32xf32, #tpu.memory_space<vmem>>, vector<1x16x32xf32>
      %79 = vector.shape_cast %78 : vector<1x16x32xf32> to vector<16x32xf32>
      %cst_43 = arith.constant dense<0.000000e+00> : vector<8x32xf32>
      %80 = tpu.matmul %76, %79, %cst_43 {dimension_numbers = #tpu.dot_dimension_numbers<[1], [0], [0], [1], [0, 0, 1, 1], [], []>} : vector<8x16xf32>, vector<16x32xf32>, vector<8x32xf32> -> vector<8x32xf32>
      %81 = arith.addf %arg16, %80 : vector<8x32xf32>
      scf.yield %81 : vector<8x32xf32>
    }
    %c4_i32_25 = arith.constant 4 : i32
    %c0_26 = arith.constant 0 : index
    %c0_27 = arith.constant 0 : index
    %50 = vector.load %arg10[%c0_26, %c0_27] : memref<1x32xf32, #tpu.memory_space<vmem>>, vector<1x32xf32>
    %51 = vector.broadcast %50 : vector<1x32xf32> to vector<8x32xf32>
    %52 = arith.addf %49, %51 : vector<8x32xf32>
    %c0_28 = arith.constant 0 : index
    %c0_29 = arith.constant 0 : index
    %c0_30 = arith.constant 0 : index
    %53 = vector.load %arg11[%c0_28, %c0_29, %c0_30] : memref<1x8x32xf32, #tpu.memory_space<vmem>>, vector<1x8x32xf32>
    %54 = vector.shape_cast %53 : vector<1x8x32xf32> to vector<8x32xf32>
    %55 = vector.shape_cast %52 : vector<8x32xf32> to vector<1x8x32xf32>
    tpu.vector_store %arg11[%c0_28, %c0_29, %c0_30], %55 {strides = array<i32>} : memref<1x8x32xf32, #tpu.memory_space<vmem>>, vector<1x8x32xf32>,
    return
  }
  func.func @transform_0(%arg0: i32, %arg1: i32) -> (i32, i32, i32) {
    %c0_i32 = arith.constant 0 : i32
    %c0_i32_0 = arith.constant 0 : i32
    return %arg0, %arg1, %c0_i32 : i32, i32, i32
  }
  func.func @transform_1(%arg0: i32, %arg1: i32) -> (i32, i32, i32) {
    %c0_i32 = arith.constant 0 : i32
    %c0_i32_0 = arith.constant 0 : i32
    %c0_i32_1 = arith.constant 0 : i32
    return %arg0, %c0_i32, %c0_i32_0 : i32, i32, i32
  }
  func.func @transform_2(%arg0: i32, %arg1: i32) -> (i32, i32) {
    %c0_i32 = arith.constant 0 : i32
    %c0_i32_0 = arith.constant 0 : i32
    %c0_i32_1 = arith.constant 0 : i32
    return %c0_i32, %c0_i32_0 : i32, i32
  }
  func.func @transform_3(%arg0: i32, %arg1: i32) -> (i32, i32) {
    %c0_i32 = arith.constant 0 : i32
    %c0_i32_0 = arith.constant 0 : i32
    %c0_i32_1 = arith.constant 0 : i32
    return %c0_i32, %c0_i32_0 : i32, i32
  }
  func.func @transform_4(%arg0: i32, %arg1: i32) -> (i32, i32) {
    %c0_i32 = arith.constant 0 : i32
    %c0_i32_0 = arith.constant 0 : i32
    %c0_i32_1 = arith.constant 0 : i32
    return %c0_i32, %c0_i32_0 : i32, i32
  }
  func.func @transform_5(%arg0: i32, %arg1: i32) -> (i32, i32) {
    %c0_i32 = arith.constant 0 : i32
    %c0_i32_0 = arith.constant 0 : i32
    %c0_i32_1 = arith.constant 0 : i32
    return %c0_i32, %c0_i32_0 : i32, i32
  }
  func.func @transform_6(%arg0: i32, %arg1: i32) -> (i32, i32) {
    %c0_i32 = arith.constant 0 : i32
    %c0_i32_0 = arith.constant 0 : i32
    %c0_i32_1 = arith.constant 0 : i32
    return %c0_i32, %c0_i32_0 : i32, i32
  }
  func.func @transform_7(%arg0: i32, %arg1: i32) -> (i32, i32, i32) {
    %c0_i32 = arith.constant 0 : i32
    %c0_i32_0 = arith.constant 0 : i32
    %c0_i32_1 = arith.constant 0 : i32
    %c0_i32_2 = arith.constant 0 : i32
    return %c0_i32, %c0_i32_0, %c0_i32_1 : i32, i32, i32
  }
  func.func @transform_8(%arg0: i32, %arg1: i32) -> (i32, i32) {
    %c0_i32 = arith.constant 0 : i32
    %c0_i32_0 = arith.constant 0 : i32
    %c0_i32_1 = arith.constant 0 : i32
    return %c0_i32, %c0_i32_0 : i32, i32
  }
  func.func @transform_9(%arg0: i32, %arg1: i32) -> (i32, i32, i32) {
    %c0_i32 = arith.constant 0 : i32
    %c0_i32_0 = arith.constant 0 : i32
    return %arg0, %arg1, %c0_i32 : i32, i32, i32
  }
}

</mosaic_0001>

<llo_original>
// kernel: tpu_custom_call.1
$region0: #{tpu_custom_call.1}
  #allocation0 [shape = 'u32[]', space=smem, size = 0x4, offset = 0x4, fixed_abs, tag = 'smem constant byte address 0x4 - core index']
  #allocation1 [shape = 'u32[144,128]{1,0:T(1,128)}', space=vmem, size = 0x12000, scoped, tag = 'internal scratch']
  #allocation2 [shape = 'f32[4,8,16]{2,1,0:T(8,128)}', space=vmem, size = 0x4000, scoped, tag = 'scratch operand']
  #allocation3 [shape = 'f32[4,8,16]{2,1,0:T(8,128)}', space=vmem, size = 0x4000, scoped, tag = 'scratch operand']
  #allocation4 [shape = 'f32[4,8,16]{2,1,0:T(8,128)}', space=vmem, size = 0x4000, scoped, tag = 'scratch operand']
  %s0 = inlined_call_operand.hbm [shape: f32[2,8,32], index: 0, kind: input, shape index: {}]
  %s1 = inlined_call_operand.hbm [shape: f32[2,8,32], index: 1, kind: input, shape index: {}]
  %s2 = inlined_call_operand.vmem [shape: f32[1,32], index: 2, kind: input, shape index: {}]
  %s3 = inlined_call_operand.vmem [shape: f32[1,32], index: 3, kind: input, shape index: {}]
  %s4 = inlined_call_operand.hbm [shape: f32[32,64], index: 4, kind: input, shape index: {}]
  %s5 = inlined_call_operand.hbm [shape: f32[32,64], index: 5, kind: input, shape index: {}]
  %s6 = inlined_call_operand.hbm [shape: f32[32,64], index: 6, kind: input, shape index: {}]
  %s7 = inlined_call_operand.hbm [shape: f32[4,16,32], index: 7, kind: input, shape index: {}]
  %s8 = inlined_call_operand.vmem [shape: f32[1,32], index: 8, kind: input, shape index: {}]
  %s9 = inlined_call_operand.hbm [shape: f32[2,8,32], index: 9, kind: output, shape index: {}]
  %s10 = sld [smem:[#allocation0]]
  $region104: #{tpu_custom_call.1} parent=0
    _
  %s12 = ssub.s32 1, %s10
  %s13 = scalar_select 0, %s12, %s10
  $region1: #{tpu_custom_call.1} parent=0
    #allocation5 [shape = 'u8[8192]{0}', space=vmem, size = 0x2000, scoped, tag = 'input window, operand 0']
    #allocation6 [shape = 's32[2]{0}', space=sflag, size = 0x8, scoped, tag = 'scoped memory for tpu_custom_call.1']
    #allocation7 [shape = 's32[2]{0}', space=sflag, size = 0x8, scoped, tag = 'scoped memory for tpu_custom_call.1']
    #allocation8 [shape = 'u8[8192]{0}', space=vmem, size = 0x2000, scoped, tag = 'input window, operand 1']
    #allocation9 [shape = 's32[2]{0}', space=sflag, size = 0x8, scoped, tag = 'scoped memory for tpu_custom_call.1']
    #allocation10 [shape = 'u8[16384]{0}', space=vmem, size = 0x4000, scoped, tag = 'input window, operand 4, single buffered']
    #allocation11 [shape = 'u8[16384]{0}', space=vmem, size = 0x4000, scoped, tag = 'input window, operand 5, single buffered']
    #allocation12 [shape = 's32[1]{0}', space=sflag, size = 0x4, scoped, tag = 'scoped memory for tpu_custom_call.1']
    #allocation13 [shape = 'u8[16384]{0}', space=vmem, size = 0x4000, scoped, tag = 'input window, operand 6, single buffered']
    #allocation14 [shape = 'u8[32768]{0}', space=vmem, size = 0x8000, scoped, tag = 'input window, operand 7, single buffered']
    #allocation15 [shape = 's32[1]{0}', space=sflag, size = 0x4, scoped, tag = 'scoped memory for tpu_custom_call.1']
    #allocation16 [shape = 'u8[8192]{0}', space=vmem, size = 0x2000, scoped, tag = 'output window, operand 0']
    %14 = vsyncpa [#allocation6], 0
    %s15 = scalar_lea.sflag [#allocation6], 1
    %16 = vsyncpa %s15, 0
    %17 = vsyncpa [#allocation9], 0
    %s18 = scalar_lea.sflag [#allocation9], 1
    %19 = vsyncpa %s18, 0
    %20 = vsyncpa [#allocation12], 0
    %21 = vsyncpa [#allocation15], 0
    %22 = vsyncpa [#allocation7], 0
    %s23 = scalar_lea.sflag [#allocation7], 1
    %24 = vsyncpa %s23, 0
    loop: start=0, step=1, limit=4
    $region2: #{tpu_custom_call.1} parent=1 // loop_pre_header
      _
    $region3: #{tpu_custom_call.1} parent=1 // loop_header
      %s26 = sphi 0, %s30
      %p27 = scmp.ge.s32.totalorder %s26, 4
      %s33 = sphi 0, %s45
      %s34 = sphi 0, %s41
      %s35 = sphi 0, %s33
      %s36 = sphi 0, %s34
      %s37 = sphi 0, %s35
      %s38 = sphi 0, %s36
      %s50 = sphi 0, %s52
      %s53 = sphi 0, %s50
      %s54 = sphi 0, %s53
      %s70 = sphi 0, %s54
      %s76 = sphi 0, %s78
      %s79 = sphi 0, %s76
      %s80 = sphi 0, %s79
      %s96 = sphi 0, %s80
      %s100 = sphi 0, %s100
      %s102 = sphi 0, %s100
      %s103 = sphi 0, %s102
      %s117 = sphi 0, %s103
      %s121 = sphi 0, %s121
      %s123 = sphi 0, %s121
      %s124 = sphi 0, %s123
      %s138 = sphi 0, %s124
      %s142 = sphi 0, %s142
      %s144 = sphi 0, %s142
      %s145 = sphi 0, %s144
      %s159 = sphi 0, %s145
      %s163 = sphi 0, %s163
      %s165 = sphi 0, %s163
      %s166 = sphi 0, %s165
      %s180 = sphi 0, %s166
      %s184 = sphi 0, %s184
      %s186 = sphi 0, %s184
      %s187 = sphi 0, %s186
      %s201 = sphi 0, %s187
      %s205 = sphi 0, %s205
      %s207 = sphi 0, %s205
      %s208 = sphi 0, %s207
      %s222 = sphi 0, %s208
      %s226 = sphi 0, %s226
      %s228 = sphi 0, %s226
      %s229 = sphi 0, %s228
      %s243 = sphi 0, %s229
      %s251 = sphi 0, %s253
      %s254 = sphi 0, %s251
      %s255 = sphi 0, %s254
      %s271 = sphi 0, %s255
    $region4: #{tpu_custom_call.1} parent=1 // loop_header_branch
      %29 = sbr.rel (%p27) target = $region8
    $region5: #{tpu_custom_call.1} parent=1 // loop_body
      %s31 = ssub.s32 %s26, 1
      %s32 = ssub.s32 %s26, 2
      %s39 = sadd.s32 1, %s34
      %p40 = scmp.ge.s32.totalorder %s39, 1
      %s41 = scalar_select %p40, 0, %s39
      %s42 = sadd.s32 1, %s33
      %s43 = scalar_select %p40, %s42, %s33
      %p44 = scmp.ge.s32.totalorder %s43, 2
      %s45 = scalar_select %p44, 0, %s43
      %s46 = ssub.s32 %s33, %s45
      %s47 = ssub.s32 %s34, %s41
      %s48 = sor.u32 %s46, %s47
      %p49 = scmp.eq.s32.totalorder %s48, 0
      %s51 = sadd.s32 %s50, 1
      %s52 = scalar_select %p49, %s50, %s51
      %p55 = pneg %p49
      %p56 = scmp.eq.s32.totalorder %s26, 1
      %p57 = por %p55, %p56
      %p58 = scmp.ne.s32.totalorder %s50, %s53
      %p59 = scmp.eq.s32.totalorder %s26, 0
      %p60 = por %p58, %p59
      %p61 = scmp.ne.s32.totalorder %s50, %s53
      %p62 = scmp.eq.s32.totalorder %s31, 1
      %p63 = por %p61, %p62
      %p64 = scmp.ne.s32.totalorder %s53, %s54
      %p65 = scmp.eq.s32.totalorder %s31, 0
      %p66 = por %p64, %p65
      %p67 = scmp.ne.s32.totalorder %s53, %s54
      %p68 = scmp.eq.s32.totalorder %s32, 1
      %p69 = por %p67, %p68
      %p71 = scmp.ne.s32.totalorder %s54, %s70
      %p72 = scmp.eq.s32.totalorder %s32, 0
      %p73 = por %p71, %p72
      %s74 = ssub.s32 %s33, %s45
      %p75 = scmp.eq.s32.totalorder %s74, 0
      %s77 = sadd.s32 %s76, 1
      %s78 = scalar_select %p75, %s76, %s77
      %p81 = pneg %p75
      %p82 = scmp.eq.s32.totalorder %s26, 1
      %p83 = por %p81, %p82
      %p84 = scmp.ne.s32.totalorder %s76, %s79
      %p85 = scmp.eq.s32.totalorder %s26, 0
      %p86 = por %p84, %p85
      %p87 = scmp.ne.s32.totalorder %s76, %s79
      %p88 = scmp.eq.s32.totalorder %s31, 1
      %p89 = por %p87, %p88
      %p90 = scmp.ne.s32.totalorder %s79, %s80
      %p91 = scmp.eq.s32.totalorder %s31, 0
      %p92 = por %p90, %p91
      %p93 = scmp.ne.s32.totalorder %s79, %s80
      %p94 = scmp.eq.s32.totalorder %s32, 1
      %p95 = por %p93, %p94
      %p97 = scmp.ne.s32.totalorder %s80, %s96
      %p98 = scmp.eq.s32.totalorder %s32, 0
      %p99 = por %p97, %p98
      %s101 = sadd.s32 %s100, 1
      %p104 = scmp.eq.s32.totalorder %s26, 1
      %p105 = scmp.ne.s32.totalorder %s100, %s102
      %p106 = scmp.eq.s32.totalorder %s26, 0
      %p107 = por %p105, %p106
      %p108 = scmp.ne.s32.totalorder %s100, %s102
      %p109 = scmp.eq.s32.totalorder %s31, 1
      %p110 = por %p108, %p109
      %p111 = scmp.ne.s32.totalorder %s102, %s103
      %p112 = scmp.eq.s32.totalorder %s31, 0
      %p113 = por %p111, %p112
      %p114 = scmp.ne.s32.totalorder %s102, %s103
      %p115 = scmp.eq.s32.totalorder %s32, 1
      %p116 = por %p114, %p115
      %p118 = scmp.ne.s32.totalorder %s103, %s117
      %p119 = scmp.eq.s32.totalorder %s32, 0
      %p120 = por %p118, %p119
      %s122 = sadd.s32 %s121, 1
      %p125 = scmp.eq.s32.totalorder %s26, 1
      %p126 = scmp.ne.s32.totalorder %s121, %s123
      %p127 = scmp.eq.s32.totalorder %s26, 0
      %p128 = por %p126, %p127
      %p129 = scmp.ne.s32.totalorder %s121, %s123
      %p130 = scmp.eq.s32.totalorder %s31, 1
      %p131 = por %p129, %p130
      %p132 = scmp.ne.s32.totalorder %s123, %s124
      %p133 = scmp.eq.s32.totalorder %s31, 0
      %p134 = por %p132, %p133
      %p135 = scmp.ne.s32.totalorder %s123, %s124
      %p136 = scmp.eq.s32.totalorder %s32, 1
      %p137 = por %p135, %p136
      %p139 = scmp.ne.s32.totalorder %s124, %s138
      %p140 = scmp.eq.s32.totalorder %s32, 0
      %p141 = por %p139, %p140
      %s143 = sadd.s32 %s142, 1
      %p146 = scmp.eq.s32.totalorder %s26, 1
      %p147 = scmp.ne.s32.totalorder %s142, %s144
      %p148 = scmp.eq.s32.totalorder %s26, 0
      %p149 = por %p147, %p148
      %p150 = scmp.ne.s32.totalorder %s142, %s144
      %p151 = scmp.eq.s32.totalorder %s31, 1
      %p152 = por %p150, %p151
      %p153 = scmp.ne.s32.totalorder %s144, %s145
      %p154 = scmp.eq.s32.totalorder %s31, 0
      %p155 = por %p153, %p154
      %p156 = scmp.ne.s32.totalorder %s144, %s145
      %p157 = scmp.eq.s32.totalorder %s32, 1
      %p158 = por %p156, %p157
      %p160 = scmp.ne.s32.totalorder %s145, %s159
      %p161 = scmp.eq.s32.totalorder %s32, 0
      %p162 = por %p160, %p161
      %s164 = sadd.s32 %s163, 1
      %p167 = scmp.eq.s32.totalorder %s26, 1
      %p168 = scmp.ne.s32.totalorder %s163, %s165
      %p169 = scmp.eq.s32.totalorder %s26, 0
      %p170 = por %p168, %p169
      %p171 = scmp.ne.s32.totalorder %s163, %s165
      %p172 = scmp.eq.s32.totalorder %s31, 1
      %p173 = por %p171, %p172
      %p174 = scmp.ne.s32.totalorder %s165, %s166
      %p175 = scmp.eq.s32.totalorder %s31, 0
      %p176 = por %p174, %p175
      %p177 = scmp.ne.s32.totalorder %s165, %s166
      %p178 = scmp.eq.s32.totalorder %s32, 1
      %p179 = por %p177, %p178
      %p181 = scmp.ne.s32.totalorder %s166, %s180
      %p182 = scmp.eq.s32.totalorder %s32, 0
      %p183 = por %p181, %p182
      %s185 = sadd.s32 %s184, 1
      %p188 = scmp.eq.s32.totalorder %s26, 1
      %p189 = scmp.ne.s32.totalorder %s184, %s186
      %p190 = scmp.eq.s32.totalorder %s26, 0
      %p191 = por %p189, %p190
      %p192 = scmp.ne.s32.totalorder %s184, %s186
      %p193 = scmp.eq.s32.totalorder %s31, 1
      %p194 = por %p192, %p193
      %p195 = scmp.ne.s32.totalorder %s186, %s187
      %p196 = scmp.eq.s32.totalorder %s31, 0
      %p197 = por %p195, %p196
      %p198 = scmp.ne.s32.totalorder %s186, %s187
      %p199 = scmp.eq.s32.totalorder %s32, 1
      %p200 = por %p198, %p199
      %p202 = scmp.ne.s32.totalorder %s187, %s201
      %p203 = scmp.eq.s32.totalorder %s32, 0
      %p204 = por %p202, %p203
      %s206 = sadd.s32 %s205, 1
      %p209 = scmp.eq.s32.totalorder %s26, 1
      %p210 = scmp.ne.s32.totalorder %s205, %s207
      %p211 = scmp.eq.s32.totalorder %s26, 0
      %p212 = por %p210, %p211
      %p213 = scmp.ne.s32.totalorder %s205, %s207
      %p214 = scmp.eq.s32.totalorder %s31, 1
      %p215 = por %p213, %p214
      %p216 = scmp.ne.s32.totalorder %s207, %s208
      %p217 = scmp.eq.s32.totalorder %s31, 0
      %p218 = por %p216, %p217
      %p219 = scmp.ne.s32.totalorder %s207, %s208
      %p220 = scmp.eq.s32.totalorder %s32, 1
      %p221 = por %p219, %p220
      %p223 = scmp.ne.s32.totalorder %s208, %s222
      %p224 = scmp.eq.s32.totalorder %s32, 0
      %p225 = por %p223, %p224
      %s227 = sadd.s32 %s226, 1
      %p230 = scmp.eq.s32.totalorder %s26, 1
      %p231 = scmp.ne.s32.totalorder %s226, %s228
      %p232 = scmp.eq.s32.totalorder %s26, 0
      %p233 = por %p231, %p232
      %p234 = scmp.ne.s32.totalorder %s226, %s228
      %p235 = scmp.eq.s32.totalorder %s31, 1
      %p236 = por %p234, %p235
      %p237 = scmp.ne.s32.totalorder %s228, %s229
      %p238 = scmp.eq.s32.totalorder %s31, 0
      %p239 = por %p237, %p238
      %p240 = scmp.ne.s32.totalorder %s228, %s229
      %p241 = scmp.eq.s32.totalorder %s32, 1
      %p242 = por %p240, %p241
      %p244 = scmp.ne.s32.totalorder %s229, %s243
      %p245 = scmp.eq.s32.totalorder %s32, 0
      %p246 = por %p244, %p245
      %s247 = ssub.s32 %s33, %s45
      %s248 = ssub.s32 %s34, %s41
      %s249 = sor.u32 %s247, %s248
      %p250 = scmp.eq.s32.totalorder %s249, 0
      %s252 = sadd.s32 %s251, 1
      %s253 = scalar_select %p250, %s251, %s252
      %p256 = pneg %p250
      %p257 = scmp.eq.s32.totalorder %s26, 1
      %p258 = por %p256, %p257
      %p259 = scmp.ne.s32.totalorder %s251, %s254
      %p260 = scmp.eq.s32.totalorder %s26, 0
      %p261 = por %p259, %p260
      %p262 = scmp.ne.s32.totalorder %s251, %s254
      %p263 = scmp.eq.s32.totalorder %s31, 1
      %p264 = por %p262, %p263
      %p265 = scmp.ne.s32.totalorder %s254, %s255
      %p266 = scmp.eq.s32.totalorder %s31, 0
      %p267 = por %p265, %p266
      %p268 = scmp.ne.s32.totalorder %s254, %s255
      %p269 = scmp.eq.s32.totalorder %s32, 1
      %p270 = por %p268, %p269
      %p272 = scmp.ne.s32.totalorder %s255, %s271
      %p273 = scmp.eq.s32.totalorder %s32, 0
      %p274 = por %p272, %p273
      %p275 = scmp.le.s32.totalorder 1, %s26
      %p276 = scmp.lt.s32.totalorder %s26, 3
      %p277 = pnand %p275, %p276
      %p278 = pneg %p277
      // Predicated region
      $region9: #{tpu_custom_call.1} parent=5 // pred_check
        _
      $region10: #{tpu_custom_call.1} parent=5 // pred_check_branch
        %280 = sbr.rel (%p277) target = $region12
      $region11: #{tpu_custom_call.1} parent=5 // pred_region
        %s281 = ssub.s32 %s26, 1
        // Predicated region
        $region13: #{tpu_custom_call.1} parent=11 // pred_check
          %p282 = pneg %p113
        $region14: #{tpu_custom_call.1} parent=11 // pred_check_branch
          %284 = sbr.rel (%p282) target = $region16
        $region15: #{tpu_custom_call.1} parent=11 // pred_region
          _
        $region16: #{tpu_custom_call.1} parent=11 // pred_fallthru
          _
        // Predicated region
        $region17: #{tpu_custom_call.1} parent=11 // pred_check
          %p285 = pneg %p134
        $region18: #{tpu_custom_call.1} parent=11 // pred_check_branch
          %287 = sbr.rel (%p285) target = $region20
        $region19: #{tpu_custom_call.1} parent=11 // pred_region
          _
        $region20: #{tpu_custom_call.1} parent=11 // pred_fallthru
          _
        // Predicated region
        $region21: #{tpu_custom_call.1} parent=11 // pred_check
          %p288 = pneg %p155
        $region22: #{tpu_custom_call.1} parent=11 // pred_check_branch
          %290 = sbr.rel (%p288) target = $region24
        $region23: #{tpu_custom_call.1} parent=11 // pred_region
          %s292 = ssub.s32 512, 512
          %293 = vsyncadd [#allocation9], %s292
          %s294 = sshll.u32 [#allocation10], 4
          %s295 = int_to_ptr.vmem [resolvable:$true] %s294
          %300 = dma.hbm_to_vmem [thread:$0]  %s4, 512, %s295, [#allocation9], 128, 128, 8
        $region24: #{tpu_custom_call.1} parent=11 // pred_fallthru
          _
        // Predicated region
        $region25: #{tpu_custom_call.1} parent=11 // pred_check
          %p301 = pneg %p176
        $region26: #{tpu_custom_call.1} parent=11 // pred_check_branch
          %303 = sbr.rel (%p301) target = $region28
        $region27: #{tpu_custom_call.1} parent=11 // pred_region
          %s305 = ssub.s32 512, 512
          %306 = vsyncadd [#allocation12], %s305
          %s307 = sshll.u32 [#allocation11], 4
          %s308 = int_to_ptr.vmem [resolvable:$true] %s307
          %313 = dma.hbm_to_vmem [thread:$0]  %s5, 512, %s308, [#allocation12], 128, 128, 8
        $region28: #{tpu_custom_call.1} parent=11 // pred_fallthru
          _
        // Predicated region
        $region29: #{tpu_custom_call.1} parent=11 // pred_check
          %p314 = pneg %p197
        $region30: #{tpu_custom_call.1} parent=11 // pred_check_branch
          %316 = sbr.rel (%p314) target = $region32
        $region31: #{tpu_custom_call.1} parent=11 // pred_region
          %s318 = ssub.s32 512, 512
          %319 = vsyncadd [#allocation12], %s318
          %s320 = sshll.u32 [#allocation13], 4
          %s321 = int_to_ptr.vmem [resolvable:$true] %s320
          %326 = dma.hbm_to_vmem [thread:$0]  %s6, 512, %s321, [#allocation12], 128, 128, 8
        $region32: #{tpu_custom_call.1} parent=11 // pred_fallthru
          _
        // Predicated region
        $region33: #{tpu_custom_call.1} parent=11 // pred_check
          %p327 = pneg %p218
        $region34: #{tpu_custom_call.1} parent=11 // pred_check_branch
          %329 = sbr.rel (%p327) target = $region36
        $region35: #{tpu_custom_call.1} parent=11 // pred_region
          %s331 = ssub.s32 1024, 1024
          %332 = vsyncadd [#allocation15], %s331
          %s333 = sshll.u32 [#allocation14], 4
          %s334 = int_to_ptr.vmem [resolvable:$true] %s333
          %339 = dma.hbm_to_vmem [thread:$0]  %s7, 1024, %s334, [#allocation15], 128, 128, 8
        $region36: #{tpu_custom_call.1} parent=11 // pred_fallthru
          _
        // Predicated region
        $region37: #{tpu_custom_call.1} parent=11 // pred_check
          %p340 = pneg %p239
        $region38: #{tpu_custom_call.1} parent=11 // pred_check_branch
          %342 = sbr.rel (%p340) target = $region40
        $region39: #{tpu_custom_call.1} parent=11 // pred_region
          _
        $region40: #{tpu_custom_call.1} parent=11 // pred_fallthru
          _
      $region12: #{tpu_custom_call.1} parent=5 // pred_fallthru
        _
      %p343 = scmp.lt.s32.totalorder %s26, 2
      // Predicated region
      $region41: #{tpu_custom_call.1} parent=5 // pred_check
        %p344 = pneg %p343
      $region42: #{tpu_custom_call.1} parent=5 // pred_check_branch
        %346 = sbr.rel (%p344) target = $region44
      $region43: #{tpu_custom_call.1} parent=5 // pred_region
        // Predicated region
        $region45: #{tpu_custom_call.1} parent=43 // pred_check
          %p347 = pneg %p60
        $region46: #{tpu_custom_call.1} parent=43 // pred_check_branch
          %349 = sbr.rel (%p347) target = $region48
        $region47: #{tpu_custom_call.1} parent=43 // pred_region
          %s350 = sand.u32 %s50, 1
          %s351 = scalar_lea.sflag [#allocation6], %s350
          %s352 = sand.u32 %s50, 1
          %s353 = smul.addr %s352, 8
          %s354 = scalar_lea.vmem [#allocation5], %s353
          %s356 = ssub.s32 128, 128
          %357 = vsyncadd %s351, %s356
          %s358 = sadd.s32 %s34, %s33
          %s359 = smul.addr %s358, 128
          %s360 = scalar_lea.hbm %s0, %s359
          %s362 = sshll.u32 %s354, 4
          %s363 = int_to_ptr.vmem [resolvable:$true] %s362
          %365 = dma.hbm_to_vmem [thread:$0]  %s360, 128, %s363, %s351
        $region48: #{tpu_custom_call.1} parent=43 // pred_fallthru
          _
        // Predicated region
        $region49: #{tpu_custom_call.1} parent=43 // pred_check
          %p366 = pneg %p86
        $region50: #{tpu_custom_call.1} parent=43 // pred_check_branch
          %368 = sbr.rel (%p366) target = $region52
        $region51: #{tpu_custom_call.1} parent=43 // pred_region
          %s369 = sand.u32 %s26, 1
          %s370 = scalar_lea.sflag [#allocation9], %s369
          %s371 = sand.u32 %s76, 1
          %s372 = smul.addr %s371, 8
          %s373 = scalar_lea.vmem [#allocation8], %s372
          %s375 = ssub.s32 128, 128
          %376 = vsyncadd %s370, %s375
          %s377 = smul.addr %s33, 128
          %s378 = scalar_lea.hbm %s1, %s377
          %s380 = sshll.u32 %s373, 4
          %s381 = int_to_ptr.vmem [resolvable:$true] %s380
          %383 = dma.hbm_to_vmem [thread:$0]  %s378, 128, %s381, %s370
        $region52: #{tpu_custom_call.1} parent=43 // pred_fallthru
          _
      $region44: #{tpu_custom_call.1} parent=5 // pred_fallthru
        _
      %p384 = scmp.le.s32.totalorder 1, %s26
      %p385 = scmp.lt.s32.totalorder %s26, 3
      %p386 = pnand %p384, %p385
      %p387 = pneg %p386
      // Predicated region
      $region53: #{tpu_custom_call.1} parent=5 // pred_check
        _
      $region54: #{tpu_custom_call.1} parent=5 // pred_check_branch
        %389 = sbr.rel (%p386) target = $region56
      $region55: #{tpu_custom_call.1} parent=5 // pred_region
        %s390 = ssub.s32 %s26, 1
        %s391 = sand.u32 %s53, 1
        %s392 = scalar_lea.sflag [#allocation6], %s391
        %s393 = sand.u32 %s53, 1
        %s394 = smul.addr %s393, 8
        %s395 = scalar_lea.vmem [#allocation5], %s394
        // Predicated region
        $region57: #{tpu_custom_call.1} parent=55 // pred_check
          %p396 = pneg %p66
        $region58: #{tpu_custom_call.1} parent=55 // pred_check_branch
          %398 = sbr.rel (%p396) target = $region60
        $region59: #{tpu_custom_call.1} parent=55 // pred_region
          %399 = dma.done %s392, 128
        $region60: #{tpu_custom_call.1} parent=55 // pred_fallthru
          _
        %s400 = sand.u32 %s31, 1
        %s401 = scalar_lea.sflag [#allocation9], %s400
        %s402 = sand.u32 %s79, 1
        %s403 = smul.addr %s402, 8
        %s404 = scalar_lea.vmem [#allocation8], %s403
        // Predicated region
        $region61: #{tpu_custom_call.1} parent=55 // pred_check
          %p405 = pneg %p92
        $region62: #{tpu_custom_call.1} parent=55 // pred_check_branch
          %407 = sbr.rel (%p405) target = $region64
        $region63: #{tpu_custom_call.1} parent=55 // pred_region
          %408 = dma.done %s401, 128
        $region64: #{tpu_custom_call.1} parent=55 // pred_fallthru
          _
        // Predicated region
        $region65: #{tpu_custom_call.1} parent=55 // pred_check
          %p409 = pneg %p155
        $region66: #{tpu_custom_call.1} parent=55 // pred_check_branch
          %411 = sbr.rel (%p409) target = $region68
        $region67: #{tpu_custom_call.1} parent=55 // pred_region
          %412 = dma.done [#allocation9], 512
        $region68: #{tpu_custom_call.1} parent=55 // pred_fallthru
          _
        // Predicated region
        $region69: #{tpu_custom_call.1} parent=55 // pred_check
          %p413 = pneg %p176
        $region70: #{tpu_custom_call.1} parent=55 // pred_check_branch
          %415 = sbr.rel (%p413) target = $region72
        $region71: #{tpu_custom_call.1} parent=55 // pred_region
          %416 = dma.done [#allocation12], 512
        $region72: #{tpu_custom_call.1} parent=55 // pred_fallthru
          _
        // Predicated region
        $region73: #{tpu_custom_call.1} parent=55 // pred_check
          %p417 = pneg %p197
        $region74: #{tpu_custom_call.1} parent=55 // pred_check_branch
          %419 = sbr.rel (%p417) target = $region76
        $region75: #{tpu_custom_call.1} parent=55 // pred_region
          %420 = dma.done [#allocation12], 512
        $region76: #{tpu_custom_call.1} parent=55 // pred_fallthru
          _
        // Predicated region
        $region77: #{tpu_custom_call.1} parent=55 // pred_check
          %p421 = pneg %p218
        $region78: #{tpu_custom_call.1} parent=55 // pred_check_branch
          %423 = sbr.rel (%p421) target = $region80
        $region79: #{tpu_custom_call.1} parent=55 // pred_region
          %424 = dma.done [#allocation15], 1024
        $region80: #{tpu_custom_call.1} parent=55 // pred_fallthru
          _
        %s425 = sand.u32 %s53, 1
        %s426 = scalar_lea.sflag [#allocation6], %s425
        %s427 = sand.u32 %s53, 1
        %s428 = smul.addr %s427, 8
        %s429 = scalar_lea.vmem [#allocation5], %s428
        %p430 = pneg %p66
        %p431 = pneg %p63
        %s432 = sand.u32 %s31, 1
        %s433 = scalar_lea.sflag [#allocation9], %s432
        %s434 = sand.u32 %s79, 1
        %s435 = smul.addr %s434, 8
        %s436 = scalar_lea.vmem [#allocation8], %s435
        %p437 = pneg %p92
        %p438 = pneg %p89
        %p439 = pneg %p113
        %p440 = pneg %p110
        %p441 = pneg %p134
        %p442 = pneg %p131
        %p443 = pneg %p155
        %p444 = pneg %p152
        %p445 = pneg %p176
        %p446 = pneg %p173
        %p447 = pneg %p197
        %p448 = pneg %p194
        %p449 = pneg %p218
        %p450 = pneg %p215
        %p451 = pneg %p239
        %p452 = pneg %p236
        %p453 = pneg %p267
        %p454 = pneg %p264
        %s455 = sand.u32 %s254, 1
        %s456 = scalar_lea.sflag [#allocation7], %s455
        %s457 = sand.u32 %s254, 1
        %s458 = smul.addr %s457, 8
        %s459 = scalar_lea.vmem [#allocation16], %s458
        %v460 = vld [vmem:[%s2] sm:$0x1]
        %v461 = vld [vmem:[%s3] sm:$0x1]
        %p462 = scmp.eq.s32.totalorder %s36, 0
        // Predicated region
        $region81: #{tpu_custom_call.1} parent=55 // pred_check
          %p463 = pneg %p462
        $region82: #{tpu_custom_call.1} parent=55 // pred_check_branch
          %465 = sbr.rel (%p463) target = $region84
        $region83: #{tpu_custom_call.1} parent=55 // pred_region
          %v466 = vld [vmem:[%s404] sm:$0xff]
          %vm467 = vcmask 261120
          %v468 = vsel %vm467, %v466, 0.0
          %469 = vadd.xlane.f32.xlu0 %v468
          %v470 = vpop.xlane.xlu0 %469
          %v471 = vrcp.pop 32.0
          %v472 = vmul.f32 %v470, %v471
          %v473 = vmul.f32 %v466, %v466
          %v474 = vsel %vm467, %v473, 0.0
          %475 = vadd.xlane.f32.xlu0 %v474
          %v476 = vpop.xlane.xlu0 %475
          %v477 = vmul.f32 %v476, %v471
          %v478 = vmul.f32 %v472, %v472
          %v479 = vsub.f32 %v477, %v478
          %v480 = vadd.f32 %v479, 1e-05
          %v481 = vrsqrt.pop %v480
          %v482 = vsub.f32 %v466, %v472
          %v483 = vmul.f32 %v482, %v481
          %v485 = vlaneseq
          %v486 = vshrl.u32 %v485, 7
          %v487 = vsub.s32 0, %v486
          %v488 = vrot.slane %v460, %v487
          %v490 = vmul.f32 %v483, %v488
          %v492 = vlaneseq
          %v493 = vshrl.u32 %v492, 7
          %v494 = vsub.s32 0, %v493
          %v495 = vrot.slane %v461, %v494
          %v497 = vadd.f32 %v490, %v495
          %v498 = vld [vmem:[#allocation11] sm:$0xff]
          %v499 = vld [vmem:[#allocation11 + $0x8] sm:$0xff]
          %v500 = vld [vmem:[#allocation11 + $0x10] sm:$0xff]
          %v501 = vld [vmem:[#allocation11 + $0x18] sm:$0xff]
          %v503 = vsel %vm467, %v497, 0
          %505 = vmatprep.subr.mxu0 0.0
          %506 = vmatpush1.msra.mxu0 %v498
          %507 = vmatprep.subr.mxu0 0.0
          %508 = vmatpush1.msra.mxu0 %v499
          %509 = vmatprep.subr.mxu0 0.0
          %510 = vmatpush1.msra.mxu0 %v500
          %511 = vmatprep.subr.mxu0 0.0
          %512 = vmatpush1.msra.mxu0 %v501
          %513 = vmatprep.subr.mxu0 0.0
          %514 = vmatpush1.msra.mxu0 0.0
          %515 = vmatprep.subr.mxu0 0.0
          %516 = vmatpush1.msra.mxu0 0.0
          %517 = vmatprep.subr.mxu0 0.0
          %518 = vmatpush1.msra.mxu0 0.0
          %519 = vmatprep.subr.mxu0 0.0
          %520 = vmatpush1.msra.mxu0 0.0
          %521 = vmatprep.subr.mxu0 0.0
          %522 = vmatpush1.msra.mxu0 0.0
          %523 = vmatprep.subr.mxu0 0.0
          %524 = vmatpush1.msra.mxu0 0.0
          %525 = vmatprep.subr.mxu0 0.0
          %526 = vmatpush1.msra.mxu0 0.0
          %527 = vmatprep.subr.mxu0 0.0
          %528 = vmatpush1.msra.mxu0 0.0
          %529 = vmatprep.subr.mxu0 0.0
          %530 = vmatpush1.msra.mxu0 0.0
          %531 = vmatprep.subr.mxu0 0.0
          %532 = vmatpush1.msra.mxu0 0.0
          %533 = vmatprep.subr.mxu0 0.0
          %534 = vmatpush1.msra.mxu0 0.0
          %535 = vmatprep.subr.mxu0 0.0
          %536 = vmatpush1.msra.mxu0 0.0
          %537 = vmatprep.subr.mxu0 0.0
          %538 = vmatpush1.msra.mxu0 0.0
          %539 = vmatprep.subr.mxu0 0.0
          %540 = vmatpush1.msra.mxu0 0.0
          %541 = vmatprep.subr.mxu0 0.0
          %542 = vmatpush1.msra.mxu0 0.0
          %543 = vmatprep.subr.mxu0 0.0
          %544 = vmatpush1.msra.mxu0 0.0
          %545 = vmatprep.subr.mxu0 0.0
          %546 = vmatpush1.msra.mxu0 0.0
          %547 = vmatprep.subr.mxu0 0.0
          %548 = vmatpush1.msra.mxu0 0.0
          %549 = vmatprep.subr.mxu0 0.0
          %550 = vmatpush1.msra.mxu0 0.0
          %551 = vmatprep.subr.mxu0 0.0
          %552 = vmatpush1.msra.mxu0 0.0
          %553 = vmatprep.subr.mxu0 0.0
          %554 = vmatpush1.msra.mxu0 0.0
          %555 = vmatprep.subr.mxu0 0.0
          %556 = vmatpush1.msra.mxu0 0.0
          %557 = vmatprep.subr.mxu0 0.0
          %558 = vmatpush1.msra.mxu0 0.0
          %559 = vmatprep.subr.mxu0 0.0
          %560 = vmatpush1.msra.mxu0 0.0
          %561 = vmatprep.subr.mxu0 0.0
          %562 = vmatpush1.msra.mxu0 0.0
          %563 = vmatprep.subr.mxu0 0.0
          %564 = vmatpush1.msra.mxu0 0.0
          %565 = vmatprep.subr.mxu0 0.0
          %566 = vmatpush1.msra.mxu0 0.0
          %567 = vmatprep.subr.mxu0 0.0
          %568 = vmatpush1.msra.mxu0 0.0
          %569 = vmatprep.mubr.f32.mxu0 0.0
          %570 = vmatmul.mubr.f32.gmra.mrb[0].mxu0 %v503
          %v571 = vpop.f32.mrb[0].mxu0
          %v572 = vadd.f32 0.0, %v571
          %v573 = vpop.f32.mrb[0].mxu0
          %574 = vdwg.mxu0
          %v575 = vld [vmem:[#allocation13] sm:$0xff]
          %v576 = vld [vmem:[#allocation13 + $0x8] sm:$0xff]
          %v577 = vld [vmem:[#allocation13 + $0x10] sm:$0xff]
          %v578 = vld [vmem:[#allocation13 + $0x18] sm:$0xff]
          %579 = vmatprep.subr.mxu0 0.0
          %580 = vmatpush1.msra.mxu0 %v575
          %581 = vmatprep.subr.mxu0 0.0
          %582 = vmatpush1.msra.mxu0 %v576
          %583 = vmatprep.subr.mxu0 0.0
          %584 = vmatpush1.msra.mxu0 %v577
          %585 = vmatprep.subr.mxu0 0.0
          %586 = vmatpush1.msra.mxu0 %v578
          %587 = vmatprep.subr.mxu0 0.0
          %588 = vmatpush1.msra.mxu0 0.0
          %589 = vmatprep.subr.mxu0 0.0
          %590 = vmatpush1.msra.mxu0 0.0
          %591 = vmatprep.subr.mxu0 0.0
          %592 = vmatpush1.msra.mxu0 0.0
          %593 = vmatprep.subr.mxu0 0.0
          %594 = vmatpush1.msra.mxu0 0.0
          %595 = vmatprep.subr.mxu0 0.0
          %596 = vmatpush1.msra.mxu0 0.0
          %597 = vmatprep.subr.mxu0 0.0
          %598 = vmatpush1.msra.mxu0 0.0
          %599 = vmatprep.subr.mxu0 0.0
          %600 = vmatpush1.msra.mxu0 0.0
          %601 = vmatprep.subr.mxu0 0.0
          %602 = vmatpush1.msra.mxu0 0.0
          %603 = vmatprep.subr.mxu0 0.0
          %604 = vmatpush1.msra.mxu0 0.0
          %605 = vmatprep.subr.mxu0 0.0
          %606 = vmatpush1.msra.mxu0 0.0
          %607 = vmatprep.subr.mxu0 0.0
          %608 = vmatpush1.msra.mxu0 0.0
          %609 = vmatprep.subr.mxu0 0.0
          %610 = vmatpush1.msra.mxu0 0.0
          %611 = vmatprep.subr.mxu0 0.0
          %612 = vmatpush1.msra.mxu0 0.0
          %613 = vmatprep.subr.mxu0 0.0
          %614 = vmatpush1.msra.mxu0 0.0
          %615 = vmatprep.subr.mxu0 0.0
          %616 = vmatpush1.msra.mxu0 0.0
          %617 = vmatprep.subr.mxu0 0.0
          %618 = vmatpush1.msra.mxu0 0.0
          %619 = vmatprep.subr.mxu0 0.0
          %620 = vmatpush1.msra.mxu0 0.0
          %621 = vmatprep.subr.mxu0 0.0
          %622 = vmatpush1.msra.mxu0 0.0
          %623 = vmatprep.subr.mxu0 0.0
          %624 = vmatpush1.msra.mxu0 0.0
          %625 = vmatprep.subr.mxu0 0.0
          %626 = vmatpush1.msra.mxu0 0.0
          %627 = vmatprep.subr.mxu0 0.0
          %628 = vmatpush1.msra.mxu0 0.0
          %629 = vmatprep.subr.mxu0 0.0
          %630 = vmatpush1.msra.mxu0 0.0
          %631 = vmatprep.subr.mxu0 0.0
          %632 = vmatpush1.msra.mxu0 0.0
          %633 = vmatprep.subr.mxu0 0.0
          %634 = vmatpush1.msra.mxu0 0.0
          %635 = vmatprep.subr.mxu0 0.0
          %636 = vmatpush1.msra.mxu0 0.0
          %637 = vmatprep.subr.mxu0 0.0
          %638 = vmatpush1.msra.mxu0 0.0
          %639 = vmatprep.subr.mxu0 0.0
          %640 = vmatpush1.msra.mxu0 0.0
          %641 = vmatprep.subr.mxu0 0.0
          %642 = vmatpush1.msra.mxu0 0.0
          %643 = vmatprep.mubr.f32.mxu0 0.0
          %644 = vmatmul.mubr.f32.gmra.mrb[0].mxu0 %v503
          %v645 = vpop.f32.mrb[0].mxu0
          %v646 = vadd.f32 0.0, %v645
          %v647 = vpop.f32.mrb[0].mxu0
          %648 = vdwg.mxu0
          %vm649 = vcmask 130048
          %650 = vst.msk [vmem:[#allocation3] sm:$0xff] %vm649, %v572
          %651 = vst.msk [vmem:[#allocation4] sm:$0xff] %vm649, %v646
          %653 = vrot.lane.b32.xlu0 %v572, 112
          %v654 = vpop.permute.xlu0 %653
          %s656 = scalar_lea.vmem [#allocation3], 8
          %657 = vst.msk [vmem:[%s656] sm:$0xff] %vm649, %v654
          %659 = vrot.lane.b32.xlu0 %v646, 112
          %v660 = vpop.permute.xlu0 %659
          %s662 = scalar_lea.vmem [#allocation4], 8
          %663 = vst.msk [vmem:[%s662] sm:$0xff] %vm649, %v660
          %664 = vrot.lane.b32.xlu0 %v572, 96
          %v665 = vpop.permute.xlu0 %664
          %s667 = scalar_lea.vmem [#allocation3], 16
          %668 = vst.msk [vmem:[%s667] sm:$0xff] %vm649, %v665
          %669 = vrot.lane.b32.xlu0 %v646, 96
          %v670 = vpop.permute.xlu0 %669
          %s672 = scalar_lea.vmem [#allocation4], 16
          %673 = vst.msk [vmem:[%s672] sm:$0xff] %vm649, %v670
          %674 = vrot.lane.b32.xlu0 %v572, 80
          %v675 = vpop.permute.xlu0 %674
          %s677 = scalar_lea.vmem [#allocation3], 24
          %678 = vst.msk [vmem:[%s677] sm:$0xff] %vm649, %v675
          %679 = vrot.lane.b32.xlu0 %v646, 80
          %v680 = vpop.permute.xlu0 %679
          %s682 = scalar_lea.vmem [#allocation4], 24
          %683 = vst.msk [vmem:[%s682] sm:$0xff] %vm649, %v680
        $region84: #{tpu_custom_call.1} parent=55 // pred_fallthru
          _
        %v684 = vld [vmem:[%s395] sm:$0xff]
        %vm685 = vcmask 261120
        %v686 = vsel %vm685, %v684, 0.0
        %687 = vadd.xlane.f32.xlu0 %v686
        %v688 = vpop.xlane.xlu0 %687
        %v689 = vrcp.pop 32.0
        %v690 = vmul.f32 %v688, %v689
        %v691 = vmul.f32 %v684, %v684
        %v692 = vsel %vm685, %v691, 0.0
        %693 = vadd.xlane.f32.xlu0 %v692
        %v694 = vpop.xlane.xlu0 %693
        %v695 = vmul.f32 %v694, %v689
        %v696 = vmul.f32 %v690, %v690
        %v697 = vsub.f32 %v695, %v696
        %v698 = vadd.f32 %v697, 1e-05
        %v699 = vrsqrt.pop %v698
        %v700 = vsub.f32 %v684, %v690
        %v701 = vmul.f32 %v700, %v699
        %v703 = vlaneseq
        %v704 = vshrl.u32 %v703, 7
        %v705 = vsub.s32 0, %v704
        %v706 = vrot.slane %v460, %v705
        %v708 = vmul.f32 %v701, %v706
        %v710 = vlaneseq
        %v711 = vshrl.u32 %v710, 7
        %v712 = vsub.s32 0, %v711
        %v713 = vrot.slane %v461, %v712
        %v715 = vadd.f32 %v708, %v713
        %v716 = vld [vmem:[#allocation10] sm:$0xff]
        %v717 = vld [vmem:[#allocation10 + $0x8] sm:$0xff]
        %v718 = vld [vmem:[#allocation10 + $0x10] sm:$0xff]
        %v719 = vld [vmem:[#allocation10 + $0x18] sm:$0xff]
        %v721 = vsel %vm685, %v715, 0
        %723 = vmatprep.subr.mxu0 0.0
        %724 = vmatpush1.msra.mxu0 %v716
        %725 = vmatprep.subr.mxu0 0.0
        %726 = vmatpush1.msra.mxu0 %v717
        %727 = vmatprep.subr.mxu0 0.0
        %728 = vmatpush1.msra.mxu0 %v718
        %729 = vmatprep.subr.mxu0 0.0
        %730 = vmatpush1.msra.mxu0 %v719
        %731 = vmatprep.subr.mxu0 0.0
        %732 = vmatpush1.msra.mxu0 0.0
        %733 = vmatprep.subr.mxu0 0.0
        %734 = vmatpush1.msra.mxu0 0.0
        %735 = vmatprep.subr.mxu0 0.0
        %736 = vmatpush1.msra.mxu0 0.0
        %737 = vmatprep.subr.mxu0 0.0
        %738 = vmatpush1.msra.mxu0 0.0
        %739 = vmatprep.subr.mxu0 0.0
        %740 = vmatpush1.msra.mxu0 0.0
        %741 = vmatprep.subr.mxu0 0.0
        %742 = vmatpush1.msra.mxu0 0.0
        %743 = vmatprep.subr.mxu0 0.0
        %744 = vmatpush1.msra.mxu0 0.0
        %745 = vmatprep.subr.mxu0 0.0
        %746 = vmatpush1.msra.mxu0 0.0
        %747 = vmatprep.subr.mxu0 0.0
        %748 = vmatpush1.msra.mxu0 0.0
        %749 = vmatprep.subr.mxu0 0.0
        %750 = vmatpush1.msra.mxu0 0.0
        %751 = vmatprep.subr.mxu0 0.0
        %752 = vmatpush1.msra.mxu0 0.0
        %753 = vmatprep.subr.mxu0 0.0
        %754 = vmatpush1.msra.mxu0 0.0
        %755 = vmatprep.subr.mxu0 0.0
        %756 = vmatpush1.msra.mxu0 0.0
        %757 = vmatprep.subr.mxu0 0.0
        %758 = vmatpush1.msra.mxu0 0.0
        %759 = vmatprep.subr.mxu0 0.0
        %760 = vmatpush1.msra.mxu0 0.0
        %761 = vmatprep.subr.mxu0 0.0
        %762 = vmatpush1.msra.mxu0 0.0
        %763 = vmatprep.subr.mxu0 0.0
        %764 = vmatpush1.msra.mxu0 0.0
        %765 = vmatprep.subr.mxu0 0.0
        %766 = vmatpush1.msra.mxu0 0.0
        %767 = vmatprep.subr.mxu0 0.0
        %768 = vmatpush1.msra.mxu0 0.0
        %769 = vmatprep.subr.mxu0 0.0
        %770 = vmatpush1.msra.mxu0 0.0
        %771 = vmatprep.subr.mxu0 0.0
        %772 = vmatpush1.msra.mxu0 0.0
        %773 = vmatprep.subr.mxu0 0.0
        %774 = vmatpush1.msra.mxu0 0.0
        %775 = vmatprep.subr.mxu0 0.0
        %776 = vmatpush1.msra.mxu0 0.0
        %777 = vmatprep.subr.mxu0 0.0
        %778 = vmatpush1.msra.mxu0 0.0
        %779 = vmatprep.subr.mxu0 0.0
        %780 = vmatpush1.msra.mxu0 0.0
        %781 = vmatprep.subr.mxu0 0.0
        %782 = vmatpush1.msra.mxu0 0.0
        %783 = vmatprep.subr.mxu0 0.0
        %784 = vmatpush1.msra.mxu0 0.0
        %785 = vmatprep.subr.mxu0 0.0
        %786 = vmatpush1.msra.mxu0 0.0
        %787 = vmatprep.mubr.f32.mxu0 0.0
        %788 = vmatmul.mubr.f32.gmra.mrb[0].mxu0 %v721
        %v789 = vpop.f32.mrb[0].mxu0
        %v790 = vadd.f32 0.0, %v789
        %v791 = vpop.f32.mrb[0].mxu0
        %792 = vdwg.mxu0
        %vm793 = vcmask 130048
        %794 = vst.msk [vmem:[#allocation2] sm:$0xff] %vm793, %v790
        %796 = vrot.lane.b32.xlu0 %v790, 112
        %v797 = vpop.permute.xlu0 %796
        %s799 = scalar_lea.vmem [#allocation2], 8
        %800 = vst.msk [vmem:[%s799] sm:$0xff] %vm793, %v797
        %801 = vrot.lane.b32.xlu0 %v790, 96
        %v802 = vpop.permute.xlu0 %801
        %s804 = scalar_lea.vmem [#allocation2], 16
        %805 = vst.msk [vmem:[%s804] sm:$0xff] %vm793, %v802
        %806 = vrot.lane.b32.xlu0 %v790, 80
        %v807 = vpop.permute.xlu0 %806
        %s809 = scalar_lea.vmem [#allocation2], 24
        %810 = vst.msk [vmem:[%s809] sm:$0xff] %vm793, %v807
        loop: start=0, step=1, limit=4
        $region85: #{tpu_custom_call.1} parent=55 // loop_pre_header
          _
        $region86: #{tpu_custom_call.1} parent=55 // loop_header
          %s812 = sphi 0, %s816
          %p813 = scmp.ge.s32.totalorder %s812, 4
          %v817 = vphi 0.0, %v1063
        $region87: #{tpu_custom_call.1} parent=55 // loop_header_branch
          %815 = sbr.rel (%p813) target = $region91
        $region88: #{tpu_custom_call.1} parent=55 // loop_body
          %s818 = smul.u32 %s812, 8
          %s819 = scalar_lea.vmem [#allocation2], %s818
          %v820 = vld [vmem:[%s819] sm:$0xff]
          %s821 = scalar_lea.vmem [#allocation3], %s818
          %v822 = vld [vmem:[%s821] sm:$0xff]
          %s823 = scalar_lea.vmem [#allocation4], %s818
          %v824 = vld [vmem:[%s823] sm:$0xff]
          %v826 = vsel %vm793, %v820, 0
          %v829 = vsel %vm793, %v822, 0
          %831 = vmatprep.subr.mxu0 0.0
          %832 = vmatpush1.xpose.msra.mxu0 %v829
          %833 = vmatprep.subr.mxu0 0.0
          %834 = vmatpush1.xpose.msra.mxu0 0.0
          %835 = vmatprep.subr.mxu0 0.0
          %836 = vmatpush1.xpose.msra.mxu0 0.0
          %837 = vmatprep.subr.mxu0 0.0
          %838 = vmatpush1.xpose.msra.mxu0 0.0
          %839 = vmatprep.subr.mxu0 0.0
          %840 = vmatpush1.xpose.msra.mxu0 0.0
          %841 = vmatprep.subr.mxu0 0.0
          %842 = vmatpush1.xpose.msra.mxu0 0.0
          %843 = vmatprep.subr.mxu0 0.0
          %844 = vmatpush1.xpose.msra.mxu0 0.0
          %845 = vmatprep.subr.mxu0 0.0
          %846 = vmatpush1.xpose.msra.mxu0 0.0
          %847 = vmatprep.subr.mxu0 0.0
          %848 = vmatpush1.xpose.msra.mxu0 0.0
          %849 = vmatprep.subr.mxu0 0.0
          %850 = vmatpush1.xpose.msra.mxu0 0.0
          %851 = vmatprep.subr.mxu0 0.0
          %852 = vmatpush1.xpose.msra.mxu0 0.0
          %853 = vmatprep.subr.mxu0 0.0
          %854 = vmatpush1.xpose.msra.mxu0 0.0
          %855 = vmatprep.subr.mxu0 0.0
          %856 = vmatpush1.xpose.msra.mxu0 0.0
          %857 = vmatprep.subr.mxu0 0.0
          %858 = vmatpush1.xpose.msra.mxu0 0.0
          %859 = vmatprep.subr.mxu0 0.0
          %860 = vmatpush1.xpose.msra.mxu0 0.0
          %861 = vmatprep.subr.mxu0 0.0
          %862 = vmatpush1.xpose.msra.mxu0 0.0
          %863 = vmatprep.subr.mxu0 0.0
          %864 = vmatpush1.xpose.msra.mxu0 0.0
          %865 = vmatprep.subr.mxu0 0.0
          %866 = vmatpush1.xpose.msra.mxu0 0.0
          %867 = vmatprep.subr.mxu0 0.0
          %868 = vmatpush1.xpose.msra.mxu0 0.0
          %869 = vmatprep.subr.mxu0 0.0
          %870 = vmatpush1.xpose.msra.mxu0 0.0
          %871 = vmatprep.subr.mxu0 0.0
          %872 = vmatpush1.xpose.msra.mxu0 0.0
          %873 = vmatprep.subr.mxu0 0.0
          %874 = vmatpush1.xpose.msra.mxu0 0.0
          %875 = vmatprep.subr.mxu0 0.0
          %876 = vmatpush1.xpose.msra.mxu0 0.0
          %877 = vmatprep.subr.mxu0 0.0
          %878 = vmatpush1.xpose.msra.mxu0 0.0
          %879 = vmatprep.subr.mxu0 0.0
          %880 = vmatpush1.xpose.msra.mxu0 0.0
          %881 = vmatprep.subr.mxu0 0.0
          %882 = vmatpush1.xpose.msra.mxu0 0.0
          %883 = vmatprep.subr.mxu0 0.0
          %884 = vmatpush1.xpose.msra.mxu0 0.0
          %885 = vmatprep.subr.mxu0 0.0
          %886 = vmatpush1.xpose.msra.mxu0 0.0
          %887 = vmatprep.subr.mxu0 0.0
          %888 = vmatpush1.xpose.msra.mxu0 0.0
          %889 = vmatprep.subr.mxu0 0.0
          %890 = vmatpush1.xpose.msra.mxu0 0.0
          %891 = vmatprep.subr.mxu0 0.0
          %892 = vmatpush1.xpose.msra.mxu0 0.0
          %893 = vmatprep.subr.mxu0 0.0
          %894 = vmatpush1.xpose.msra.mxu0 0.0
          %895 = vmatprep.mubr.f32.mxu0 0.0
          %896 = vmatmul.mubr.f32.gmra.mrb[0].mxu0 %v826
          %v897 = vpop.f32.mrb[0].mxu0
          %v898 = vadd.f32 0.0, %v897
          %v899 = vpop.f32.mrb[0].mxu0
          %900 = vdwg.mxu0
          %vm901 = vcmask 64512
          %v902 = vsel %vm901, %v898, -inf
          %903 = vmax.xlane.f32.xlu0 %v902
          %v904 = vpop.xlane.xlu0 %903
          %v905 = vsub.f32 %v898, %v904
          %v906 = vmul.f32 %v905, 1.442695
          %v907 = vpow.pop %v906
          %v908 = vsel %vm901, %v907, 0.0
          %909 = vadd.xlane.f32.xlu0 %v908
          %v910 = vpop.xlane.xlu0 %909
          %v912 = vsel %vm901, %v907, 0
          %914 = vmatprep.subr.mxu0 0.0
          %915 = vmatpush1.msra.mxu0 %v824
          %916 = vmatprep.subr.mxu0 0.0
          %917 = vmatpush1.msra.mxu0 0.0
          %918 = vmatprep.subr.mxu0 0.0
          %919 = vmatpush1.msra.mxu0 0.0
          %920 = vmatprep.subr.mxu0 0.0
          %921 = vmatpush1.msra.mxu0 0.0
          %922 = vmatprep.subr.mxu0 0.0
          %923 = vmatpush1.msra.mxu0 0.0
          %924 = vmatprep.subr.mxu0 0.0
          %925 = vmatpush1.msra.mxu0 0.0
          %926 = vmatprep.subr.mxu0 0.0
          %927 = vmatpush1.msra.mxu0 0.0
          %928 = vmatprep.subr.mxu0 0.0
          %929 = vmatpush1.msra.mxu0 0.0
          %930 = vmatprep.subr.mxu0 0.0
          %931 = vmatpush1.msra.mxu0 0.0
          %932 = vmatprep.subr.mxu0 0.0
          %933 = vmatpush1.msra.mxu0 0.0
          %934 = vmatprep.subr.mxu0 0.0
          %935 = vmatpush1.msra.mxu0 0.0
          %936 = vmatprep.subr.mxu0 0.0
          %937 = vmatpush1.msra.mxu0 0.0
          %938 = vmatprep.subr.mxu0 0.0
          %939 = vmatpush1.msra.mxu0 0.0
          %940 = vmatprep.subr.mxu0 0.0
          %941 = vmatpush1.msra.mxu0 0.0
          %942 = vmatprep.subr.mxu0 0.0
          %943 = vmatpush1.msra.mxu0 0.0
          %944 = vmatprep.subr.mxu0 0.0
          %945 = vmatpush1.msra.mxu0 0.0
          %946 = vmatprep.subr.mxu0 0.0
          %947 = vmatpush1.msra.mxu0 0.0
          %948 = vmatprep.subr.mxu0 0.0
          %949 = vmatpush1.msra.mxu0 0.0
          %950 = vmatprep.subr.mxu0 0.0
          %951 = vmatpush1.msra.mxu0 0.0
          %952 = vmatprep.subr.mxu0 0.0
          %953 = vmatpush1.msra.mxu0 0.0
          %954 = vmatprep.subr.mxu0 0.0
          %955 = vmatpush1.msra.mxu0 0.0
          %956 = vmatprep.subr.mxu0 0.0
          %957 = vmatpush1.msra.mxu0 0.0
          %958 = vmatprep.subr.mxu0 0.0
          %959 = vmatpush1.msra.mxu0 0.0
          %960 = vmatprep.subr.mxu0 0.0
          %961 = vmatpush1.msra.mxu0 0.0
          %962 = vmatprep.subr.mxu0 0.0
          %963 = vmatpush1.msra.mxu0 0.0
          %964 = vmatprep.subr.mxu0 0.0
          %965 = vmatpush1.msra.mxu0 0.0
          %966 = vmatprep.subr.mxu0 0.0
          %967 = vmatpush1.msra.mxu0 0.0
          %968 = vmatprep.subr.mxu0 0.0
          %969 = vmatpush1.msra.mxu0 0.0
          %970 = vmatprep.subr.mxu0 0.0
          %971 = vmatpush1.msra.mxu0 0.0
          %972 = vmatprep.subr.mxu0 0.0
          %973 = vmatpush1.msra.mxu0 0.0
          %974 = vmatprep.subr.mxu0 0.0
          %975 = vmatpush1.msra.mxu0 0.0
          %976 = vmatprep.subr.mxu0 0.0
          %977 = vmatpush1.msra.mxu0 0.0
          %978 = vmatprep.mubr.f32.mxu0 0.0
          %979 = vmatmul.mubr.f32.gmra.mrb[0].mxu0 %v912
          %v980 = vpop.f32.mrb[0].mxu0
          %v981 = vadd.f32 0.0, %v980
          %v982 = vpop.f32.mrb[0].mxu0
          %983 = vdwg.mxu0
          %v984 = vrcp.pop %v910
          %v985 = vmul.f32 %v981, %v984
          %s986 = smul.u32 %s812, 16
          %s987 = scalar_lea.vmem [#allocation14], %s986
          %v988 = vld [vmem:[%s987] sm:$0xff]
          %v989 = vld [vmem:[%s987 + $0x8] sm:$0xff]
          %v991 = vsel %vm793, %v985, 0
          %993 = vmatprep.subr.mxu0 0.0
          %994 = vmatpush1.msra.mxu0 %v988
          %995 = vmatprep.subr.mxu0 0.0
          %996 = vmatpush1.msra.mxu0 %v989
          %997 = vmatprep.subr.mxu0 0.0
          %998 = vmatpush1.msra.mxu0 0.0
          %999 = vmatprep.subr.mxu0 0.0
          %1000 = vmatpush1.msra.mxu0 0.0
          %1001 = vmatprep.subr.mxu0 0.0
          %1002 = vmatpush1.msra.mxu0 0.0
          %1003 = vmatprep.subr.mxu0 0.0
          %1004 = vmatpush1.msra.mxu0 0.0
          %1005 = vmatprep.subr.mxu0 0.0
          %1006 = vmatpush1.msra.mxu0 0.0
          %1007 = vmatprep.subr.mxu0 0.0
          %1008 = vmatpush1.msra.mxu0 0.0
          %1009 = vmatprep.subr.mxu0 0.0
          %1010 = vmatpush1.msra.mxu0 0.0
          %1011 = vmatprep.subr.mxu0 0.0
          %1012 = vmatpush1.msra.mxu0 0.0
          %1013 = vmatprep.subr.mxu0 0.0
          %1014 = vmatpush1.msra.mxu0 0.0
          %1015 = vmatprep.subr.mxu0 0.0
          %1016 = vmatpush1.msra.mxu0 0.0
          %1017 = vmatprep.subr.mxu0 0.0
          %1018 = vmatpush1.msra.mxu0 0.0
          %1019 = vmatprep.subr.mxu0 0.0
          %1020 = vmatpush1.msra.mxu0 0.0
          %1021 = vmatprep.subr.mxu0 0.0
          %1022 = vmatpush1.msra.mxu0 0.0
          %1023 = vmatprep.subr.mxu0 0.0
          %1024 = vmatpush1.msra.mxu0 0.0
          %1025 = vmatprep.subr.mxu0 0.0
          %1026 = vmatpush1.msra.mxu0 0.0
          %1027 = vmatprep.subr.mxu0 0.0
          %1028 = vmatpush1.msra.mxu0 0.0
          %1029 = vmatprep.subr.mxu0 0.0
          %1030 = vmatpush1.msra.mxu0 0.0
          %1031 = vmatprep.subr.mxu0 0.0
          %1032 = vmatpush1.msra.mxu0 0.0
          %1033 = vmatprep.subr.mxu0 0.0
          %1034 = vmatpush1.msra.mxu0 0.0
          %1035 = vmatprep.subr.mxu0 0.0
          %1036 = vmatpush1.msra.mxu0 0.0
          %1037 = vmatprep.subr.mxu0 0.0
          %1038 = vmatpush1.msra.mxu0 0.0
          %1039 = vmatprep.subr.mxu0 0.0
          %1040 = vmatpush1.msra.mxu0 0.0
          %1041 = vmatprep.subr.mxu0 0.0
          %1042 = vmatpush1.msra.mxu0 0.0
          %1043 = vmatprep.subr.mxu0 0.0
          %1044 = vmatpush1.msra.mxu0 0.0
          %1045 = vmatprep.subr.mxu0 0.0
          %1046 = vmatpush1.msra.mxu0 0.0
          %1047 = vmatprep.subr.mxu0 0.0
          %1048 = vmatpush1.msra.mxu0 0.0
          %1049 = vmatprep.subr.mxu0 0.0
          %1050 = vmatpush1.msra.mxu0 0.0
          %1051 = vmatprep.subr.mxu0 0.0
          %1052 = vmatpush1.msra.mxu0 0.0
          %1053 = vmatprep.subr.mxu0 0.0
          %1054 = vmatpush1.msra.mxu0 0.0
          %1055 = vmatprep.subr.mxu0 0.0
          %1056 = vmatpush1.msra.mxu0 0.0
          %1057 = vmatprep.mubr.f32.mxu0 0.0
          %1058 = vmatmul.mubr.f32.gmra.mrb[0].mxu0 %v991
          %v1059 = vpop.f32.mrb[0].mxu0
          %v1060 = vadd.f32 0.0, %v1059
          %v1061 = vpop.f32.mrb[0].mxu0
          %1062 = vdwg.mxu0
          %v1063 = vadd.f32 %v817, %v1060
        $region89: #{tpu_custom_call.1} parent=55 // loop_footer
          %s816 = sadd.s32 1, %s812
        $region90: #{tpu_custom_call.1} parent=55 // loop_footer_branch
          %811 = sbr.rel target = $region86
        $region91: #{tpu_custom_call.1} parent=55 // loop_exit
          _
        %v1064 = vld [vmem:[%s8] sm:$0x1]
        %v1066 = vlaneseq
        %v1067 = vshrl.u32 %v1066, 7
        %v1068 = vsub.s32 0, %v1067
        %v1069 = vrot.slane %v1064, %v1068
        %v1071 = vadd.f32 %v817, %v1069
        %1072 = vst.msk [vmem:[%s459] sm:$0xff] %vm685, %v1071
        %s1073 = sand.u32 %s254, 1
        %s1074 = scalar_lea.sflag [#allocation7], %s1073
        %s1075 = sand.u32 %s254, 1
        %s1076 = smul.addr %s1075, 8
        %s1077 = scalar_lea.vmem [#allocation16], %s1076
        // Predicated region
        $region92: #{tpu_custom_call.1} parent=55 // pred_check
          %p1078 = pneg %p264
        $region93: #{tpu_custom_call.1} parent=55 // pred_check_branch
          %1080 = sbr.rel (%p1078) target = $region95
        $region94: #{tpu_custom_call.1} parent=55 // pred_region
          %s1082 = ssub.s32 128, 128
          %1083 = vsyncadd %s1074, %s1082
          %s1084 = sadd.s32 %s36, %s35
          %s1085 = smul.addr %s1084, 128
          %s1086 = scalar_lea.hbm %s9, %s1085
          %s1088 = sshll.u32 %s1077, 4
          %s1089 = int_to_ptr.vmem [resolvable:$true] %s1088
          %1091 = dma.vmem_to_hbm [thread:$0]  %s1089, 128, %s1086, %s1074
        $region95: #{tpu_custom_call.1} parent=55 // pred_fallthru
          _
      $region56: #{tpu_custom_call.1} parent=5 // pred_fallthru
        _
      %p1092 = scmp.le.s32.totalorder 2, %s26
      // Predicated region
      $region96: #{tpu_custom_call.1} parent=5 // pred_check
        %p1093 = pneg %p1092
      $region97: #{tpu_custom_call.1} parent=5 // pred_check_branch
        %1095 = sbr.rel (%p1093) target = $region99
      $region98: #{tpu_custom_call.1} parent=5 // pred_region
        %s1096 = ssub.s32 %s26, 2
        // Predicated region
        $region100: #{tpu_custom_call.1} parent=98 // pred_check
          %p1097 = pneg %p270
        $region101: #{tpu_custom_call.1} parent=98 // pred_check_branch
          %1099 = sbr.rel (%p1097) target = $region103
        $region102: #{tpu_custom_call.1} parent=98 // pred_region
          %s1100 = sand.u32 %s255, 1
          %s1101 = scalar_lea.sflag [#allocation7], %s1100
          %s1102 = sand.u32 %s255, 1
          %s1103 = smul.addr %s1102, 8
          %s1104 = scalar_lea.vmem [#allocation16], %s1103
          %1105 = dma.done %s1101, 128
        $region103: #{tpu_custom_call.1} parent=98 // pred_fallthru
          _
      $region99: #{tpu_custom_call.1} parent=5 // pred_fallthru
        _
    $region6: #{tpu_custom_call.1} parent=1 // loop_footer
      %s30 = sadd.s32 1, %s26
    $region7: #{tpu_custom_call.1} parent=1 // loop_footer_branch
      %25 = sbr.rel target = $region3
    $region8: #{tpu_custom_call.1} parent=1 // loop_exit
      _
    %1106 = vsyncpa [#allocation6], 1
    %s1107 = scalar_lea.sflag [#allocation6], 1
    %1108 = vsyncpa %s1107, 1
    %1109 = vsyncpa [#allocation9], 1
    %s1110 = scalar_lea.sflag [#allocation9], 1
    %1111 = vsyncpa %s1110, 1
    %1112 = vsyncpa [#allocation12], 1
    %1113 = vsyncpa [#allocation15], 1
    %1114 = vsyncpa [#allocation7], 1
    %s1115 = scalar_lea.sflag [#allocation7], 1
    %1116 = vsyncpa %s1115, 1

// kernel: tpu_custom_call.1
$region0: #{tpu_custom_call.1}
  #allocation0 [shape = 'u32[]', space=smem, size = 0x4, offset = 0x4, fixed_abs, tag = 'smem constant byte address 0x4 - core index']
  #allocation1 [shape = 'u32[144,128]{1,0:T(1,128)}', space=vmem, size = 0x12000, scoped, tag = 'internal scratch']
  #allocation2 [shape = 'f32[4,8,16]{2,1,0:T(8,128)}', space=vmem, size = 0x4000, scoped, tag = 'scratch operand']
  #allocation3 [shape = 'f32[4,8,16]{2,1,0:T(8,128)}', space=vmem, size = 0x4000, scoped, tag = 'scratch operand']
  #allocation4 [shape = 'f32[4,8,16]{2,1,0:T(8,128)}', space=vmem, size = 0x4000, scoped, tag = 'scratch operand']
  %s0 = inlined_call_operand.hbm [shape: f32[2,8,32], index: 0, kind: input, shape index: {}]
  %s1 = inlined_call_operand.hbm [shape: f32[2,8,32], index: 1, kind: input, shape index: {}]
  %s2 = inlined_call_operand.vmem [shape: f32[1,32], index: 2, kind: input, shape index: {}]
  %s3 = inlined_call_operand.vmem [shape: f32[1,32], index: 3, kind: input, shape index: {}]
  %s4 = inlined_call_operand.hbm [shape: f32[32,64], index: 4, kind: input, shape index: {}]
  %s5 = inlined_call_operand.hbm [shape: f32[32,64], index: 5, kind: input, shape index: {}]
  %s6 = inlined_call_operand.hbm [shape: f32[32,64], index: 6, kind: input, shape index: {}]
  %s7 = inlined_call_operand.hbm [shape: f32[4,16,32], index: 7, kind: input, shape index: {}]
  %s8 = inlined_call_operand.vmem [shape: f32[1,32], index: 8, kind: input, shape index: {}]
  %s9 = inlined_call_operand.hbm [shape: f32[2,8,32], index: 9, kind: output, shape index: {}]
  %s10 = sld [smem:[#allocation0]]
  $region104: #{tpu_custom_call.1} parent=0
    _
  %s12 = ssub.s32 1, %s10
  %s13 = scalar_select 0, %s12, %s10
  $region1: #{tpu_custom_call.1} parent=0
    #allocation5 [shape = 'u8[8192]{0}', space=vmem, size = 0x2000, scoped, tag = 'input window, operand 0']
    #allocation6 [shape = 's32[2]{0}', space=sflag, size = 0x8, scoped, tag = 'scoped memory for tpu_custom_call.1']
    #allocation7 [shape = 's32[2]{0}', space=sflag, size = 0x8, scoped, tag = 'scoped memory for tpu_custom_call.1']
    #allocation8 [shape = 'u8[8192]{0}', space=vmem, size = 0x2000, scoped, tag = 'input window, operand 1']
    #allocation9 [shape = 's32[2]{0}', space=sflag, size = 0x8, scoped, tag = 'scoped memory for tpu_custom_call.1']
    #allocation10 [shape = 'u8[16384]{0}', space=vmem, size = 0x4000, scoped, tag = 'input window, operand 4, single buffered']
    #allocation11 [shape = 'u8[16384]{0}', space=vmem, size = 0x4000, scoped, tag = 'input window, operand 5, single buffered']
    #allocation12 [shape = 's32[1]{0}', space=sflag, size = 0x4, scoped, tag = 'scoped memory for tpu_custom_call.1']
    #allocation13 [shape = 'u8[16384]{0}', space=vmem, size = 0x4000, scoped, tag = 'input window, operand 6, single buffered']
    #allocation14 [shape = 'u8[32768]{0}', space=vmem, size = 0x8000, scoped, tag = 'input window, operand 7, single buffered']
    #allocation15 [shape = 's32[1]{0}', space=sflag, size = 0x4, scoped, tag = 'scoped memory for tpu_custom_call.1']
    #allocation16 [shape = 'u8[8192]{0}', space=vmem, size = 0x2000, scoped, tag = 'output window, operand 0']
    %14 = vsyncpa [#allocation6], 0
    %s15 = scalar_lea.sflag [#allocation6], 1
    %16 = vsyncpa %s15, 0
    %17 = vsyncpa [#allocation9], 0
    %s18 = scalar_lea.sflag [#allocation9], 1
    %19 = vsyncpa %s18, 0
    %20 = vsyncpa [#allocation12], 0
    %21 = vsyncpa [#allocation15], 0
    %22 = vsyncpa [#allocation7], 0
    %s23 = scalar_lea.sflag [#allocation7], 1
    %24 = vsyncpa %s23, 0
    loop: start=0, step=1, limit=4
    $region2: #{tpu_custom_call.1} parent=1 // loop_pre_header
      _
    $region3: #{tpu_custom_call.1} parent=1 // loop_header
      %s26 = sphi 0, %s30
      %p27 = scmp.ge.s32.totalorder %s26, 4
      %s33 = sphi 0, %s45
      %s34 = sphi 0, %s41
      %s35 = sphi 0, %s33
      %s36 = sphi 0, %s34
      %s37 = sphi 0, %s35
      %s38 = sphi 0, %s36
      %s50 = sphi 0, %s52
      %s53 = sphi 0, %s50
      %s54 = sphi 0, %s53
      %s70 = sphi 0, %s54
      %s76 = sphi 0, %s78
      %s79 = sphi 0, %s76
      %s80 = sphi 0, %s79
      %s96 = sphi 0, %s80
      %s100 = sphi 0, %s100
      %s102 = sphi 0, %s100
      %s103 = sphi 0, %s102
      %s117 = sphi 0, %s103
      %s121 = sphi 0, %s121
      %s123 = sphi 0, %s121
      %s124 = sphi 0, %s123
      %s138 = sphi 0, %s124
      %s142 = sphi 0, %s142
      %s144 = sphi 0, %s142
      %s145 = sphi 0, %s144
      %s159 = sphi 0, %s145
      %s163 = sphi 0, %s163
      %s165 = sphi 0, %s163
      %s166 = sphi 0, %s165
      %s180 = sphi 0, %s166
      %s184 = sphi 0, %s184
      %s186 = sphi 0, %s184
      %s187 = sphi 0, %s186
      %s201 = sphi 0, %s187
      %s205 = sphi 0, %s205
      %s207 = sphi 0, %s205
      %s208 = sphi 0, %s207
      %s222 = sphi 0, %s208
      %s226 = sphi 0, %s226
      %s228 = sphi 0, %s226
      %s229 = sphi 0, %s228
      %s243 = sphi 0, %s229
      %s251 = sphi 0, %s253
      %s254 = sphi 0, %s251
      %s255 = sphi 0, %s254
      %s271 = sphi 0, %s255
    $region4: #{tpu_custom_call.1} parent=1 // loop_header_branch
      %29 = sbr.rel (%p27) target = $region8
    $region5: #{tpu_custom_call.1} parent=1 // loop_body
      %s31 = ssub.s32 %s26, 1
      %s32 = ssub.s32 %s26, 2
      %s39 = sadd.s32 1, %s34
      %p40 = scmp.ge.s32.totalorder %s39, 1
      %s41 = scalar_select %p40, 0, %s39
      %s42 = sadd.s32 1, %s33
      %s43 = scalar_select %p40, %s42, %s33
      %p44 = scmp.ge.s32.totalorder %s43, 2
      %s45 = scalar_select %p44, 0, %s43
      %s46 = ssub.s32 %s33, %s45
      %s47 = ssub.s32 %s34, %s41
      %s48 = sor.u32 %s46, %s47
      %p49 = scmp.eq.s32.totalorder %s48, 0
      %s51 = sadd.s32 %s50, 1
      %s52 = scalar_select %p49, %s50, %s51
      %p55 = pneg %p49
      %p56 = scmp.eq.s32.totalorder %s26, 1
      %p57 = por %p55, %p56
      %p58 = scmp.ne.s32.totalorder %s50, %s53
      %p59 = scmp.eq.s32.totalorder %s26, 0
      %p60 = por %p58, %p59
      %p61 = scmp.ne.s32.totalorder %s50, %s53
      %p62 = scmp.eq.s32.totalorder %s31, 1
      %p63 = por %p61, %p62
      %p64 = scmp.ne.s32.totalorder %s53, %s54
      %p65 = scmp.eq.s32.totalorder %s31, 0
      %p66 = por %p64, %p65
      %p67 = scmp.ne.s32.totalorder %s53, %s54
      %p68 = scmp.eq.s32.totalorder %s32, 1
      %p69 = por %p67, %p68
      %p71 = scmp.ne.s32.totalorder %s54, %s70
      %p72 = scmp.eq.s32.totalorder %s32, 0
      %p73 = por %p71, %p72
      %s74 = ssub.s32 %s33, %s45
      %p75 = scmp.eq.s32.totalorder %s74, 0
      %s77 = sadd.s32 %s76, 1
      %s78 = scalar_select %p75, %s76, %s77
      %p81 = pneg %p75
      %p82 = scmp.eq.s32.totalorder %s26, 1
      %p83 = por %p81, %p82
      %p84 = scmp.ne.s32.totalorder %s76, %s79
      %p85 = scmp.eq.s32.totalorder %s26, 0
      %p86 = por %p84, %p85
      %p87 = scmp.ne.s32.totalorder %s76, %s79
      %p88 = scmp.eq.s32.totalorder %s31, 1
      %p89 = por %p87, %p88
      %p90 = scmp.ne.s32.totalorder %s79, %s80
      %p91 = scmp.eq.s32.totalorder %s31, 0
      %p92 = por %p90, %p91
      %p93 = scmp.ne.s32.totalorder %s79, %s80
      %p94 = scmp.eq.s32.totalorder %s32, 1
      %p95 = por %p93, %p94
      %p97 = scmp.ne.s32.totalorder %s80, %s96
      %p98 = scmp.eq.s32.totalorder %s32, 0
      %p99 = por %p97, %p98
      %s101 = sadd.s32 %s100, 1
      %p104 = scmp.eq.s32.totalorder %s26, 1
      %p105 = scmp.ne.s32.totalorder %s100, %s102
      %p106 = scmp.eq.s32.totalorder %s26, 0
      %p107 = por %p105, %p106
      %p108 = scmp.ne.s32.totalorder %s100, %s102
      %p109 = scmp.eq.s32.totalorder %s31, 1
      %p110 = por %p108, %p109
      %p111 = scmp.ne.s32.totalorder %s102, %s103
      %p112 = scmp.eq.s32.totalorder %s31, 0
      %p113 = por %p111, %p112
      %p114 = scmp.ne.s32.totalorder %s102, %s103
      %p115 = scmp.eq.s32.totalorder %s32, 1
      %p116 = por %p114, %p115
      %p118 = scmp.ne.s32.totalorder %s103, %s117
      %p119 = scmp.eq.s32.totalorder %s32, 0
      %p120 = por %p118, %p119
      %s122 = sadd.s32 %s121, 1
      %p125 = scmp.eq.s32.totalorder %s26, 1
      %p126 = scmp.ne.s32.totalorder %s121, %s123
      %p127 = scmp.eq.s32.totalorder %s26, 0
      %p128 = por %p126, %p127
      %p129 = scmp.ne.s32.totalorder %s121, %s123
      %p130 = scmp.eq.s32.totalorder %s31, 1
      %p131 = por %p129, %p130
      %p132 = scmp.ne.s32.totalorder %s123, %s124
      %p133 = scmp.eq.s32.totalorder %s31, 0
      %p134 = por %p132, %p133
      %p135 = scmp.ne.s32.totalorder %s123, %s124
      %p136 = scmp.eq.s32.totalorder %s32, 1
      %p137 = por %p135, %p136
      %p139 = scmp.ne.s32.totalorder %s124, %s138
      %p140 = scmp.eq.s32.totalorder %s32, 0
      %p141 = por %p139, %p140
      %s143 = sadd.s32 %s142, 1
      %p146 = scmp.eq.s32.totalorder %s26, 1
      %p147 = scmp.ne.s32.totalorder %s142, %s144
      %p148 = scmp.eq.s32.totalorder %s26, 0
      %p149 = por %p147, %p148
      %p150 = scmp.ne.s32.totalorder %s142, %s144
      %p151 = scmp.eq.s32.totalorder %s31, 1
      %p152 = por %p150, %p151
      %p153 = scmp.ne.s32.totalorder %s144, %s145
      %p154 = scmp.eq.s32.totalorder %s31, 0
      %p155 = por %p153, %p154
      %p156 = scmp.ne.s32.totalorder %s144, %s145
      %p157 = scmp.eq.s32.totalorder %s32, 1
      %p158 = por %p156, %p157
      %p160 = scmp.ne.s32.totalorder %s145, %s159
      %p161 = scmp.eq.s32.totalorder %s32, 0
      %p162 = por %p160, %p161
      %s164 = sadd.s32 %s163, 1
      %p167 = scmp.eq.s32.totalorder %s26, 1
      %p168 = scmp.ne.s32.totalorder %s163, %s165
      %p169 = scmp.eq.s32.totalorder %s26, 0
      %p170 = por %p168, %p169
      %p171 = scmp.ne.s32.totalorder %s163, %s165
      %p172 = scmp.eq.s32.totalorder %s31, 1
      %p173 = por %p171, %p172
      %p174 = scmp.ne.s32.totalorder %s165, %s166
      %p175 = scmp.eq.s32.totalorder %s31, 0
      %p176 = por %p174, %p175
      %p177 = scmp.ne.s32.totalorder %s165, %s166
      %p178 = scmp.eq.s32.totalorder %s32, 1
      %p179 = por %p177, %p178
      %p181 = scmp.ne.s32.totalorder %s166, %s180
      %p182 = scmp.eq.s32.totalorder %s32, 0
      %p183 = por %p181, %p182
      %s185 = sadd.s32 %s184, 1
      %p188 = scmp.eq.s32.totalorder %s26, 1
      %p189 = scmp.ne.s32.totalorder %s184, %s186
      %p190 = scmp.eq.s32.totalorder %s26, 0
      %p191 = por %p189, %p190
      %p192 = scmp.ne.s32.totalorder %s184, %s186
      %p193 = scmp.eq.s32.totalorder %s31, 1
      %p194 = por %p192, %p193
      %p195 = scmp.ne.s32.totalorder %s186, %s187
      %p196 = scmp.eq.s32.totalorder %s31, 0
      %p197 = por %p195, %p196
      %p198 = scmp.ne.s32.totalorder %s186, %s187
      %p199 = scmp.eq.s32.totalorder %s32, 1
      %p200 = por %p198, %p199
      %p202 = scmp.ne.s32.totalorder %s187, %s201
      %p203 = scmp.eq.s32.totalorder %s32, 0
      %p204 = por %p202, %p203
      %s206 = sadd.s32 %s205, 1
      %p209 = scmp.eq.s32.totalorder %s26, 1
      %p210 = scmp.ne.s32.totalorder %s205, %s207
      %p211 = scmp.eq.s32.totalorder %s26, 0
      %p212 = por %p210, %p211
      %p213 = scmp.ne.s32.totalorder %s205, %s207
      %p214 = scmp.eq.s32.totalorder %s31, 1
      %p215 = por %p213, %p214
      %p216 = scmp.ne.s32.totalorder %s207, %s208
      %p217 = scmp.eq.s32.totalorder %s31, 0
      %p218 = por %p216, %p217
      %p219 = scmp.ne.s32.totalorder %s207, %s208
      %p220 = scmp.eq.s32.totalorder %s32, 1
      %p221 = por %p219, %p220
      %p223 = scmp.ne.s32.totalorder %s208, %s222
      %p224 = scmp.eq.s32.totalorder %s32, 0
      %p225 = por %p223, %p224
      %s227 = sadd.s32 %s226, 1
      %p230 = scmp.eq.s32.totalorder %s26, 1
      %p231 = scmp.ne.s32.totalorder %s226, %s228
      %p232 = scmp.eq.s32.totalorder %s26, 0
      %p233 = por %p231, %p232
      %p234 = scmp.ne.s32.totalorder %s226, %s228
      %p235 = scmp.eq.s32.totalorder %s31, 1
      %p236 = por %p234, %p235
      %p237 = scmp.ne.s32.totalorder %s228, %s229
      %p238 = scmp.eq.s32.totalorder %s31, 0
      %p239 = por %p237, %p238
      %p240 = scmp.ne.s32.totalorder %s228, %s229
      %p241 = scmp.eq.s32.totalorder %s32, 1
      %p242 = por %p240, %p241
      %p244 = scmp.ne.s32.totalorder %s229, %s243
      %p245 = scmp.eq.s32.totalorder %s32, 0
      %p246 = por %p244, %p245
      %s247 = ssub.s32 %s33, %s45
      %s248 = ssub.s32 %s34, %s41
      %s249 = sor.u32 %s247, %s248
      %p250 = scmp.eq.s32.totalorder %s249, 0
      %s252 = sadd.s32 %s251, 1
      %s253 = scalar_select %p250, %s251, %s252
      %p256 = pneg %p250
      %p257 = scmp.eq.s32.totalorder %s26, 1
      %p258 = por %p256, %p257
      %p259 = scmp.ne.s32.totalorder %s251, %s254
      %p260 = scmp.eq.s32.totalorder %s26, 0
      %p261 = por %p259, %p260
      %p262 = scmp.ne.s32.totalorder %s251, %s254
      %p263 = scmp.eq.s32.totalorder %s31, 1
      %p264 = por %p262, %p263
      %p265 = scmp.ne.s32.totalorder %s254, %s255
      %p266 = scmp.eq.s32.totalorder %s31, 0
      %p267 = por %p265, %p266
      %p268 = scmp.ne.s32.totalorder %s254, %s255
      %p269 = scmp.eq.s32.totalorder %s32, 1
      %p270 = por %p268, %p269
      %p272 = scmp.ne.s32.totalorder %s255, %s271
      %p273 = scmp.eq.s32.totalorder %s32, 0
      %p274 = por %p272, %p273
      %p275 = scmp.le.s32.totalorder 1, %s26
      %p276 = scmp.lt.s32.totalorder %s26, 3
      %p277 = pnand %p275, %p276
      %p278 = pneg %p277
      // Predicated region
      $region9: #{tpu_custom_call.1} parent=5 // pred_check
        _
      $region10: #{tpu_custom_call.1} parent=5 // pred_check_branch
        %280 = sbr.rel (%p277) target = $region12
      $region11: #{tpu_custom_call.1} parent=5 // pred_region
        %s281 = ssub.s32 %s26, 1
        // Predicated region
        $region13: #{tpu_custom_call.1} parent=11 // pred_check
          %p282 = pneg %p113
        $region14: #{tpu_custom_call.1} parent=11 // pred_check_branch
          %284 = sbr.rel (%p282) target = $region16
        $region15: #{tpu_custom_call.1} parent=11 // pred_region
          _
        $region16: #{tpu_custom_call.1} parent=11 // pred_fallthru
          _
        // Predicated region
        $region17: #{tpu_custom_call.1} parent=11 // pred_check
          %p285 = pneg %p134
        $region18: #{tpu_custom_call.1} parent=11 // pred_check_branch
          %287 = sbr.rel (%p285) target = $region20
        $region19: #{tpu_custom_call.1} parent=11 // pred_region
          _
        $region20: #{tpu_custom_call.1} parent=11 // pred_fallthru
          _
        // Predicated region
        $region21: #{tpu_custom_call.1} parent=11 // pred_check
          %p288 = pneg %p155
        $region22: #{tpu_custom_call.1} parent=11 // pred_check_branch
          %290 = sbr.rel (%p288) target = $region24
        $region23: #{tpu_custom_call.1} parent=11 // pred_region
          %s292 = ssub.s32 512, 512
          %293 = vsyncadd [#allocation9], %s292
          %s294 = sshll.u32 [#allocation10], 4
          %s295 = int_to_ptr.vmem [resolvable:$true] %s294
          %300 = dma.hbm_to_vmem [thread:$0]  %s4, 512, %s295, [#allocation9], 128, 128, 8
        $region24: #{tpu_custom_call.1} parent=11 // pred_fallthru
          _
        // Predicated region
        $region25: #{tpu_custom_call.1} parent=11 // pred_check
          %p301 = pneg %p176
        $region26: #{tpu_custom_call.1} parent=11 // pred_check_branch
          %303 = sbr.rel (%p301) target = $region28
        $region27: #{tpu_custom_call.1} parent=11 // pred_region
          %s305 = ssub.s32 512, 512
          %306 = vsyncadd [#allocation12], %s305
          %s307 = sshll.u32 [#allocation11], 4
          %s308 = int_to_ptr.vmem [resolvable:$true] %s307
          %313 = dma.hbm_to_vmem [thread:$0]  %s5, 512, %s308, [#allocation12], 128, 128, 8
        $region28: #{tpu_custom_call.1} parent=11 // pred_fallthru
          _
        // Predicated region
        $region29: #{tpu_custom_call.1} parent=11 // pred_check
          %p314 = pneg %p197
        $region30: #{tpu_custom_call.1} parent=11 // pred_check_branch
          %316 = sbr.rel (%p314) target = $region32
        $region31: #{tpu_custom_call.1} parent=11 // pred_region
          %s318 = ssub.s32 512, 512
          %319 = vsyncadd [#allocation12], %s318
          %s320 = sshll.u32 [#allocation13], 4
          %s321 = int_to_ptr.vmem [resolvable:$true] %s320
          %326 = dma.hbm_to_vmem [thread:$0]  %s6, 512, %s321, [#allocation12], 128, 128, 8
        $region32: #{tpu_custom_call.1} parent=11 // pred_fallthru
          _
        // Predicated region
        $region33: #{tpu_custom_call.1} parent=11 // pred_check
          %p327 = pneg %p218
        $region34: #{tpu_custom_call.1} parent=11 // pred_check_branch
          %329 = sbr.rel (%p327) target = $region36
        $region35: #{tpu_custom_call.1} parent=11 // pred_region
          %s331 = ssub.s32 1024, 1024
          %332 = vsyncadd [#allocation15], %s331
          %s333 = sshll.u32 [#allocation14], 4
          %s334 = int_to_ptr.vmem [resolvable:$true] %s333
          %339 = dma.hbm_to_vmem [thread:$0]  %s7, 1024, %s334, [#allocation15], 128, 128, 8
        $region36: #{tpu_custom_call.1} parent=11 // pred_fallthru
          _
        // Predicated region
        $region37: #{tpu_custom_call.1} parent=11 // pred_check
          %p340 = pneg %p239
        $region38: #{tpu_custom_call.1} parent=11 // pred_check_branch
          %342 = sbr.rel (%p340) target = $region40
        $region39: #{tpu_custom_call.1} parent=11 // pred_region
          _
        $region40: #{tpu_custom_call.1} parent=11 // pred_fallthru
          _
      $region12: #{tpu_custom_call.1} parent=5 // pred_fallthru
        _
      %p343 = scmp.lt.s32.totalorder %s26, 2
      // Predicated region
      $region41: #{tpu_custom_call.1} parent=5 // pred_check
        %p344 = pneg %p343
      $region42: #{tpu_custom_call.1} parent=5 // pred_check_branch
        %346 = sbr.rel (%p344) target = $region44
      $region43: #{tpu_custom_call.1} parent=5 // pred_region
        // Predicated region
        $region45: #{tpu_custom_call.1} parent=43 // pred_check
          %p347 = pneg %p60
        $region46: #{tpu_custom_call.1} parent=43 // pred_check_branch
          %349 = sbr.rel (%p347) target = $region48
        $region47: #{tpu_custom_call.1} parent=43 // pred_region
          %s350 = sand.u32 %s50, 1
          %s351 = scalar_lea.sflag [#allocation6], %s350
          %s352 = sand.u32 %s50, 1
          %s353 = smul.addr %s352, 8
          %s354 = scalar_lea.vmem [#allocation5], %s353
          %s356 = ssub.s32 128, 128
          %357 = vsyncadd %s351, %s356
          %s358 = sadd.s32 %s34, %s33
          %s359 = smul.addr %s358, 128
          %s360 = scalar_lea.hbm %s0, %s359
          %s362 = sshll.u32 %s354, 4
          %s363 = int_to_ptr.vmem [resolvable:$true] %s362
          %365 = dma.hbm_to_vmem [thread:$0]  %s360, 128, %s363, %s351
        $region48: #{tpu_custom_call.1} parent=43 // pred_fallthru
          _
        // Predicated region
        $region49: #{tpu_custom_call.1} parent=43 // pred_check
          %p366 = pneg %p86
        $region50: #{tpu_custom_call.1} parent=43 // pred_check_branch
          %368 = sbr.rel (%p366) target = $region52
        $region51: #{tpu_custom_call.1} parent=43 // pred_region
          %s369 = sand.u32 %s26, 1
          %s370 = scalar_lea.sflag [#allocation9], %s369
          %s371 = sand.u32 %s76, 1
          %s372 = smul.addr %s371, 8
          %s373 = scalar_lea.vmem [#allocation8], %s372
          %s375 = ssub.s32 128, 128
          %376 = vsyncadd %s370, %s375
          %s377 = smul.addr %s33, 128
          %s378 = scalar_lea.hbm %s1, %s377
          %s380 = sshll.u32 %s373, 4
          %s381 = int_to_ptr.vmem [resolvable:$true] %s380
          %383 = dma.hbm_to_vmem [thread:$0]  %s378, 128, %s381, %s370
        $region52: #{tpu_custom_call.1} parent=43 // pred_fallthru
          _
      $region44: #{tpu_custom_call.1} parent=5 // pred_fallthru
        _
      %p384 = scmp.le.s32.totalorder 1, %s26
      %p385 = scmp.lt.s32.totalorder %s26, 3
      %p386 = pnand %p384, %p385
      %p387 = pneg %p386
      // Predicated region
      $region53: #{tpu_custom_call.1} parent=5 // pred_check
        _
      $region54: #{tpu_custom_call.1} parent=5 // pred_check_branch
        %389 = sbr.rel (%p386) target = $region56
      $region55: #{tpu_custom_call.1} parent=5 // pred_region
        %s390 = ssub.s32 %s26, 1
        %s391 = sand.u32 %s53, 1
        %s392 = scalar_lea.sflag [#allocation6], %s391
        %s393 = sand.u32 %s53, 1
        %s394 = smul.addr %s393, 8
        %s395 = scalar_lea.vmem [#allocation5], %s394
        // Predicated region
        $region57: #{tpu_custom_call.1} parent=55 // pred_check
          %p396 = pneg %p66
        $region58: #{tpu_custom_call.1} parent=55 // pred_check_branch
          %398 = sbr.rel (%p396) target = $region60
        $region59: #{tpu_custom_call.1} parent=55 // pred_region
          %399 = dma.done %s392, 128
        $region60: #{tpu_custom_call.1} parent=55 // pred_fallthru
          _
        %s400 = sand.u32 %s31, 1
        %s401 = scalar_lea.sflag [#allocation9], %s400
        %s402 = sand.u32 %s79, 1
        %s403 = smul.addr %s402, 8
        %s404 = scalar_lea.vmem [#allocation8], %s403
        // Predicated region
        $region61: #{tpu_custom_call.1} parent=55 // pred_check
          %p405 = pneg %p92
        $region62: #{tpu_custom_call.1} parent=55 // pred_check_branch
          %407 = sbr.rel (%p405) target = $region64
        $region63: #{tpu_custom_call.1} parent=55 // pred_region
          %408 = dma.done %s401, 128
        $region64: #{tpu_custom_call.1} parent=55 // pred_fallthru
          _
        // Predicated region
        $region65: #{tpu_custom_call.1} parent=55 // pred_check
          %p409 = pneg %p155
        $region66: #{tpu_custom_call.1} parent=55 // pred_check_branch
          %411 = sbr.rel (%p409) target = $region68
        $region67: #{tpu_custom_call.1} parent=55 // pred_region
          %412 = dma.done [#allocation9], 512
        $region68: #{tpu_custom_call.1} parent=55 // pred_fallthru
          _
        // Predicated region
        $region69: #{tpu_custom_call.1} parent=55 // pred_check
          %p413 = pneg %p176
        $region70: #{tpu_custom_call.1} parent=55 // pred_check_branch
          %415 = sbr.rel (%p413) target = $region72
        $region71: #{tpu_custom_call.1} parent=55 // pred_region
          %416 = dma.done [#allocation12], 512
        $region72: #{tpu_custom_call.1} parent=55 // pred_fallthru
          _
        // Predicated region
        $region73: #{tpu_custom_call.1} parent=55 // pred_check
          %p417 = pneg %p197
        $region74: #{tpu_custom_call.1} parent=55 // pred_check_branch
          %419 = sbr.rel (%p417) target = $region76
        $region75: #{tpu_custom_call.1} parent=55 // pred_region
          %420 = dma.done [#allocation12], 512
        $region76: #{tpu_custom_call.1} parent=55 // pred_fallthru
          _
        // Predicated region
        $region77: #{tpu_custom_call.1} parent=55 // pred_check
          %p421 = pneg %p218
        $region78: #{tpu_custom_call.1} parent=55 // pred_check_branch
          %423 = sbr.rel (%p421) target = $region80
        $region79: #{tpu_custom_call.1} parent=55 // pred_region
          %424 = dma.done [#allocation15], 1024
        $region80: #{tpu_custom_call.1} parent=55 // pred_fallthru
          _
        %s425 = sand.u32 %s53, 1
        %s426 = scalar_lea.sflag [#allocation6], %s425
        %s427 = sand.u32 %s53, 1
        %s428 = smul.addr %s427, 8
        %s429 = scalar_lea.vmem [#allocation5], %s428
        %p430 = pneg %p66
        %p431 = pneg %p63
        %s432 = sand.u32 %s31, 1
        %s433 = scalar_lea.sflag [#allocation9], %s432
        %s434 = sand.u32 %s79, 1
        %s435 = smul.addr %s434, 8
        %s436 = scalar_lea.vmem [#allocation8], %s435
        %p437 = pneg %p92
        %p438 = pneg %p89
        %p439 = pneg %p113
        %p440 = pneg %p110
        %p441 = pneg %p134
        %p442 = pneg %p131
        %p443 = pneg %p155
        %p444 = pneg %p152
        %p445 = pneg %p176
        %p446 = pneg %p173
        %p447 = pneg %p197
        %p448 = pneg %p194
        %p449 = pneg %p218
        %p450 = pneg %p215
        %p451 = pneg %p239
        %p452 = pneg %p236
        %p453 = pneg %p267
        %p454 = pneg %p264
        %s455 = sand.u32 %s254, 1
        %s456 = scalar_lea.sflag [#allocation7], %s455
        %s457 = sand.u32 %s254, 1
        %s458 = smul.addr %s457, 8
        %s459 = scalar_lea.vmem [#allocation16], %s458
        %v460 = vld [vmem:[%s2] sm:$0x1]
        %v461 = vld [vmem:[%s3] sm:$0x1]
        %p462 = scmp.eq.s32.totalorder %s36, 0
        // Predicated region
        $region81: #{tpu_custom_call.1} parent=55 // pred_check
          %p463 = pneg %p462
        $region82: #{tpu_custom_call.1} parent=55 // pred_check_branch
          %465 = sbr.rel (%p463) target = $region84
        $region83: #{tpu_custom_call.1} parent=55 // pred_region
          %v466 = vld [vmem:[%s404] sm:$0xff]
          %vm467 = vcmask 261120
          %v468 = vsel %vm467, %v466, 0.0
          %469 = vadd.xlane.f32.xlu0 %v468
          %v470 = vpop.xlane.xlu0 %469
          %v471 = vrcp.pop 32.0
          %v472 = vmul.f32 %v470, %v471
          %v473 = vmul.f32 %v466, %v466
          %v474 = vsel %vm467, %v473, 0.0
          %475 = vadd.xlane.f32.xlu0 %v474
          %v476 = vpop.xlane.xlu0 %475
          %v477 = vmul.f32 %v476, %v471
          %v478 = vmul.f32 %v472, %v472
          %v479 = vsub.f32 %v477, %v478
          %v480 = vadd.f32 %v479, 1e-05
          %v481 = vrsqrt.pop %v480
          %v482 = vsub.f32 %v466, %v472
          %v483 = vmul.f32 %v482, %v481
          %v485 = vlaneseq
          %v486 = vshrl.u32 %v485, 7
          %v487 = vsub.s32 0, %v486
          %v488 = vrot.slane %v460, %v487
          %v490 = vmul.f32 %v483, %v488
          %v492 = vlaneseq
          %v493 = vshrl.u32 %v492, 7
          %v494 = vsub.s32 0, %v493
          %v495 = vrot.slane %v461, %v494
          %v497 = vadd.f32 %v490, %v495
          %v498 = vld [vmem:[#allocation11] sm:$0xff]
          %v499 = vld [vmem:[#allocation11 + $0x8] sm:$0xff]
          %v500 = vld [vmem:[#allocation11 + $0x10] sm:$0xff]
          %v501 = vld [vmem:[#allocation11 + $0x18] sm:$0xff]
          %v503 = vsel %vm467, %v497, 0
          %505 = vmatprep.subr.mxu0 0.0
          %506 = vmatpush1.msra.mxu0 %v498
          %507 = vmatprep.subr.mxu0 0.0
          %508 = vmatpush1.msra.mxu0 %v499
          %509 = vmatprep.subr.mxu0 0.0
          %510 = vmatpush1.msra.mxu0 %v500
          %511 = vmatprep.subr.mxu0 0.0
          %512 = vmatpush1.msra.mxu0 %v501
          %513 = vmatprep.subr.mxu0 0.0
          %514 = vmatpush1.msra.mxu0 0.0
          %515 = vmatprep.subr.mxu0 0.0
          %516 = vmatpush1.msra.mxu0 0.0
          %517 = vmatprep.subr.mxu0 0.0
          %518 = vmatpush1.msra.mxu0 0.0
          %519 = vmatprep.subr.mxu0 0.0
          %520 = vmatpush1.msra.mxu0 0.0
          %521 = vmatprep.subr.mxu0 0.0
          %522 = vmatpush1.msra.mxu0 0.0
          %523 = vmatprep.subr.mxu0 0.0
          %524 = vmatpush1.msra.mxu0 0.0
          %525 = vmatprep.subr.mxu0 0.0
          %526 = vmatpush1.msra.mxu0 0.0
          %527 = vmatprep.subr.mxu0 0.0
          %528 = vmatpush1.msra.mxu0 0.0
          %529 = vmatprep.subr.mxu0 0.0
          %530 = vmatpush1.msra.mxu0 0.0
          %531 = vmatprep.subr.mxu0 0.0
          %532 = vmatpush1.msra.mxu0 0.0
          %533 = vmatprep.subr.mxu0 0.0
          %534 = vmatpush1.msra.mxu0 0.0
          %535 = vmatprep.subr.mxu0 0.0
          %536 = vmatpush1.msra.mxu0 0.0
          %537 = vmatprep.subr.mxu0 0.0
          %538 = vmatpush1.msra.mxu0 0.0
          %539 = vmatprep.subr.mxu0 0.0
          %540 = vmatpush1.msra.mxu0 0.0
          %541 = vmatprep.subr.mxu0 0.0
          %542 = vmatpush1.msra.mxu0 0.0
          %543 = vmatprep.subr.mxu0 0.0
          %544 = vmatpush1.msra.mxu0 0.0
          %545 = vmatprep.subr.mxu0 0.0
          %546 = vmatpush1.msra.mxu0 0.0
          %547 = vmatprep.subr.mxu0 0.0
          %548 = vmatpush1.msra.mxu0 0.0
          %549 = vmatprep.subr.mxu0 0.0
          %550 = vmatpush1.msra.mxu0 0.0
          %551 = vmatprep.subr.mxu0 0.0
          %552 = vmatpush1.msra.mxu0 0.0
          %553 = vmatprep.subr.mxu0 0.0
          %554 = vmatpush1.msra.mxu0 0.0
          %555 = vmatprep.subr.mxu0 0.0
          %556 = vmatpush1.msra.mxu0 0.0
          %557 = vmatprep.subr.mxu0 0.0
          %558 = vmatpush1.msra.mxu0 0.0
          %559 = vmatprep.subr.mxu0 0.0
          %560 = vmatpush1.msra.mxu0 0.0
          %561 = vmatprep.subr.mxu0 0.0
          %562 = vmatpush1.msra.mxu0 0.0
          %563 = vmatprep.subr.mxu0 0.0
          %564 = vmatpush1.msra.mxu0 0.0
          %565 = vmatprep.subr.mxu0 0.0
          %566 = vmatpush1.msra.mxu0 0.0
          %567 = vmatprep.subr.mxu0 0.0
          %568 = vmatpush1.msra.mxu0 0.0
          %569 = vmatprep.mubr.f32.mxu0 0.0
          %570 = vmatmul.mubr.f32.gmra.mrb[0].mxu0 %v503
          %v571 = vpop.f32.mrb[0].mxu0
          %v572 = vadd.f32 0.0, %v571
          %v573 = vpop.f32.mrb[0].mxu0
          %574 = vdwg.mxu0
          %v575 = vld [vmem:[#allocation13] sm:$0xff]
          %v576 = vld [vmem:[#allocation13 + $0x8] sm:$0xff]
          %v577 = vld [vmem:[#allocation13 + $0x10] sm:$0xff]
          %v578 = vld [vmem:[#allocation13 + $0x18] sm:$0xff]
          %579 = vmatprep.subr.mxu0 0.0
          %580 = vmatpush1.msra.mxu0 %v575
          %581 = vmatprep.subr.mxu0 0.0
          %582 = vmatpush1.msra.mxu0 %v576
          %583 = vmatprep.subr.mxu0 0.0
          %584 = vmatpush1.msra.mxu0 %v577
          %585 = vmatprep.subr.mxu0 0.0
          %586 = vmatpush1.msra.mxu0 %v578
          %587 = vmatprep.subr.mxu0 0.0
          %588 = vmatpush1.msra.mxu0 0.0
          %589 = vmatprep.subr.mxu0 0.0
          %590 = vmatpush1.msra.mxu0 0.0
          %591 = vmatprep.subr.mxu0 0.0
          %592 = vmatpush1.msra.mxu0 0.0
          %593 = vmatprep.subr.mxu0 0.0
          %594 = vmatpush1.msra.mxu0 0.0
          %595 = vmatprep.subr.mxu0 0.0
          %596 = vmatpush1.msra.mxu0 0.0
          %597 = vmatprep.subr.mxu0 0.0
          %598 = vmatpush1.msra.mxu0 0.0
          %599 = vmatprep.subr.mxu0 0.0
          %600 = vmatpush1.msra.mxu0 0.0
          %601 = vmatprep.subr.mxu0 0.0
          %602 = vmatpush1.msra.mxu0 0.0
          %603 = vmatprep.subr.mxu0 0.0
          %604 = vmatpush1.msra.mxu0 0.0
          %605 = vmatprep.subr.mxu0 0.0
          %606 = vmatpush1.msra.mxu0 0.0
          %607 = vmatprep.subr.mxu0 0.0
          %608 = vmatpush1.msra.mxu0 0.0
          %609 = vmatprep.subr.mxu0 0.0
          %610 = vmatpush1.msra.mxu0 0.0
          %611 = vmatprep.subr.mxu0 0.0
          %612 = vmatpush1.msra.mxu0 0.0
          %613 = vmatprep.subr.mxu0 0.0
          %614 = vmatpush1.msra.mxu0 0.0
          %615 = vmatprep.subr.mxu0 0.0
          %616 = vmatpush1.msra.mxu0 0.0
          %617 = vmatprep.subr.mxu0 0.0
          %618 = vmatpush1.msra.mxu0 0.0
          %619 = vmatprep.subr.mxu0 0.0
          %620 = vmatpush1.msra.mxu0 0.0
          %621 = vmatprep.subr.mxu0 0.0
          %622 = vmatpush1.msra.mxu0 0.0
          %623 = vmatprep.subr.mxu0 0.0
          %624 = vmatpush1.msra.mxu0 0.0
          %625 = vmatprep.subr.mxu0 0.0
          %626 = vmatpush1.msra.mxu0 0.0
          %627 = vmatprep.subr.mxu0 0.0
          %628 = vmatpush1.msra.mxu0 0.0
          %629 = vmatprep.subr.mxu0 0.0
          %630 = vmatpush1.msra.mxu0 0.0
          %631 = vmatprep.subr.mxu0 0.0
          %632 = vmatpush1.msra.mxu0 0.0
          %633 = vmatprep.subr.mxu0 0.0
          %634 = vmatpush1.msra.mxu0 0.0
          %635 = vmatprep.subr.mxu0 0.0
          %636 = vmatpush1.msra.mxu0 0.0
          %637 = vmatprep.subr.mxu0 0.0
          %638 = vmatpush1.msra.mxu0 0.0
          %639 = vmatprep.subr.mxu0 0.0
          %640 = vmatpush1.msra.mxu0 0.0
          %641 = vmatprep.subr.mxu0 0.0
          %642 = vmatpush1.msra.mxu0 0.0
          %643 = vmatprep.mubr.f32.mxu0 0.0
          %644 = vmatmul.mubr.f32.gmra.mrb[0].mxu0 %v503
          %v645 = vpop.f32.mrb[0].mxu0
          %v646 = vadd.f32 0.0, %v645
          %v647 = vpop.f32.mrb[0].mxu0
          %648 = vdwg.mxu0
          %vm649 = vcmask 130048
          %650 = vst.msk [vmem:[#allocation3] sm:$0xff] %vm649, %v572
          %651 = vst.msk [vmem:[#allocation4] sm:$0xff] %vm649, %v646
          %653 = vrot.lane.b32.xlu0 %v572, 112
          %v654 = vpop.permute.xlu0 %653
          %s656 = scalar_lea.vmem [#allocation3], 8
          %657 = vst.msk [vmem:[%s656] sm:$0xff] %vm649, %v654
          %659 = vrot.lane.b32.xlu0 %v646, 112
          %v660 = vpop.permute.xlu0 %659
          %s662 = scalar_lea.vmem [#allocation4], 8
          %663 = vst.msk [vmem:[%s662] sm:$0xff] %vm649, %v660
          %664 = vrot.lane.b32.xlu0 %v572, 96
          %v665 = vpop.permute.xlu0 %664
          %s667 = scalar_lea.vmem [#allocation3], 16
          %668 = vst.msk [vmem:[%s667] sm:$0xff] %vm649, %v665
          %669 = vrot.lane.b32.xlu0 %v646, 96
          %v670 = vpop.permute.xlu0 %669
          %s672 = scalar_lea.vmem [#allocation4], 16
          %673 = vst.msk [vmem:[%s672] sm:$0xff] %vm649, %v670
          %674 = vrot.lane.b32.xlu0 %v572, 80
          %v675 = vpop.permute.xlu0 %674
          %s677 = scalar_lea.vmem [#allocation3], 24
          %678 = vst.msk [vmem:[%s677] sm:$0xff] %vm649, %v675
          %679 = vrot.lane.b32.xlu0 %v646, 80
          %v680 = vpop.permute.xlu0 %679
          %s682 = scalar_lea.vmem [#allocation4], 24
          %683 = vst.msk [vmem:[%s682] sm:$0xff] %vm649, %v680
        $region84: #{tpu_custom_call.1} parent=55 // pred_fallthru
          _
        %v684 = vld [vmem:[%s395] sm:$0xff]
        %vm685 = vcmask 261120
        %v686 = vsel %vm685, %v684, 0.0
        %687 = vadd.xlane.f32.xlu0 %v686
        %v688 = vpop.xlane.xlu0 %687
        %v689 = vrcp.pop 32.0
        %v690 = vmul.f32 %v688, %v689
        %v691 = vmul.f32 %v684, %v684
        %v692 = vsel %vm685, %v691, 0.0
        %693 = vadd.xlane.f32.xlu0 %v692
        %v694 = vpop.xlane.xlu0 %693
        %v695 = vmul.f32 %v694, %v689
        %v696 = vmul.f32 %v690, %v690
        %v697 = vsub.f32 %v695, %v696
        %v698 = vadd.f32 %v697, 1e-05
        %v699 = vrsqrt.pop %v698
        %v700 = vsub.f32 %v684, %v690
        %v701 = vmul.f32 %v700, %v699
        %v703 = vlaneseq
        %v704 = vshrl.u32 %v703, 7
        %v705 = vsub.s32 0, %v704
        %v706 = vrot.slane %v460, %v705
        %v708 = vmul.f32 %v701, %v706
        %v710 = vlaneseq
        %v711 = vshrl.u32 %v710, 7
        %v712 = vsub.s32 0, %v711
        %v713 = vrot.slane %v461, %v712
        %v715 = vadd.f32 %v708, %v713
        %v716 = vld [vmem:[#allocation10] sm:$0xff]
        %v717 = vld [vmem:[#allocation10 + $0x8] sm:$0xff]
        %v718 = vld [vmem:[#allocation10 + $0x10] sm:$0xff]
        %v719 = vld [vmem:[#allocation10 + $0x18] sm:$0xff]
        %v721 = vsel %vm685, %v715, 0
        %723 = vmatprep.subr.mxu0 0.0
        %724 = vmatpush1.msra.mxu0 %v716
        %725 = vmatprep.subr.mxu0 0.0
        %726 = vmatpush1.msra.mxu0 %v717
        %727 = vmatprep.subr.mxu0 0.0
        %728 = vmatpush1.msra.mxu0 %v718
        %729 = vmatprep.subr.mxu0 0.0
        %730 = vmatpush1.msra.mxu0 %v719
        %731 = vmatprep.subr.mxu0 0.0
        %732 = vmatpush1.msra.mxu0 0.0
        %733 = vmatprep.subr.mxu0 0.0
        %734 = vmatpush1.msra.mxu0 0.0
        %735 = vmatprep.subr.mxu0 0.0
        %736 = vmatpush1.msra.mxu0 0.0
        %737 = vmatprep.subr.mxu0 0.0
        %738 = vmatpush1.msra.mxu0 0.0
        %739 = vmatprep.subr.mxu0 0.0
        %740 = vmatpush1.msra.mxu0 0.0
        %741 = vmatprep.subr.mxu0 0.0
        %742 = vmatpush1.msra.mxu0 0.0
        %743 = vmatprep.subr.mxu0 0.0
        %744 = vmatpush1.msra.mxu0 0.0
        %745 = vmatprep.subr.mxu0 0.0
        %746 = vmatpush1.msra.mxu0 0.0
        %747 = vmatprep.subr.mxu0 0.0
        %748 = vmatpush1.msra.mxu0 0.0
        %749 = vmatprep.subr.mxu0 0.0
        %750 = vmatpush1.msra.mxu0 0.0
        %751 = vmatprep.subr.mxu0 0.0
        %752 = vmatpush1.msra.mxu0 0.0
        %753 = vmatprep.subr.mxu0 0.0
        %754 = vmatpush1.msra.mxu0 0.0
        %755 = vmatprep.subr.mxu0 0.0
        %756 = vmatpush1.msra.mxu0 0.0
        %757 = vmatprep.subr.mxu0 0.0
        %758 = vmatpush1.msra.mxu0 0.0
        %759 = vmatprep.subr.mxu0 0.0
        %760 = vmatpush1.msra.mxu0 0.0
        %761 = vmatprep.subr.mxu0 0.0
        %762 = vmatpush1.msra.mxu0 0.0
        %763 = vmatprep.subr.mxu0 0.0
        %764 = vmatpush1.msra.mxu0 0.0
        %765 = vmatprep.subr.mxu0 0.0
        %766 = vmatpush1.msra.mxu0 0.0
        %767 = vmatprep.subr.mxu0 0.0
        %768 = vmatpush1.msra.mxu0 0.0
        %769 = vmatprep.subr.mxu0 0.0
        %770 = vmatpush1.msra.mxu0 0.0
        %771 = vmatprep.subr.mxu0 0.0
        %772 = vmatpush1.msra.mxu0 0.0
        %773 = vmatprep.subr.mxu0 0.0
        %774 = vmatpush1.msra.mxu0 0.0
        %775 = vmatprep.subr.mxu0 0.0
        %776 = vmatpush1.msra.mxu0 0.0
        %777 = vmatprep.subr.mxu0 0.0
        %778 = vmatpush1.msra.mxu0 0.0
        %779 = vmatprep.subr.mxu0 0.0
        %780 = vmatpush1.msra.mxu0 0.0
        %781 = vmatprep.subr.mxu0 0.0
        %782 = vmatpush1.msra.mxu0 0.0
        %783 = vmatprep.subr.mxu0 0.0
        %784 = vmatpush1.msra.mxu0 0.0
        %785 = vmatprep.subr.mxu0 0.0
        %786 = vmatpush1.msra.mxu0 0.0
        %787 = vmatprep.mubr.f32.mxu0 0.0
        %788 = vmatmul.mubr.f32.gmra.mrb[0].mxu0 %v721
        %v789 = vpop.f32.mrb[0].mxu0
        %v790 = vadd.f32 0.0, %v789
        %v791 = vpop.f32.mrb[0].mxu0
        %792 = vdwg.mxu0
        %vm793 = vcmask 130048
        %794 = vst.msk [vmem:[#allocation2] sm:$0xff] %vm793, %v790
        %796 = vrot.lane.b32.xlu0 %v790, 112
        %v797 = vpop.permute.xlu0 %796
        %s799 = scalar_lea.vmem [#allocation2], 8
        %800 = vst.msk [vmem:[%s799] sm:$0xff] %vm793, %v797
        %801 = vrot.lane.b32.xlu0 %v790, 96
        %v802 = vpop.permute.xlu0 %801
        %s804 = scalar_lea.vmem [#allocation2], 16
        %805 = vst.msk [vmem:[%s804] sm:$0xff] %vm793, %v802
        %806 = vrot.lane.b32.xlu0 %v790, 80
        %v807 = vpop.permute.xlu0 %806
        %s809 = scalar_lea.vmem [#allocation2], 24
        %810 = vst.msk [vmem:[%s809] sm:$0xff] %vm793, %v807
        loop: start=0, step=1, limit=4
        $region85: #{tpu_custom_call.1} parent=55 // loop_pre_header
          _
        $region86: #{tpu_custom_call.1} parent=55 // loop_header
          %s812 = sphi 0, %s816
          %p813 = scmp.ge.s32.totalorder %s812, 4
          %v817 = vphi 0.0, %v1063
        $region87: #{tpu_custom_call.1} parent=55 // loop_header_branch
          %815 = sbr.rel (%p813) target = $region91
        $region88: #{tpu_custom_call.1} parent=55 // loop_body
          %s818 = smul.u32 %s812, 8
          %s819 = scalar_lea.vmem [#allocation2], %s818
          %v820 = vld [vmem:[%s819] sm:$0xff]
          %s821 = scalar_lea.vmem [#allocation3], %s818
          %v822 = vld [vmem:[%s821] sm:$0xff]
          %s823 = scalar_lea.vmem [#allocation4], %s818
          %v824 = vld [vmem:[%s823] sm:$0xff]
          %v826 = vsel %vm793, %v820, 0
          %v829 = vsel %vm793, %v822, 0
          %831 = vmatprep.subr.mxu0 0.0
          %832 = vmatpush1.xpose.msra.mxu0 %v829
          %833 = vmatprep.subr.mxu0 0.0
          %834 = vmatpush1.xpose.msra.mxu0 0.0
          %835 = vmatprep.subr.mxu0 0.0
          %836 = vmatpush1.xpose.msra.mxu0 0.0
          %837 = vmatprep.subr.mxu0 0.0
          %838 = vmatpush1.xpose.msra.mxu0 0.0
          %839 = vmatprep.subr.mxu0 0.0
          %840 = vmatpush1.xpose.msra.mxu0 0.0
          %841 = vmatprep.subr.mxu0 0.0
          %842 = vmatpush1.xpose.msra.mxu0 0.0
          %843 = vmatprep.subr.mxu0 0.0
          %844 = vmatpush1.xpose.msra.mxu0 0.0
          %845 = vmatprep.subr.mxu0 0.0
          %846 = vmatpush1.xpose.msra.mxu0 0.0
          %847 = vmatprep.subr.mxu0 0.0
          %848 = vmatpush1.xpose.msra.mxu0 0.0
          %849 = vmatprep.subr.mxu0 0.0
          %850 = vmatpush1.xpose.msra.mxu0 0.0
          %851 = vmatprep.subr.mxu0 0.0
          %852 = vmatpush1.xpose.msra.mxu0 0.0
          %853 = vmatprep.subr.mxu0 0.0
          %854 = vmatpush1.xpose.msra.mxu0 0.0
          %855 = vmatprep.subr.mxu0 0.0
          %856 = vmatpush1.xpose.msra.mxu0 0.0
          %857 = vmatprep.subr.mxu0 0.0
          %858 = vmatpush1.xpose.msra.mxu0 0.0
          %859 = vmatprep.subr.mxu0 0.0
          %860 = vmatpush1.xpose.msra.mxu0 0.0
          %861 = vmatprep.subr.mxu0 0.0
          %862 = vmatpush1.xpose.msra.mxu0 0.0
          %863 = vmatprep.subr.mxu0 0.0
          %864 = vmatpush1.xpose.msra.mxu0 0.0
          %865 = vmatprep.subr.mxu0 0.0
          %866 = vmatpush1.xpose.msra.mxu0 0.0
          %867 = vmatprep.subr.mxu0 0.0
          %868 = vmatpush1.xpose.msra.mxu0 0.0
          %869 = vmatprep.subr.mxu0 0.0
          %870 = vmatpush1.xpose.msra.mxu0 0.0
          %871 = vmatprep.subr.mxu0 0.0
          %872 = vmatpush1.xpose.msra.mxu0 0.0
          %873 = vmatprep.subr.mxu0 0.0
          %874 = vmatpush1.xpose.msra.mxu0 0.0
          %875 = vmatprep.subr.mxu0 0.0
          %876 = vmatpush1.xpose.msra.mxu0 0.0
          %877 = vmatprep.subr.mxu0 0.0
          %878 = vmatpush1.xpose.msra.mxu0 0.0
          %879 = vmatprep.subr.mxu0 0.0
          %880 = vmatpush1.xpose.msra.mxu0 0.0
          %881 = vmatprep.subr.mxu0 0.0
          %882 = vmatpush1.xpose.msra.mxu0 0.0
          %883 = vmatprep.subr.mxu0 0.0
          %884 = vmatpush1.xpose.msra.mxu0 0.0
          %885 = vmatprep.subr.mxu0 0.0
          %886 = vmatpush1.xpose.msra.mxu0 0.0
          %887 = vmatprep.subr.mxu0 0.0
          %888 = vmatpush1.xpose.msra.mxu0 0.0
          %889 = vmatprep.subr.mxu0 0.0
          %890 = vmatpush1.xpose.msra.mxu0 0.0
          %891 = vmatprep.subr.mxu0 0.0
          %892 = vmatpush1.xpose.msra.mxu0 0.0
          %893 = vmatprep.subr.mxu0 0.0
          %894 = vmatpush1.xpose.msra.mxu0 0.0
          %895 = vmatprep.mubr.f32.mxu0 0.0
          %896 = vmatmul.mubr.f32.gmra.mrb[0].mxu0 %v826
          %v897 = vpop.f32.mrb[0].mxu0
          %v898 = vadd.f32 0.0, %v897
          %v899 = vpop.f32.mrb[0].mxu0
          %900 = vdwg.mxu0
          %vm901 = vcmask 64512
          %v902 = vsel %vm901, %v898, -inf
          %903 = vmax.xlane.f32.xlu0 %v902
          %v904 = vpop.xlane.xlu0 %903
          %v905 = vsub.f32 %v898, %v904
          %v906 = vmul.f32 %v905, 1.442695
          %v907 = vpow.pop %v906
          %v908 = vsel %vm901, %v907, 0.0
          %909 = vadd.xlane.f32.xlu0 %v908
          %v910 = vpop.xlane.xlu0 %909
          %v912 = vsel %vm901, %v907, 0
          %914 = vmatprep.subr.mxu0 0.0
          %915 = vmatpush1.msra.mxu0 %v824
          %916 = vmatprep.subr.mxu0 0.0
          %917 = vmatpush1.msra.mxu0 0.0
          %918 = vmatprep.subr.mxu0 0.0
          %919 = vmatpush1.msra.mxu0 0.0
          %920 = vmatprep.subr.mxu0 0.0
          %921 = vmatpush1.msra.mxu0 0.0
          %922 = vmatprep.subr.mxu0 0.0
          %923 = vmatpush1.msra.mxu0 0.0
          %924 = vmatprep.subr.mxu0 0.0
          %925 = vmatpush1.msra.mxu0 0.0
          %926 = vmatprep.subr.mxu0 0.0
          %927 = vmatpush1.msra.mxu0 0.0
          %928 = vmatprep.subr.mxu0 0.0
          %929 = vmatpush1.msra.mxu0 0.0
          %930 = vmatprep.subr.mxu0 0.0
          %931 = vmatpush1.msra.mxu0 0.0
          %932 = vmatprep.subr.mxu0 0.0
          %933 = vmatpush1.msra.mxu0 0.0
          %934 = vmatprep.subr.mxu0 0.0
          %935 = vmatpush1.msra.mxu0 0.0
          %936 = vmatprep.subr.mxu0 0.0
          %937 = vmatpush1.msra.mxu0 0.0
          %938 = vmatprep.subr.mxu0 0.0
          %939 = vmatpush1.msra.mxu0 0.0
          %940 = vmatprep.subr.mxu0 0.0
          %941 = vmatpush1.msra.mxu0 0.0
          %942 = vmatprep.subr.mxu0 0.0
          %943 = vmatpush1.msra.mxu0 0.0
          %944 = vmatprep.subr.mxu0 0.0
          %945 = vmatpush1.msra.mxu0 0.0
          %946 = vmatprep.subr.mxu0 0.0
          %947 = vmatpush1.msra.mxu0 0.0
          %948 = vmatprep.subr.mxu0 0.0
          %949 = vmatpush1.msra.mxu0 0.0
          %950 = vmatprep.subr.mxu0 0.0
          %951 = vmatpush1.msra.mxu0 0.0
          %952 = vmatprep.subr.mxu0 0.0
          %953 = vmatpush1.msra.mxu0 0.0
          %954 = vmatprep.subr.mxu0 0.0
          %955 = vmatpush1.msra.mxu0 0.0
          %956 = vmatprep.subr.mxu0 0.0
          %957 = vmatpush1.msra.mxu0 0.0
          %958 = vmatprep.subr.mxu0 0.0
          %959 = vmatpush1.msra.mxu0 0.0
          %960 = vmatprep.subr.mxu0 0.0
          %961 = vmatpush1.msra.mxu0 0.0
          %962 = vmatprep.subr.mxu0 0.0
          %963 = vmatpush1.msra.mxu0 0.0
          %964 = vmatprep.subr.mxu0 0.0
          %965 = vmatpush1.msra.mxu0 0.0
          %966 = vmatprep.subr.mxu0 0.0
          %967 = vmatpush1.msra.mxu0 0.0
          %968 = vmatprep.subr.mxu0 0.0
          %969 = vmatpush1.msra.mxu0 0.0
          %970 = vmatprep.subr.mxu0 0.0
          %971 = vmatpush1.msra.mxu0 0.0
          %972 = vmatprep.subr.mxu0 0.0
          %973 = vmatpush1.msra.mxu0 0.0
          %974 = vmatprep.subr.mxu0 0.0
          %975 = vmatpush1.msra.mxu0 0.0
          %976 = vmatprep.subr.mxu0 0.0
          %977 = vmatpush1.msra.mxu0 0.0
          %978 = vmatprep.mubr.f32.mxu0 0.0
          %979 = vmatmul.mubr.f32.gmra.mrb[0].mxu0 %v912
          %v980 = vpop.f32.mrb[0].mxu0
          %v981 = vadd.f32 0.0, %v980
          %v982 = vpop.f32.mrb[0].mxu0
          %983 = vdwg.mxu0
          %v984 = vrcp.pop %v910
          %v985 = vmul.f32 %v981, %v984
          %s986 = smul.u32 %s812, 16
          %s987 = scalar_lea.vmem [#allocation14], %s986
          %v988 = vld [vmem:[%s987] sm:$0xff]
          %v989 = vld [vmem:[%s987 + $0x8] sm:$0xff]
          %v991 = vsel %vm793, %v985, 0
          %993 = vmatprep.subr.mxu0 0.0
          %994 = vmatpush1.msra.mxu0 %v988
          %995 = vmatprep.subr.mxu0 0.0
          %996 = vmatpush1.msra.mxu0 %v989
          %997 = vmatprep.subr.mxu0 0.0
          %998 = vmatpush1.msra.mxu0 0.0
          %999 = vmatprep.subr.mxu0 0.0
          %1000 = vmatpush1.msra.mxu0 0.0
          %1001 = vmatprep.subr.mxu0 0.0
          %1002 = vmatpush1.msra.mxu0 0.0
          %1003 = vmatprep.subr.mxu0 0.0
          %1004 = vmatpush1.msra.mxu0 0.0
          %1005 = vmatprep.subr.mxu0 0.0
          %1006 = vmatpush1.msra.mxu0 0.0
          %1007 = vmatprep.subr.mxu0 0.0
          %1008 = vmatpush1.msra.mxu0 0.0
          %1009 = vmatprep.subr.mxu0 0.0
          %1010 = vmatpush1.msra.mxu0 0.0
          %1011 = vmatprep.subr.mxu0 0.0
          %1012 = vmatpush1.msra.mxu0 0.0
          %1013 = vmatprep.subr.mxu0 0.0
          %1014 = vmatpush1.msra.mxu0 0.0
          %1015 = vmatprep.subr.mxu0 0.0
          %1016 = vmatpush1.msra.mxu0 0.0
          %1017 = vmatprep.subr.mxu0 0.0
          %1018 = vmatpush1.msra.mxu0 0.0
          %1019 = vmatprep.subr.mxu0 0.0
          %1020 = vmatpush1.msra.mxu0 0.0
          %1021 = vmatprep.subr.mxu0 0.0
          %1022 = vmatpush1.msra.mxu0 0.0
          %1023 = vmatprep.subr.mxu0 0.0
          %1024 = vmatpush1.msra.mxu0 0.0
          %1025 = vmatprep.subr.mxu0 0.0
          %1026 = vmatpush1.msra.mxu0 0.0
          %1027 = vmatprep.subr.mxu0 0.0
          %1028 = vmatpush1.msra.mxu0 0.0
          %1029 = vmatprep.subr.mxu0 0.0
          %1030 = vmatpush1.msra.mxu0 0.0
          %1031 = vmatprep.subr.mxu0 0.0
          %1032 = vmatpush1.msra.mxu0 0.0
          %1033 = vmatprep.subr.mxu0 0.0
          %1034 = vmatpush1.msra.mxu0 0.0
          %1035 = vmatprep.subr.mxu0 0.0
          %1036 = vmatpush1.msra.mxu0 0.0
          %1037 = vmatprep.subr.mxu0 0.0
          %1038 = vmatpush1.msra.mxu0 0.0
          %1039 = vmatprep.subr.mxu0 0.0
          %1040 = vmatpush1.msra.mxu0 0.0
          %1041 = vmatprep.subr.mxu0 0.0
          %1042 = vmatpush1.msra.mxu0 0.0
          %1043 = vmatprep.subr.mxu0 0.0
          %1044 = vmatpush1.msra.mxu0 0.0
          %1045 = vmatprep.subr.mxu0 0.0
          %1046 = vmatpush1.msra.mxu0 0.0
          %1047 = vmatprep.subr.mxu0 0.0
          %1048 = vmatpush1.msra.mxu0 0.0
          %1049 = vmatprep.subr.mxu0 0.0
          %1050 = vmatpush1.msra.mxu0 0.0
          %1051 = vmatprep.subr.mxu0 0.0
          %1052 = vmatpush1.msra.mxu0 0.0
          %1053 = vmatprep.subr.mxu0 0.0
          %1054 = vmatpush1.msra.mxu0 0.0
          %1055 = vmatprep.subr.mxu0 0.0
          %1056 = vmatpush1.msra.mxu0 0.0
          %1057 = vmatprep.mubr.f32.mxu0 0.0
          %1058 = vmatmul.mubr.f32.gmra.mrb[0].mxu0 %v991
          %v1059 = vpop.f32.mrb[0].mxu0
          %v1060 = vadd.f32 0.0, %v1059
          %v1061 = vpop.f32.mrb[0].mxu0
          %1062 = vdwg.mxu0
          %v1063 = vadd.f32 %v817, %v1060
        $region89: #{tpu_custom_call.1} parent=55 // loop_footer
          %s816 = sadd.s32 1, %s812
        $region90: #{tpu_custom_call.1} parent=55 // loop_footer_branch
          %811 = sbr.rel target = $region86
        $region91: #{tpu_custom_call.1} parent=55 // loop_exit
          _
        %v1064 = vld [vmem:[%s8] sm:$0x1]
        %v1066 = vlaneseq
        %v1067 = vshrl.u32 %v1066, 7
        %v1068 = vsub.s32 0, %v1067
        %v1069 = vrot.slane %v1064, %v1068
        %v1071 = vadd.f32 %v817, %v1069
        %1072 = vst.msk [vmem:[%s459] sm:$0xff] %vm685, %v1071
        %s1073 = sand.u32 %s254, 1
        %s1074 = scalar_lea.sflag [#allocation7], %s1073
        %s1075 = sand.u32 %s254, 1
        %s1076 = smul.addr %s1075, 8
        %s1077 = scalar_lea.vmem [#allocation16], %s1076
        // Predicated region
        $region92: #{tpu_custom_call.1} parent=55 // pred_check
          %p1078 = pneg %p264
        $region93: #{tpu_custom_call.1} parent=55 // pred_check_branch
          %1080 = sbr.rel (%p1078) target = $region95
        $region94: #{tpu_custom_call.1} parent=55 // pred_region
          %s1082 = ssub.s32 128, 128
          %1083 = vsyncadd %s1074, %s1082
          %s1084 = sadd.s32 %s36, %s35
          %s1085 = smul.addr %s1084, 128
          %s1086 = scalar_lea.hbm %s9, %s1085
          %s1088 = sshll.u32 %s1077, 4
          %s1089 = int_to_ptr.vmem [resolvable:$true] %s1088
          %1091 = dma.vmem_to_hbm [thread:$0]  %s1089, 128, %s1086, %s1074
        $region95: #{tpu_custom_call.1} parent=55 // pred_fallthru
          _
      $region56: #{tpu_custom_call.1} parent=5 // pred_fallthru
        _
      %p1092 = scmp.le.s32.totalorder 2, %s26
      // Predicated region
      $region96: #{tpu_custom_call.1} parent=5 // pred_check
        %p1093 = pneg %p1092
      $region97: #{tpu_custom_call.1} parent=5 // pred_check_branch
        %1095 = sbr.rel (%p1093) target = $region99
      $region98: #{tpu_custom_call.1} parent=5 // pred_region
        %s1096 = ssub.s32 %s26, 2
        // Predicated region
        $region100: #{tpu_custom_call.1} parent=98 // pred_check
          %p1097 = pneg %p270
        $region101: #{tpu_custom_call.1} parent=98 // pred_check_branch
          %1099 = sbr.rel (%p1097) target = $region103
        $region102: #{tpu_custom_call.1} parent=98 // pred_region
          %s1100 = sand.u32 %s255, 1
          %s1101 = scalar_lea.sflag [#allocation7], %s1100
          %s1102 = sand.u32 %s255, 1
          %s1103 = smul.addr %s1102, 8
          %s1104 = scalar_lea.vmem [#allocation16], %s1103
          %1105 = dma.done %s1101, 128
        $region103: #{tpu_custom_call.1} parent=98 // pred_fallthru
          _
      $region99: #{tpu_custom_call.1} parent=5 // pred_fallthru
        _
    $region6: #{tpu_custom_call.1} parent=1 // loop_footer
      %s30 = sadd.s32 1, %s26
    $region7: #{tpu_custom_call.1} parent=1 // loop_footer_branch
      %25 = sbr.rel target = $region3
    $region8: #{tpu_custom_call.1} parent=1 // loop_exit
      _
    %1106 = vsyncpa [#allocation6], 1
    %s1107 = scalar_lea.sflag [#allocation6], 1
    %1108 = vsyncpa %s1107, 1
    %1109 = vsyncpa [#allocation9], 1
    %s1110 = scalar_lea.sflag [#allocation9], 1
    %1111 = vsyncpa %s1110, 1
    %1112 = vsyncpa [#allocation12], 1
    %1113 = vsyncpa [#allocation15], 1
    %1114 = vsyncpa [#allocation7], 1
    %s1115 = scalar_lea.sflag [#allocation7], 1
    %1116 = vsyncpa %s1115, 1

</llo_original>
